<compile_context>
chip_gen: v6e
topology: v6e:2x2x1
jax: 0.10.0
libtpu: 0.0.40
codegen_flags: <defaults>
</compile_context>

<pallas_src>
import jax
import jax.numpy as jnp
from jax.experimental import pallas as pl
from jax.experimental.pallas import tpu as pltpu


# ----------------------------- Pallas kernel ------------------------------ #

def _mlp_sampler_kernel(samples_ref, samples_t_ref,
                        W1_ref, b1_ref, W2_ref, b2_ref, W3_ref, b3_ref,
                        P1_ref, P1b_ref, P2_ref, P2b_ref,
                        out_ref):
    """Grid point (b, s): batch tile b, step block s (G positions per block).

    samples_ref   : (TB, D)  int32      class indices for this batch tile
    samples_t_ref : (G, TB, 1) int32    same indices, step-major (gather index)
    W1/b1,W2/b2,W3/b3 : per-step MLP weights for the G steps of this block
                        (bf16 weights / f32 biases); step 0 encodes init_h.
    P1/P1b,P2/P2b : out_pred head (resident across the whole grid)
    out_ref       : (G, TB, 1) f32      log p(sample) for the G positions
    """
    G, TB, _ = out_ref.shape
    E = P1_ref.shape[0]
    C = P2_ref.shape[1]
    f32, bf16 = jnp.float32, jnp.bfloat16

    # NOTE: the int->bf16 cast is exact for class indices <= 256 (n_choices is
    # small for this model).
    samples_bf = samples_ref[...].astype(bf16)                    # (TB, D)

    # G independent per-position MLPs: Linear(D->2E, zero-padded K) -> ReLU ->
    # Linear(2E->2E) -> ReLU -> Linear(2E->E).  bf16 x bf16 -> f32 accumulate.
    states = []
    for g in range(G):
        h1 = jnp.maximum(
            jnp.dot(samples_bf, W1_ref[g], preferred_element_type=f32)
            + b1_ref[g], 0.0)
        h2 = jnp.maximum(
            jnp.dot(h1.astype(bf16), W2_ref[g], preferred_element_type=f32)
            + b2_ref[g], 0.0)
        st = (jnp.dot(h2.astype(bf16), W3_ref[g], preferred_element_type=f32)
              + b3_ref[g])
        states.append(st.astype(bf16))
    # (G*TB, E): sublane concat of tile-aligned pieces (TB % 16 == 0) — cheap.
    states2d = jnp.concatenate(states, axis=0)

    # out_pred head, batched over all G*TB rows of this block (M >= 128).
    h = jnp.maximum(
        jnp.dot(states2d, P1_ref[...], preferred_element_type=f32)
        + P1b_ref[...], 0.0)
    logits = (jnp.dot(h.astype(bf16), P2_ref[...], preferred_element_type=f32)
              + P2b_ref[...])                                     # (G*TB, C)
    logit3 = logits.reshape(G, TB, C)        # leading-dim split, tile-aligned

    # Selected-logit log-softmax: pure lane-axis reductions, no relayouts.
    idx3 = samples_t_ref[...]                                     # (G, TB, 1)
    lane3 = jax.lax.broadcasted_iota(jnp.int32, (G, TB, C), 2)
    onehot = lane3 == idx3
    m = jnp.max(logit3, axis=-1, keepdims=True)
    lse = jnp.log(jnp.sum(jnp.exp(logit3 - m), axis=-1, keepdims=True))
    sel = jnp.sum(jnp.where(onehot, logit3, 0.0), axis=-1, keepdims=True)
    out_ref[...] = sel - m - lse                                  # (G, TB, 1)


# ------------------------------ host wrapper ------------------------------ #

def mlp_sampler_forward(params, input_samples, n_choices, *, max_step_block=8):
    """log p(input_samples) under the autoregressive MLPSampler (teacher forcing)."""
    B, D = input_samples.shape
    E = params["init_h"].shape[1]
    C = n_choices

    # ---- batch tiling: multiple of 16 sublanes; M >= 256 for large B. ----
    if B <= 256:
        tile_b = max(16, ((B + 15) // 16) * 16)
    else:
        tile_b = 256
    B_pad = ((B + tile_b - 1) // tile_b) * tile_b
    nb = B_pad // tile_b

    # ---- VMEM accounting (tile/lane-padded block sizes + live temporaries) ----
    def _pad_up(n, m):
        return -(-n // m) * m

    def _blk_bytes(shape, itemsize):
        s = list(shape)
        s[-1] = _pad_up(s[-1], 128)
        if len(s) >= 2:
            s[-2] = _pad_up(s[-2], {4: 8, 2: 16, 1: 32}[itemsize])
        n = 1
        for d in s:
            n *= d
        return n * itemsize

    def _vmem_need(G):
        io = (_blk_bytes((tile_b, D), 4)                       # samples
              + _blk_bytes((G, tile_b, 1), 4)                  # samples_t
              + _blk_bytes((G, D, 2 * E), 2) + _blk_bytes((G, 1, 2 * E), 4)
              + _blk_bytes((G, 2 * E, 2 * E), 2) + _blk_bytes((G, 1, 2 * E), 4)
              + _blk_bytes((G, 2 * E, E), 2) + _blk_bytes((G, 1, E), 4)
              + _blk_bytes((E, 2 * E), 2) + _blk_bytes((1, 2 * E), 4)
              + _blk_bytes((2 * E, C), 2) + _blk_bytes((1, C), 4)
              + _blk_bytes((G, tile_b, 1), 4))                 # out
        tmp = (_blk_bytes((G * tile_b, E), 2)                  # concatenated states
               + _blk_bytes((G * tile_b, 2 * E), 4)            # head hidden
               + _blk_bytes((G * tile_b, C), 4)                # logits
               + 4 * _blk_bytes((tile_b, 2 * E), 4))           # per-step activations
        return 2 * io + tmp                                    # double-buffered I/O

    try:
        info = pltpu.get_tpu_info()
        phys_vmem = int(getattr(info, "vmem_capacity_bytes", 128 << 20))
    except Exception:
        phys_vmem = 128 << 20
    cap = int(0.75 * phys_vmem)            # leave headroom (v7x: 64 MiB physical)

    # ---- step blocking: amortize per-grid-step overhead, bigger weight DMAs ----
    G = max(1, min(max_step_block, D))
    while G > 1 and _vmem_need(G) > cap:
        G //= 2
    n_sb = -(-D // G)
    S_pad = n_sb * G
    # Always set the limit explicitly (v5e default scoped VMEM is only 16 MiB).
    vmem_limit = int(min(cap, max(2 * _vmem_need(G), 32 << 20)))

    # ---- pack inputs ----
    samples = jnp.zeros((B_pad, D), jnp.int32).at[:B].set(
        input_samples.astype(jnp.int32))
    # Step-major copy of the indices (gather index / output layout companion);
    # shaped (S_pad, B_pad, 1) so the kernel needs no lane<->sublane relayout.
    samples_t = jnp.zeros((S_pad, B_pad), jnp.int32).at[:D].set(samples.T)[..., None]

    def _pad_steps(x):
        return jnp.pad(x, ((0, S_pad - D),) + ((0, 0),) * (x.ndim - 1))

    W1 = _pad_steps(params["W1"])
    b1 = _pad_steps(params["b1"])
    W2 = _pad_steps(params["W2"])
    b2 = _pad_steps(params["b2"])
    W3 = _pad_steps(params["W3"])
    # Step 0 has no MLP: slot 0 is all-zero weights, so relu(0)=0 and
    # 0 @ W3 + init_h == init_h exactly — encode init_h as slot 0's b3.
    b3 = _pad_steps(params["b3"].at[0].set(params["init_h"]))

    # ---- advisory cost estimate (weights are re-streamed once per batch tile) ----
    per_row_step = 2 * (D * 2 * E + 4 * E * E + 2 * E * E)
    per_row_head = 2 * (2 * E * E + 2 * E * C)
    step_w_bytes = S_pad * ((D * 2 * E + 4 * E * E + 2 * E * E) * 2 + 5 * E * 4)
    head_w_bytes = (2 * E * E + 2 * E * C) * 2 + (2 * E + C) * 4
    cost = pl.CostEstimate(
        flops=int(B_pad * S_pad * (per_row_step + per_row_head)),
        transcendentals=int(B_pad * S_pad * (C + 1)),
        bytes_accessed=int(nb * step_w_bytes + head_w_bytes
                           + B_pad * D * 4 + 2 * B_pad * S_pad * 4))

    def step_spec(*dims):          # streamed (double-buffered) over the step axis
        return pl.BlockSpec((G,) + dims, lambda b, s: (s,) + (0,) * len(dims))

    def const_spec(*dims):         # resident across the whole grid
        return pl.BlockSpec(dims, lambda b, s: (0,) * len(dims))

    in_specs = [
        pl.BlockSpec((tile_b, D), lambda b, s: (b, 0)),        # samples
        pl.BlockSpec((G, tile_b, 1), lambda b, s: (s, b, 0)),  # samples_t
        step_spec(D, 2 * E),                                   # W1  (S_pad, D, 2E)
        step_spec(1, 2 * E),                                   # b1
        step_spec(2 * E, 2 * E),                               # W2
        step_spec(1, 2 * E),                                   # b2
        step_spec(2 * E, E),                                   # W3
        step_spec(1, E),                                       # b3
        const_spec(E, 2 * E),                                  # P1
        const_spec(1, 2 * E),                                  # P1b
        const_spec(2 * E, C),                                  # P2
        const_spec(1, C),                                      # P2b
    ]
    out_spec = pl.BlockSpec((G, tile_b, 1), lambda b, s: (s, b, 0))

    out = pl.pallas_call(
        _mlp_sampler_kernel,
        out_shape=jax.ShapeDtypeStruct((S_pad, B_pad, 1), jnp.float32),
        grid_spec=pltpu.PrefetchScalarGridSpec(
            num_scalar_prefetch=0,
            grid=(nb, n_sb),
            in_specs=in_specs,
            out_specs=out_spec),
        compiler_params=pltpu.CompilerParams(
            dimension_semantics=("parallel", "parallel"),
            vmem_limit_bytes=vmem_limit),
        cost_estimate=cost,
    )(samples, samples_t, W1, b1, W2, b2, W3, b3,
      params["P1"], params["P1b"], params["P2"], params["P2b"])

    return out[:D, :B, 0].T                                    # (B, D)


# --------------------------- parameter creation ---------------------------- #

def _glorot(key, fan_in, fan_out):
    limit = (6.0 / (fan_in + fan_out)) ** 0.5
    w = jax.random.uniform(key, (fan_in, fan_out), jnp.float32, -limit, limit)
    return w.astype(jnp.bfloat16)          # weights stored bf16 (MXU-native)


def _bias(key, n):
    return jax.random.uniform(key, (1, n), jnp.float32, -0.1, 0.1)


def init_params(key, n_choices, discrete_dim, embed_dim):
    """Stacked parameters; slot i holds list_mods[i-1] (slot 0 is all zeros)."""
    E, D, C = embed_dim, discrete_dim, n_choices
    keys = iter(jax.random.split(key, 5 + 6 * max(D - 1, 1)))
    params = {}
    params["init_h"] = jax.random.uniform(next(keys), (1, E), jnp.float32,
                                          -0.05, 0.05)
    # out_pred: MLP(E, [2E, n_choices])
    params["P1"] = _glorot(next(keys), E, 2 * E)
    params["P1b"] = _bias(next(keys), 2 * E)
    params["P2"] = _glorot(next(keys), 2 * E, C)
    params["P2b"] = _bias(next(keys), C)
    # list_mods[i-1] = MLP(i, [2E, 2E, E]); layer-1 weight zero-padded to D rows.
    W1 = [jnp.zeros((D, 2 * E), jnp.bfloat16)]
    b1 = [jnp.zeros((1, 2 * E), jnp.float32)]
    W2 = [jnp.zeros((2 * E, 2 * E), jnp.bfloat16)]
    b2 = [jnp.zeros((1, 2 * E), jnp.float32)]
    W3 = [jnp.zeros((2 * E, E), jnp.bfloat16)]
    b3 = [jnp.zeros((1, E), jnp.float32)]
    for i in range(1, D):
        w1 = _glorot(next(keys), i, 2 * E)
        W1.append(jnp.pad(w1, ((0, D - i), (0, 0))))
        b1.append(_bias(next(keys), 2 * E))
        W2.append(_glorot(next(keys), 2 * E, 2 * E))
        b2.append(_bias(next(keys), 2 * E))
        W3.append(_glorot(next(keys), 2 * E, E))
        b3.append(_bias(next(keys), E))
    params["W1"] = jnp.stack(W1)      # (D, D, 2E)  bf16
    params["b1"] = jnp.stack(b1)      # (D, 1, 2E)  f32
    params["W2"] = jnp.stack(W2)      # (D, 2E, 2E) bf16
    params["b2"] = jnp.stack(b2)      # (D, 1, 2E)  f32
    params["W3"] = jnp.stack(W3)      # (D, 2E, E)  bf16
    params["b3"] = jnp.stack(b3)      # (D, 1, E)   f32
    return params


# ----------------------------- pure-JAX reference -------------------------- #

def reference_forward(params, input_samples, n_choices):
    """Pure-JAX reference with the same numerics (bf16 weights, f32 accumulate)."""
    B, D = input_samples.shape
    E = params["init_h"].shape[1]
    bf, f32 = jnp.bfloat16, jnp.float32
    sf = input_samples.astype(bf)
    states = [jnp.broadcast_to(params["init_h"], (B, E))]
    for i in range(1, D):
        h1 = jax.nn.relu(jnp.dot(sf, params["W1"][i], preferred_element_type=f32)
                         + params["b1"][i])
        h2 = jax.nn.relu(jnp.dot(h1.astype(bf), params["W2"][i],
                                 preferred_element_type=f32) + params["b2"][i])
        states.append(jnp.dot(h2.astype(bf), params["W3"][i],
                              preferred_element_type=f32) + params["b3"][i])
    logps = []
    for i in range(D):
        h = jax.nn.relu(jnp.dot(states[i].astype(bf), params["P1"],
                                preferred_element_type=f32) + params["P1b"])
        logits = jnp.dot(h.astype(bf), params["P2"],
                         preferred_element_type=f32) + params["P2b"]
        lp = jax.nn.log_softmax(logits, axis=-1)
        logps.append(jnp.take_along_axis(lp, input_samples[:, i:i + 1], axis=1))
    return jnp.concatenate(logps, axis=-1)


# TODO(synk): sampling mode (num_samples path) uses torch.multinomial draws and
# the baseline_pred head; stochastic sequential sampling is not reproduced here.

if __name__ == "__main__":
    # E multiple of 64 so 2E = 128 is lane-aligned.
    n_choices, discrete_dim, embed_dim, batch = 4, 8, 64, 2

    key = jax.random.PRNGKey(0)
    k_param, k_samp = jax.random.split(key)
    params = init_params(k_param, n_choices, discrete_dim, embed_dim)
    input_samples = jax.random.randint(
        k_samp, (batch, discrete_dim), 0, n_choices, dtype=jnp.int32)

    log_probs = mlp_sampler_forward(params, input_samples, n_choices)
    log_probs = jax.block_until_ready(log_probs)

    ref = reference_forward(params, input_samples, n_choices)
    assert log_probs.shape == (batch, discrete_dim)
    assert jnp.allclose(log_probs, ref, rtol=1e-3, atol=1e-3), (log_probs, ref)

    print("KERNEL_OK")
</pallas_src>

<mosaic_0001>
module attributes {stable_mosaic.version = 11 : i64} {
  func.func @_mlp_sampler_kernel(%arg0: i32, %arg1: i32, %arg2: memref<16x8xi32, #tpu.memory_space<vmem>>, %arg3: memref<8x16x1xi32, #tpu.memory_space<vmem>>, %arg4: memref<8x8x128xbf16, #tpu.memory_space<vmem>>, %arg5: memref<8x1x128xf32, #tpu.memory_space<vmem>>, %arg6: memref<8x128x128xbf16, #tpu.memory_space<vmem>>, %arg7: memref<8x1x128xf32, #tpu.memory_space<vmem>>, %arg8: memref<8x128x64xbf16, #tpu.memory_space<vmem>>, %arg9: memref<8x1x64xf32, #tpu.memory_space<vmem>>, %arg10: memref<64x128xbf16, #tpu.memory_space<vmem>>, %arg11: memref<1x128xf32, #tpu.memory_space<vmem>>, %arg12: memref<128x4xbf16, #tpu.memory_space<vmem>>, %arg13: memref<1x4xf32, #tpu.memory_space<vmem>>, %arg14: memref<8x16x1xf32, #tpu.memory_space<vmem>>) attributes {dimension_semantics = [#tpu.dimension_semantics<parallel>, #tpu.dimension_semantics<parallel>], iteration_bounds = array<i64: 1, 1>, scalar_prefetch = 0 : i64, scratch_operands = 0 : i64, tpu.core_type = #tpu.core_type<tc>, window_params = [{transform_indices = @transform_0, window_bounds = array<i64: 16, 8>}, {transform_indices = @transform_1, window_bounds = array<i64: 8, 16, 1>}, {transform_indices = @transform_2, window_bounds = array<i64: 8, 8, 128>}, {transform_indices = @transform_3, window_bounds = array<i64: 8, 1, 128>}, {transform_indices = @transform_4, window_bounds = array<i64: 8, 128, 128>}, {transform_indices = @transform_5, window_bounds = array<i64: 8, 1, 128>}, {transform_indices = @transform_6, window_bounds = array<i64: 8, 128, 64>}, {transform_indices = @transform_7, window_bounds = array<i64: 8, 1, 64>}, {pipeline_mode = #tpu.pipeline_mode<synchronous>, transform_indices = @transform_8, window_bounds = array<i64: 64, 128>}, {pipeline_mode = #tpu.pipeline_mode<synchronous>, transform_indices = @transform_9, window_bounds = array<i64: 1, 128>}, {pipeline_mode = #tpu.pipeline_mode<synchronous>, transform_indices = @transform_10, window_bounds = array<i64: 128, 4>}, {pipeline_mode = #tpu.pipeline_mode<synchronous>, transform_indices = @transform_11, window_bounds = array<i64: 1, 4>}, {transform_indices = @transform_12, window_bounds = array<i64: 8, 16, 1>}]} {
    %c0 = arith.constant 0 : index
    %c0_0 = arith.constant 0 : index
    %0 = vector.load %arg2[%c0, %c0_0] : memref<16x8xi32, #tpu.memory_space<vmem>>, vector<16x8xi32>
    %1 = arith.sitofp %0 : vector<16x8xi32> to vector<16x8xbf16>
    %c0_1 = arith.constant 0 : index
    %c0_2 = arith.constant 0 : index
    %c0_3 = arith.constant 0 : index
    %2 = vector.load %arg4[%c0_1, %c0_2, %c0_3] : memref<8x8x128xbf16, #tpu.memory_space<vmem>>, vector<1x8x128xbf16>
    %3 = vector.shape_cast %2 : vector<1x8x128xbf16> to vector<8x128xbf16>
    %cst = arith.constant dense<0.000000e+00> : vector<16x128xf32>
    %4 = tpu.matmul %1, %3, %cst {dimension_numbers = #tpu.dot_dimension_numbers<[1], [0], [0], [1], [0, 0, 1, 1], [], []>} : vector<16x8xbf16>, vector<8x128xbf16>, vector<16x128xf32> -> vector<16x128xf32>
    %c0_4 = arith.constant 0 : index
    %c0_5 = arith.constant 0 : index
    %c0_6 = arith.constant 0 : index
    %5 = vector.load %arg5[%c0_4, %c0_5, %c0_6] : memref<8x1x128xf32, #tpu.memory_space<vmem>>, vector<1x1x128xf32>
    %6 = vector.shape_cast %5 : vector<1x1x128xf32> to vector<1x128xf32>
    %7 = vector.broadcast %6 : vector<1x128xf32> to vector<16x128xf32>
    %8 = arith.addf %4, %7 : vector<16x128xf32>
    %cst_7 = arith.constant 0.000000e+00 : f32
    %9 = vector.broadcast %cst_7 : f32 to vector<16x128xf32>
    %10 = arith.maximumf %8, %9 : vector<16x128xf32>
    %11 = arith.truncf %10 : vector<16x128xf32> to vector<16x128xbf16>
    %c0_8 = arith.constant 0 : index
    %c0_9 = arith.constant 0 : index
    %c0_10 = arith.constant 0 : index
    %12 = vector.load %arg6[%c0_8, %c0_9, %c0_10] : memref<8x128x128xbf16, #tpu.memory_space<vmem>>, vector<1x128x128xbf16>
    %13 = vector.shape_cast %12 : vector<1x128x128xbf16> to vector<128x128xbf16>
    %cst_11 = arith.constant dense<0.000000e+00> : vector<16x128xf32>
    %14 = tpu.matmul %11, %13, %cst_11 {dimension_numbers = #tpu.dot_dimension_numbers<[1], [0], [0], [1], [0, 0, 1, 1], [], []>} : vector<16x128xbf16>, vector<128x128xbf16>, vector<16x128xf32> -> vector<16x128xf32>
    %c0_12 = arith.constant 0 : index
    %c0_13 = arith.constant 0 : index
    %c0_14 = arith.constant 0 : index
    %15 = vector.load %arg7[%c0_12, %c0_13, %c0_14] : memref<8x1x128xf32, #tpu.memory_space<vmem>>, vector<1x1x128xf32>
    %16 = vector.shape_cast %15 : vector<1x1x128xf32> to vector<1x128xf32>
    %17 = vector.broadcast %16 : vector<1x128xf32> to vector<16x128xf32>
    %18 = arith.addf %14, %17 : vector<16x128xf32>
    %cst_15 = arith.constant 0.000000e+00 : f32
    %19 = vector.broadcast %cst_15 : f32 to vector<16x128xf32>
    %20 = arith.maximumf %18, %19 : vector<16x128xf32>
    %21 = arith.truncf %20 : vector<16x128xf32> to vector<16x128xbf16>
    %c0_16 = arith.constant 0 : index
    %c0_17 = arith.constant 0 : index
    %c0_18 = arith.constant 0 : index
    %22 = vector.load %arg8[%c0_16, %c0_17, %c0_18] : memref<8x128x64xbf16, #tpu.memory_space<vmem>>, vector<1x128x64xbf16>
    %23 = vector.shape_cast %22 : vector<1x128x64xbf16> to vector<128x64xbf16>
    %cst_19 = arith.constant dense<0.000000e+00> : vector<16x64xf32>
    %24 = tpu.matmul %21, %23, %cst_19 {dimension_numbers = #tpu.dot_dimension_numbers<[1], [0], [0], [1], [0, 0, 1, 1], [], []>} : vector<16x128xbf16>, vector<128x64xbf16>, vector<16x64xf32> -> vector<16x64xf32>
    %c0_20 = arith.constant 0 : index
    %c0_21 = arith.constant 0 : index
    %c0_22 = arith.constant 0 : index
    %25 = vector.load %arg9[%c0_20, %c0_21, %c0_22] : memref<8x1x64xf32, #tpu.memory_space<vmem>>, vector<1x1x64xf32>
    %26 = vector.shape_cast %25 : vector<1x1x64xf32> to vector<1x64xf32>
    %27 = vector.broadcast %26 : vector<1x64xf32> to vector<16x64xf32>
    %28 = arith.addf %24, %27 : vector<16x64xf32>
    %29 = arith.truncf %28 : vector<16x64xf32> to vector<16x64xbf16>
    %c1 = arith.constant 1 : index
    %c0_23 = arith.constant 0 : index
    %c0_24 = arith.constant 0 : index
    %30 = vector.load %arg4[%c1, %c0_23, %c0_24] : memref<8x8x128xbf16, #tpu.memory_space<vmem>>, vector<1x8x128xbf16>
    %31 = vector.shape_cast %30 : vector<1x8x128xbf16> to vector<8x128xbf16>
    %cst_25 = arith.constant dense<0.000000e+00> : vector<16x128xf32>
    %32 = tpu.matmul %1, %31, %cst_25 {dimension_numbers = #tpu.dot_dimension_numbers<[1], [0], [0], [1], [0, 0, 1, 1], [], []>} : vector<16x8xbf16>, vector<8x128xbf16>, vector<16x128xf32> -> vector<16x128xf32>
    %c1_26 = arith.constant 1 : index
    %c0_27 = arith.constant 0 : index
    %c0_28 = arith.constant 0 : index
    %33 = vector.load %arg5[%c1_26, %c0_27, %c0_28] : memref<8x1x128xf32, #tpu.memory_space<vmem>>, vector<1x1x128xf32>
    %34 = vector.shape_cast %33 : vector<1x1x128xf32> to vector<1x128xf32>
    %35 = vector.broadcast %34 : vector<1x128xf32> to vector<16x128xf32>
    %36 = arith.addf %32, %35 : vector<16x128xf32>
    %cst_29 = arith.constant 0.000000e+00 : f32
    %37 = vector.broadcast %cst_29 : f32 to vector<16x128xf32>
    %38 = arith.maximumf %36, %37 : vector<16x128xf32>
    %39 = arith.truncf %38 : vector<16x128xf32> to vector<16x128xbf16>
    %c1_30 = arith.constant 1 : index
    %c0_31 = arith.constant 0 : index
    %c0_32 = arith.constant 0 : index
    %40 = vector.load %arg6[%c1_30, %c0_31, %c0_32] : memref<8x128x128xbf16, #tpu.memory_space<vmem>>, vector<1x128x128xbf16>
    %41 = vector.shape_cast %40 : vector<1x128x128xbf16> to vector<128x128xbf16>
    %cst_33 = arith.constant dense<0.000000e+00> : vector<16x128xf32>
    %42 = tpu.matmul %39, %41, %cst_33 {dimension_numbers = #tpu.dot_dimension_numbers<[1], [0], [0], [1], [0, 0, 1, 1], [], []>} : vector<16x128xbf16>, vector<128x128xbf16>, vector<16x128xf32> -> vector<16x128xf32>
    %c1_34 = arith.constant 1 : index
    %c0_35 = arith.constant 0 : index
    %c0_36 = arith.constant 0 : index
    %43 = vector.load %arg7[%c1_34, %c0_35, %c0_36] : memref<8x1x128xf32, #tpu.memory_space<vmem>>, vector<1x1x128xf32>
    %44 = vector.shape_cast %43 : vector<1x1x128xf32> to vector<1x128xf32>
    %45 = vector.broadcast %44 : vector<1x128xf32> to vector<16x128xf32>
    %46 = arith.addf %42, %45 : vector<16x128xf32>
    %cst_37 = arith.constant 0.000000e+00 : f32
    %47 = vector.broadcast %cst_37 : f32 to vector<16x128xf32>
    %48 = arith.maximumf %46, %47 : vector<16x128xf32>
    %49 = arith.truncf %48 : vector<16x128xf32> to vector<16x128xbf16>
    %c1_38 = arith.constant 1 : index
    %c0_39 = arith.constant 0 : index
    %c0_40 = arith.constant 0 : index
    %50 = vector.load %arg8[%c1_38, %c0_39, %c0_40] : memref<8x128x64xbf16, #tpu.memory_space<vmem>>, vector<1x128x64xbf16>
    %51 = vector.shape_cast %50 : vector<1x128x64xbf16> to vector<128x64xbf16>
    %cst_41 = arith.constant dense<0.000000e+00> : vector<16x64xf32>
    %52 = tpu.matmul %49, %51, %cst_41 {dimension_numbers = #tpu.dot_dimension_numbers<[1], [0], [0], [1], [0, 0, 1, 1], [], []>} : vector<16x128xbf16>, vector<128x64xbf16>, vector<16x64xf32> -> vector<16x64xf32>
    %c1_42 = arith.constant 1 : index
    %c0_43 = arith.constant 0 : index
    %c0_44 = arith.constant 0 : index
    %53 = vector.load %arg9[%c1_42, %c0_43, %c0_44] : memref<8x1x64xf32, #tpu.memory_space<vmem>>, vector<1x1x64xf32>
    %54 = vector.shape_cast %53 : vector<1x1x64xf32> to vector<1x64xf32>
    %55 = vector.broadcast %54 : vector<1x64xf32> to vector<16x64xf32>
    %56 = arith.addf %52, %55 : vector<16x64xf32>
    %57 = arith.truncf %56 : vector<16x64xf32> to vector<16x64xbf16>
    %c2 = arith.constant 2 : index
    %c0_45 = arith.constant 0 : index
    %c0_46 = arith.constant 0 : index
    %58 = vector.load %arg4[%c2, %c0_45, %c0_46] : memref<8x8x128xbf16, #tpu.memory_space<vmem>>, vector<1x8x128xbf16>
    %59 = vector.shape_cast %58 : vector<1x8x128xbf16> to vector<8x128xbf16>
    %cst_47 = arith.constant dense<0.000000e+00> : vector<16x128xf32>
    %60 = tpu.matmul %1, %59, %cst_47 {dimension_numbers = #tpu.dot_dimension_numbers<[1], [0], [0], [1], [0, 0, 1, 1], [], []>} : vector<16x8xbf16>, vector<8x128xbf16>, vector<16x128xf32> -> vector<16x128xf32>
    %c2_48 = arith.constant 2 : index
    %c0_49 = arith.constant 0 : index
    %c0_50 = arith.constant 0 : index
    %61 = vector.load %arg5[%c2_48, %c0_49, %c0_50] : memref<8x1x128xf32, #tpu.memory_space<vmem>>, vector<1x1x128xf32>
    %62 = vector.shape_cast %61 : vector<1x1x128xf32> to vector<1x128xf32>
    %63 = vector.broadcast %62 : vector<1x128xf32> to vector<16x128xf32>
    %64 = arith.addf %60, %63 : vector<16x128xf32>
    %cst_51 = arith.constant 0.000000e+00 : f32
    %65 = vector.broadcast %cst_51 : f32 to vector<16x128xf32>
    %66 = arith.maximumf %64, %65 : vector<16x128xf32>
    %67 = arith.truncf %66 : vector<16x128xf32> to vector<16x128xbf16>
    %c2_52 = arith.constant 2 : index
    %c0_53 = arith.constant 0 : index
    %c0_54 = arith.constant 0 : index
    %68 = vector.load %arg6[%c2_52, %c0_53, %c0_54] : memref<8x128x128xbf16, #tpu.memory_space<vmem>>, vector<1x128x128xbf16>
    %69 = vector.shape_cast %68 : vector<1x128x128xbf16> to vector<128x128xbf16>
    %cst_55 = arith.constant dense<0.000000e+00> : vector<16x128xf32>
    %70 = tpu.matmul %67, %69, %cst_55 {dimension_numbers = #tpu.dot_dimension_numbers<[1], [0], [0], [1], [0, 0, 1, 1], [], []>} : vector<16x128xbf16>, vector<128x128xbf16>, vector<16x128xf32> -> vector<16x128xf32>
    %c2_56 = arith.constant 2 : index
    %c0_57 = arith.constant 0 : index
    %c0_58 = arith.constant 0 : index
    %71 = vector.load %arg7[%c2_56, %c0_57, %c0_58] : memref<8x1x128xf32, #tpu.memory_space<vmem>>, vector<1x1x128xf32>
    %72 = vector.shape_cast %71 : vector<1x1x128xf32> to vector<1x128xf32>
    %73 = vector.broadcast %72 : vector<1x128xf32> to vector<16x128xf32>
    %74 = arith.addf %70, %73 : vector<16x128xf32>
    %cst_59 = arith.constant 0.000000e+00 : f32
    %75 = vector.broadcast %cst_59 : f32 to vector<16x128xf32>
    %76 = arith.maximumf %74, %75 : vector<16x128xf32>
    %77 = arith.truncf %76 : vector<16x128xf32> to vector<16x128xbf16>
    %c2_60 = arith.constant 2 : index
    %c0_61 = arith.constant 0 : index
    %c0_62 = arith.constant 0 : index
    %78 = vector.load %arg8[%c2_60, %c0_61, %c0_62] : memref<8x128x64xbf16, #tpu.memory_space<vmem>>, vector<1x128x64xbf16>
    %79 = vector.shape_cast %78 : vector<1x128x64xbf16> to vector<128x64xbf16>
    %cst_63 = arith.constant dense<0.000000e+00> : vector<16x64xf32>
    %80 = tpu.matmul %77, %79, %cst_63 {dimension_numbers = #tpu.dot_dimension_numbers<[1], [0], [0], [1], [0, 0, 1, 1], [], []>} : vector<16x128xbf16>, vector<128x64xbf16>, vector<16x64xf32> -> vector<16x64xf32>
    %c2_64 = arith.constant 2 : index
    %c0_65 = arith.constant 0 : index
    %c0_66 = arith.constant 0 : index
    %81 = vector.load %arg9[%c2_64, %c0_65, %c0_66] : memref<8x1x64xf32, #tpu.memory_space<vmem>>, vector<1x1x64xf32>
    %82 = vector.shape_cast %81 : vector<1x1x64xf32> to vector<1x64xf32>
    %83 = vector.broadcast %82 : vector<1x64xf32> to vector<16x64xf32>
    %84 = arith.addf %80, %83 : vector<16x64xf32>
    %85 = arith.truncf %84 : vector<16x64xf32> to vector<16x64xbf16>
    %c3 = arith.constant 3 : index
    %c0_67 = arith.constant 0 : index
    %c0_68 = arith.constant 0 : index
    %86 = vector.load %arg4[%c3, %c0_67, %c0_68] : memref<8x8x128xbf16, #tpu.memory_space<vmem>>, vector<1x8x128xbf16>
    %87 = vector.shape_cast %86 : vector<1x8x128xbf16> to vector<8x128xbf16>
    %cst_69 = arith.constant dense<0.000000e+00> : vector<16x128xf32>
    %88 = tpu.matmul %1, %87, %cst_69 {dimension_numbers = #tpu.dot_dimension_numbers<[1], [0], [0], [1], [0, 0, 1, 1], [], []>} : vector<16x8xbf16>, vector<8x128xbf16>, vector<16x128xf32> -> vector<16x128xf32>
    %c3_70 = arith.constant 3 : index
    %c0_71 = arith.constant 0 : index
    %c0_72 = arith.constant 0 : index
    %89 = vector.load %arg5[%c3_70, %c0_71, %c0_72] : memref<8x1x128xf32, #tpu.memory_space<vmem>>, vector<1x1x128xf32>
    %90 = vector.shape_cast %89 : vector<1x1x128xf32> to vector<1x128xf32>
    %91 = vector.broadcast %90 : vector<1x128xf32> to vector<16x128xf32>
    %92 = arith.addf %88, %91 : vector<16x128xf32>
    %cst_73 = arith.constant 0.000000e+00 : f32
    %93 = vector.broadcast %cst_73 : f32 to vector<16x128xf32>
    %94 = arith.maximumf %92, %93 : vector<16x128xf32>
    %95 = arith.truncf %94 : vector<16x128xf32> to vector<16x128xbf16>
    %c3_74 = arith.constant 3 : index
    %c0_75 = arith.constant 0 : index
    %c0_76 = arith.constant 0 : index
    %96 = vector.load %arg6[%c3_74, %c0_75, %c0_76] : memref<8x128x128xbf16, #tpu.memory_space<vmem>>, vector<1x128x128xbf16>
    %97 = vector.shape_cast %96 : vector<1x128x128xbf16> to vector<128x128xbf16>
    %cst_77 = arith.constant dense<0.000000e+00> : vector<16x128xf32>
    %98 = tpu.matmul %95, %97, %cst_77 {dimension_numbers = #tpu.dot_dimension_numbers<[1], [0], [0], [1], [0, 0, 1, 1], [], []>} : vector<16x128xbf16>, vector<128x128xbf16>, vector<16x128xf32> -> vector<16x128xf32>
    %c3_78 = arith.constant 3 : index
    %c0_79 = arith.constant 0 : index
    %c0_80 = arith.constant 0 : index
    %99 = vector.load %arg7[%c3_78, %c0_79, %c0_80] : memref<8x1x128xf32, #tpu.memory_space<vmem>>, vector<1x1x128xf32>
    %100 = vector.shape_cast %99 : vector<1x1x128xf32> to vector<1x128xf32>
    %101 = vector.broadcast %100 : vector<1x128xf32> to vector<16x128xf32>
    %102 = arith.addf %98, %101 : vector<16x128xf32>
    %cst_81 = arith.constant 0.000000e+00 : f32
    %103 = vector.broadcast %cst_81 : f32 to vector<16x128xf32>
    %104 = arith.maximumf %102, %103 : vector<16x128xf32>
    %105 = arith.truncf %104 : vector<16x128xf32> to vector<16x128xbf16>
    %c3_82 = arith.constant 3 : index
    %c0_83 = arith.constant 0 : index
    %c0_84 = arith.constant 0 : index
    %106 = vector.load %arg8[%c3_82, %c0_83, %c0_84] : memref<8x128x64xbf16, #tpu.memory_space<vmem>>, vector<1x128x64xbf16>
    %107 = vector.shape_cast %106 : vector<1x128x64xbf16> to vector<128x64xbf16>
    %cst_85 = arith.constant dense<0.000000e+00> : vector<16x64xf32>
    %108 = tpu.matmul %105, %107, %cst_85 {dimension_numbers = #tpu.dot_dimension_numbers<[1], [0], [0], [1], [0, 0, 1, 1], [], []>} : vector<16x128xbf16>, vector<128x64xbf16>, vector<16x64xf32> -> vector<16x64xf32>
    %c3_86 = arith.constant 3 : index
    %c0_87 = arith.constant 0 : index
    %c0_88 = arith.constant 0 : index
    %109 = vector.load %arg9[%c3_86, %c0_87, %c0_88] : memref<8x1x64xf32, #tpu.memory_space<vmem>>, vector<1x1x64xf32>
    %110 = vector.shape_cast %109 : vector<1x1x64xf32> to vector<1x64xf32>
    %111 = vector.broadcast %110 : vector<1x64xf32> to vector<16x64xf32>
    %112 = arith.addf %108, %111 : vector<16x64xf32>
    %113 = arith.truncf %112 : vector<16x64xf32> to vector<16x64xbf16>
    %c4 = arith.constant 4 : index
    %c0_89 = arith.constant 0 : index
    %c0_90 = arith.constant 0 : index
    %114 = vector.load %arg4[%c4, %c0_89, %c0_90] : memref<8x8x128xbf16, #tpu.memory_space<vmem>>, vector<1x8x128xbf16>
    %115 = vector.shape_cast %114 : vector<1x8x128xbf16> to vector<8x128xbf16>
    %cst_91 = arith.constant dense<0.000000e+00> : vector<16x128xf32>
    %116 = tpu.matmul %1, %115, %cst_91 {dimension_numbers = #tpu.dot_dimension_numbers<[1], [0], [0], [1], [0, 0, 1, 1], [], []>} : vector<16x8xbf16>, vector<8x128xbf16>, vector<16x128xf32> -> vector<16x128xf32>
    %c4_92 = arith.constant 4 : index
    %c0_93 = arith.constant 0 : index
    %c0_94 = arith.constant 0 : index
    %117 = vector.load %arg5[%c4_92, %c0_93, %c0_94] : memref<8x1x128xf32, #tpu.memory_space<vmem>>, vector<1x1x128xf32>
    %118 = vector.shape_cast %117 : vector<1x1x128xf32> to vector<1x128xf32>
    %119 = vector.broadcast %118 : vector<1x128xf32> to vector<16x128xf32>
    %120 = arith.addf %116, %119 : vector<16x128xf32>
    %cst_95 = arith.constant 0.000000e+00 : f32
    %121 = vector.broadcast %cst_95 : f32 to vector<16x128xf32>
    %122 = arith.maximumf %120, %121 : vector<16x128xf32>
    %123 = arith.truncf %122 : vector<16x128xf32> to vector<16x128xbf16>
    %c4_96 = arith.constant 4 : index
    %c0_97 = arith.constant 0 : index
    %c0_98 = arith.constant 0 : index
    %124 = vector.load %arg6[%c4_96, %c0_97, %c0_98] : memref<8x128x128xbf16, #tpu.memory_space<vmem>>, vector<1x128x128xbf16>
    %125 = vector.shape_cast %124 : vector<1x128x128xbf16> to vector<128x128xbf16>
    %cst_99 = arith.constant dense<0.000000e+00> : vector<16x128xf32>
    %126 = tpu.matmul %123, %125, %cst_99 {dimension_numbers = #tpu.dot_dimension_numbers<[1], [0], [0], [1], [0, 0, 1, 1], [], []>} : vector<16x128xbf16>, vector<128x128xbf16>, vector<16x128xf32> -> vector<16x128xf32>
    %c4_100 = arith.constant 4 : index
    %c0_101 = arith.constant 0 : index
    %c0_102 = arith.constant 0 : index
    %127 = vector.load %arg7[%c4_100, %c0_101, %c0_102] : memref<8x1x128xf32, #tpu.memory_space<vmem>>, vector<1x1x128xf32>
    %128 = vector.shape_cast %127 : vector<1x1x128xf32> to vector<1x128xf32>
    %129 = vector.broadcast %128 : vector<1x128xf32> to vector<16x128xf32>
    %130 = arith.addf %126, %129 : vector<16x128xf32>
    %cst_103 = arith.constant 0.000000e+00 : f32
    %131 = vector.broadcast %cst_103 : f32 to vector<16x128xf32>
    %132 = arith.maximumf %130, %131 : vector<16x128xf32>
    %133 = arith.truncf %132 : vector<16x128xf32> to vector<16x128xbf16>
    %c4_104 = arith.constant 4 : index
    %c0_105 = arith.constant 0 : index
    %c0_106 = arith.constant 0 : index
    %134 = vector.load %arg8[%c4_104, %c0_105, %c0_106] : memref<8x128x64xbf16, #tpu.memory_space<vmem>>, vector<1x128x64xbf16>
    %135 = vector.shape_cast %134 : vector<1x128x64xbf16> to vector<128x64xbf16>
    %cst_107 = arith.constant dense<0.000000e+00> : vector<16x64xf32>
    %136 = tpu.matmul %133, %135, %cst_107 {dimension_numbers = #tpu.dot_dimension_numbers<[1], [0], [0], [1], [0, 0, 1, 1], [], []>} : vector<16x128xbf16>, vector<128x64xbf16>, vector<16x64xf32> -> vector<16x64xf32>
    %c4_108 = arith.constant 4 : index
    %c0_109 = arith.constant 0 : index
    %c0_110 = arith.constant 0 : index
    %137 = vector.load %arg9[%c4_108, %c0_109, %c0_110] : memref<8x1x64xf32, #tpu.memory_space<vmem>>, vector<1x1x64xf32>
    %138 = vector.shape_cast %137 : vector<1x1x64xf32> to vector<1x64xf32>
    %139 = vector.broadcast %138 : vector<1x64xf32> to vector<16x64xf32>
    %140 = arith.addf %136, %139 : vector<16x64xf32>
    %141 = arith.truncf %140 : vector<16x64xf32> to vector<16x64xbf16>
    %c5 = arith.constant 5 : index
    %c0_111 = arith.constant 0 : index
    %c0_112 = arith.constant 0 : index
    %142 = vector.load %arg4[%c5, %c0_111, %c0_112] : memref<8x8x128xbf16, #tpu.memory_space<vmem>>, vector<1x8x128xbf16>
    %143 = vector.shape_cast %142 : vector<1x8x128xbf16> to vector<8x128xbf16>
    %cst_113 = arith.constant dense<0.000000e+00> : vector<16x128xf32>
    %144 = tpu.matmul %1, %143, %cst_113 {dimension_numbers = #tpu.dot_dimension_numbers<[1], [0], [0], [1], [0, 0, 1, 1], [], []>} : vector<16x8xbf16>, vector<8x128xbf16>, vector<16x128xf32> -> vector<16x128xf32>
    %c5_114 = arith.constant 5 : index
    %c0_115 = arith.constant 0 : index
    %c0_116 = arith.constant 0 : index
    %145 = vector.load %arg5[%c5_114, %c0_115, %c0_116] : memref<8x1x128xf32, #tpu.memory_space<vmem>>, vector<1x1x128xf32>
    %146 = vector.shape_cast %145 : vector<1x1x128xf32> to vector<1x128xf32>
    %147 = vector.broadcast %146 : vector<1x128xf32> to vector<16x128xf32>
    %148 = arith.addf %144, %147 : vector<16x128xf32>
    %cst_117 = arith.constant 0.000000e+00 : f32
    %149 = vector.broadcast %cst_117 : f32 to vector<16x128xf32>
    %150 = arith.maximumf %148, %149 : vector<16x128xf32>
    %151 = arith.truncf %150 : vector<16x128xf32> to vector<16x128xbf16>
    %c5_118 = arith.constant 5 : index
    %c0_119 = arith.constant 0 : index
    %c0_120 = arith.constant 0 : index
    %152 = vector.load %arg6[%c5_118, %c0_119, %c0_120] : memref<8x128x128xbf16, #tpu.memory_space<vmem>>, vector<1x128x128xbf16>
    %153 = vector.shape_cast %152 : vector<1x128x128xbf16> to vector<128x128xbf16>
    %cst_121 = arith.constant dense<0.000000e+00> : vector<16x128xf32>
    %154 = tpu.matmul %151, %153, %cst_121 {dimension_numbers = #tpu.dot_dimension_numbers<[1], [0], [0], [1], [0, 0, 1, 1], [], []>} : vector<16x128xbf16>, vector<128x128xbf16>, vector<16x128xf32> -> vector<16x128xf32>
    %c5_122 = arith.constant 5 : index
    %c0_123 = arith.constant 0 : index
    %c0_124 = arith.constant 0 : index
    %155 = vector.load %arg7[%c5_122, %c0_123, %c0_124] : memref<8x1x128xf32, #tpu.memory_space<vmem>>, vector<1x1x128xf32>
    %156 = vector.shape_cast %155 : vector<1x1x128xf32> to vector<1x128xf32>
    %157 = vector.broadcast %156 : vector<1x128xf32> to vector<16x128xf32>
    %158 = arith.addf %154, %157 : vector<16x128xf32>
    %cst_125 = arith.constant 0.000000e+00 : f32
    %159 = vector.broadcast %cst_125 : f32 to vector<16x128xf32>
    %160 = arith.maximumf %158, %159 : vector<16x128xf32>
    %161 = arith.truncf %160 : vector<16x128xf32> to vector<16x128xbf16>
    %c5_126 = arith.constant 5 : index
    %c0_127 = arith.constant 0 : index
    %c0_128 = arith.constant 0 : index
    %162 = vector.load %arg8[%c5_126, %c0_127, %c0_128] : memref<8x128x64xbf16, #tpu.memory_space<vmem>>, vector<1x128x64xbf16>
    %163 = vector.shape_cast %162 : vector<1x128x64xbf16> to vector<128x64xbf16>
    %cst_129 = arith.constant dense<0.000000e+00> : vector<16x64xf32>
    %164 = tpu.matmul %161, %163, %cst_129 {dimension_numbers = #tpu.dot_dimension_numbers<[1], [0], [0], [1], [0, 0, 1, 1], [], []>} : vector<16x128xbf16>, vector<128x64xbf16>, vector<16x64xf32> -> vector<16x64xf32>
    %c5_130 = arith.constant 5 : index
    %c0_131 = arith.constant 0 : index
    %c0_132 = arith.constant 0 : index
    %165 = vector.load %arg9[%c5_130, %c0_131, %c0_132] : memref<8x1x64xf32, #tpu.memory_space<vmem>>, vector<1x1x64xf32>
    %166 = vector.shape_cast %165 : vector<1x1x64xf32> to vector<1x64xf32>
    %167 = vector.broadcast %166 : vector<1x64xf32> to vector<16x64xf32>
    %168 = arith.addf %164, %167 : vector<16x64xf32>
    %169 = arith.truncf %168 : vector<16x64xf32> to vector<16x64xbf16>
    %c6 = arith.constant 6 : index
    %c0_133 = arith.constant 0 : index
    %c0_134 = arith.constant 0 : index
    %170 = vector.load %arg4[%c6, %c0_133, %c0_134] : memref<8x8x128xbf16, #tpu.memory_space<vmem>>, vector<1x8x128xbf16>
    %171 = vector.shape_cast %170 : vector<1x8x128xbf16> to vector<8x128xbf16>
    %cst_135 = arith.constant dense<0.000000e+00> : vector<16x128xf32>
    %172 = tpu.matmul %1, %171, %cst_135 {dimension_numbers = #tpu.dot_dimension_numbers<[1], [0], [0], [1], [0, 0, 1, 1], [], []>} : vector<16x8xbf16>, vector<8x128xbf16>, vector<16x128xf32> -> vector<16x128xf32>
    %c6_136 = arith.constant 6 : index
    %c0_137 = arith.constant 0 : index
    %c0_138 = arith.constant 0 : index
    %173 = vector.load %arg5[%c6_136, %c0_137, %c0_138] : memref<8x1x128xf32, #tpu.memory_space<vmem>>, vector<1x1x128xf32>
    %174 = vector.shape_cast %173 : vector<1x1x128xf32> to vector<1x128xf32>
    %175 = vector.broadcast %174 : vector<1x128xf32> to vector<16x128xf32>
    %176 = arith.addf %172, %175 : vector<16x128xf32>
    %cst_139 = arith.constant 0.000000e+00 : f32
    %177 = vector.broadcast %cst_139 : f32 to vector<16x128xf32>
    %178 = arith.maximumf %176, %177 : vector<16x128xf32>
    %179 = arith.truncf %178 : vector<16x128xf32> to vector<16x128xbf16>
    %c6_140 = arith.constant 6 : index
    %c0_141 = arith.constant 0 : index
    %c0_142 = arith.constant 0 : index
    %180 = vector.load %arg6[%c6_140, %c0_141, %c0_142] : memref<8x128x128xbf16, #tpu.memory_space<vmem>>, vector<1x128x128xbf16>
    %181 = vector.shape_cast %180 : vector<1x128x128xbf16> to vector<128x128xbf16>
    %cst_143 = arith.constant dense<0.000000e+00> : vector<16x128xf32>
    %182 = tpu.matmul %179, %181, %cst_143 {dimension_numbers = #tpu.dot_dimension_numbers<[1], [0], [0], [1], [0, 0, 1, 1], [], []>} : vector<16x128xbf16>, vector<128x128xbf16>, vector<16x128xf32> -> vector<16x128xf32>
    %c6_144 = arith.constant 6 : index
    %c0_145 = arith.constant 0 : index
    %c0_146 = arith.constant 0 : index
    %183 = vector.load %arg7[%c6_144, %c0_145, %c0_146] : memref<8x1x128xf32, #tpu.memory_space<vmem>>, vector<1x1x128xf32>
    %184 = vector.shape_cast %183 : vector<1x1x128xf32> to vector<1x128xf32>
    %185 = vector.broadcast %184 : vector<1x128xf32> to vector<16x128xf32>
    %186 = arith.addf %182, %185 : vector<16x128xf32>
    %cst_147 = arith.constant 0.000000e+00 : f32
    %187 = vector.broadcast %cst_147 : f32 to vector<16x128xf32>
    %188 = arith.maximumf %186, %187 : vector<16x128xf32>
    %189 = arith.truncf %188 : vector<16x128xf32> to vector<16x128xbf16>
    %c6_148 = arith.constant 6 : index
    %c0_149 = arith.constant 0 : index
    %c0_150 = arith.constant 0 : index
    %190 = vector.load %arg8[%c6_148, %c0_149, %c0_150] : memref<8x128x64xbf16, #tpu.memory_space<vmem>>, vector<1x128x64xbf16>
    %191 = vector.shape_cast %190 : vector<1x128x64xbf16> to vector<128x64xbf16>
    %cst_151 = arith.constant dense<0.000000e+00> : vector<16x64xf32>
    %192 = tpu.matmul %189, %191, %cst_151 {dimension_numbers = #tpu.dot_dimension_numbers<[1], [0], [0], [1], [0, 0, 1, 1], [], []>} : vector<16x128xbf16>, vector<128x64xbf16>, vector<16x64xf32> -> vector<16x64xf32>
    %c6_152 = arith.constant 6 : index
    %c0_153 = arith.constant 0 : index
    %c0_154 = arith.constant 0 : index
    %193 = vector.load %arg9[%c6_152, %c0_153, %c0_154] : memref<8x1x64xf32, #tpu.memory_space<vmem>>, vector<1x1x64xf32>
    %194 = vector.shape_cast %193 : vector<1x1x64xf32> to vector<1x64xf32>
    %195 = vector.broadcast %194 : vector<1x64xf32> to vector<16x64xf32>
    %196 = arith.addf %192, %195 : vector<16x64xf32>
    %197 = arith.truncf %196 : vector<16x64xf32> to vector<16x64xbf16>
    %c7 = arith.constant 7 : index
    %c0_155 = arith.constant 0 : index
    %c0_156 = arith.constant 0 : index
    %198 = vector.load %arg4[%c7, %c0_155, %c0_156] : memref<8x8x128xbf16, #tpu.memory_space<vmem>>, vector<1x8x128xbf16>
    %199 = vector.shape_cast %198 : vector<1x8x128xbf16> to vector<8x128xbf16>
    %cst_157 = arith.constant dense<0.000000e+00> : vector<16x128xf32>
    %200 = tpu.matmul %1, %199, %cst_157 {dimension_numbers = #tpu.dot_dimension_numbers<[1], [0], [0], [1], [0, 0, 1, 1], [], []>} : vector<16x8xbf16>, vector<8x128xbf16>, vector<16x128xf32> -> vector<16x128xf32>
    %c7_158 = arith.constant 7 : index
    %c0_159 = arith.constant 0 : index
    %c0_160 = arith.constant 0 : index
    %201 = vector.load %arg5[%c7_158, %c0_159, %c0_160] : memref<8x1x128xf32, #tpu.memory_space<vmem>>, vector<1x1x128xf32>
    %202 = vector.shape_cast %201 : vector<1x1x128xf32> to vector<1x128xf32>
    %203 = vector.broadcast %202 : vector<1x128xf32> to vector<16x128xf32>
    %204 = arith.addf %200, %203 : vector<16x128xf32>
    %cst_161 = arith.constant 0.000000e+00 : f32
    %205 = vector.broadcast %cst_161 : f32 to vector<16x128xf32>
    %206 = arith.maximumf %204, %205 : vector<16x128xf32>
    %207 = arith.truncf %206 : vector<16x128xf32> to vector<16x128xbf16>
    %c7_162 = arith.constant 7 : index
    %c0_163 = arith.constant 0 : index
    %c0_164 = arith.constant 0 : index
    %208 = vector.load %arg6[%c7_162, %c0_163, %c0_164] : memref<8x128x128xbf16, #tpu.memory_space<vmem>>, vector<1x128x128xbf16>
    %209 = vector.shape_cast %208 : vector<1x128x128xbf16> to vector<128x128xbf16>
    %cst_165 = arith.constant dense<0.000000e+00> : vector<16x128xf32>
    %210 = tpu.matmul %207, %209, %cst_165 {dimension_numbers = #tpu.dot_dimension_numbers<[1], [0], [0], [1], [0, 0, 1, 1], [], []>} : vector<16x128xbf16>, vector<128x128xbf16>, vector<16x128xf32> -> vector<16x128xf32>
    %c7_166 = arith.constant 7 : index
    %c0_167 = arith.constant 0 : index
    %c0_168 = arith.constant 0 : index
    %211 = vector.load %arg7[%c7_166, %c0_167, %c0_168] : memref<8x1x128xf32, #tpu.memory_space<vmem>>, vector<1x1x128xf32>
    %212 = vector.shape_cast %211 : vector<1x1x128xf32> to vector<1x128xf32>
    %213 = vector.broadcast %212 : vector<1x128xf32> to vector<16x128xf32>
    %214 = arith.addf %210, %213 : vector<16x128xf32>
    %cst_169 = arith.constant 0.000000e+00 : f32
    %215 = vector.broadcast %cst_169 : f32 to vector<16x128xf32>
    %216 = arith.maximumf %214, %215 : vector<16x128xf32>
    %217 = arith.truncf %216 : vector<16x128xf32> to vector<16x128xbf16>
    %c7_170 = arith.constant 7 : index
    %c0_171 = arith.constant 0 : index
    %c0_172 = arith.constant 0 : index
    %218 = vector.load %arg8[%c7_170, %c0_171, %c0_172] : memref<8x128x64xbf16, #tpu.memory_space<vmem>>, vector<1x128x64xbf16>
    %219 = vector.shape_cast %218 : vector<1x128x64xbf16> to vector<128x64xbf16>
    %cst_173 = arith.constant dense<0.000000e+00> : vector<16x64xf32>
    %220 = tpu.matmul %217, %219, %cst_173 {dimension_numbers = #tpu.dot_dimension_numbers<[1], [0], [0], [1], [0, 0, 1, 1], [], []>} : vector<16x128xbf16>, vector<128x64xbf16>, vector<16x64xf32> -> vector<16x64xf32>
    %c7_174 = arith.constant 7 : index
    %c0_175 = arith.constant 0 : index
    %c0_176 = arith.constant 0 : index
    %221 = vector.load %arg9[%c7_174, %c0_175, %c0_176] : memref<8x1x64xf32, #tpu.memory_space<vmem>>, vector<1x1x64xf32>
    %222 = vector.shape_cast %221 : vector<1x1x64xf32> to vector<1x64xf32>
    %223 = vector.broadcast %222 : vector<1x64xf32> to vector<16x64xf32>
    %224 = arith.addf %220, %223 : vector<16x64xf32>
    %225 = arith.truncf %224 : vector<16x64xf32> to vector<16x64xbf16>
    %226 = tpu.concatenate %29, %57, %85, %113, %141, %169, %197, %225 in 0 : vector<16x64xbf16>, vector<16x64xbf16>, vector<16x64xbf16>, vector<16x64xbf16>, vector<16x64xbf16>, vector<16x64xbf16>, vector<16x64xbf16>, vector<16x64xbf16> -> vector<128x64xbf16>
    %c0_177 = arith.constant 0 : index
    %c0_178 = arith.constant 0 : index
    %227 = vector.load %arg10[%c0_177, %c0_178] : memref<64x128xbf16, #tpu.memory_space<vmem>>, vector<64x128xbf16>
    %cst_179 = arith.constant dense<0.000000e+00> : vector<128x128xf32>
    %228 = tpu.matmul %226, %227, %cst_179 {dimension_numbers = #tpu.dot_dimension_numbers<[1], [0], [0], [1], [0, 0, 1, 1], [], []>} : vector<128x64xbf16>, vector<64x128xbf16>, vector<128x128xf32> -> vector<128x128xf32>
    %c0_180 = arith.constant 0 : index
    %c0_181 = arith.constant 0 : index
    %229 = vector.load %arg11[%c0_180, %c0_181] : memref<1x128xf32, #tpu.memory_space<vmem>>, vector<1x128xf32>
    %230 = vector.broadcast %229 : vector<1x128xf32> to vector<128x128xf32>
    %231 = arith.addf %228, %230 : vector<128x128xf32>
    %cst_182 = arith.constant 0.000000e+00 : f32
    %232 = vector.broadcast %cst_182 : f32 to vector<128x128xf32>
    %233 = arith.maximumf %231, %232 : vector<128x128xf32>
    %234 = arith.truncf %233 : vector<128x128xf32> to vector<128x128xbf16>
    %c0_183 = arith.constant 0 : index
    %c0_184 = arith.constant 0 : index
    %235 = vector.load %arg12[%c0_183, %c0_184] : memref<128x4xbf16, #tpu.memory_space<vmem>>, vector<128x4xbf16>
    %cst_185 = arith.constant dense<0.000000e+00> : vector<128x4xf32>
    %236 = tpu.matmul %234, %235, %cst_185 {dimension_numbers = #tpu.dot_dimension_numbers<[1], [0], [0], [1], [0, 0, 1, 1], [], []>} : vector<128x128xbf16>, vector<128x4xbf16>, vector<128x4xf32> -> vector<128x4xf32>
    %c0_186 = arith.constant 0 : index
    %c0_187 = arith.constant 0 : index
    %237 = vector.load %arg13[%c0_186, %c0_187] : memref<1x4xf32, #tpu.memory_space<vmem>>, vector<1x4xf32>
    %238 = vector.broadcast %237 : vector<1x4xf32> to vector<128x4xf32>
    %239 = arith.addf %236, %238 : vector<128x4xf32>
    %240 = vector.shape_cast %239 : vector<128x4xf32> to vector<8x16x4xf32>
    %c0_188 = arith.constant 0 : index
    %c0_189 = arith.constant 0 : index
    %c0_190 = arith.constant 0 : index
    %241 = vector.load %arg3[%c0_188, %c0_189, %c0_190] : memref<8x16x1xi32, #tpu.memory_space<vmem>>, vector<8x16x1xi32>
    %242 = tpu.iota {dimensions = array<i32: 2>} : vector<8x16x4xi32>
    %243 = vector.broadcast %241 : vector<8x16x1xi32> to vector<8x16x4xi32>
    %244 = arith.cmpi eq, %242, %243 : vector<8x16x4xi32>
    %cst_191 = arith.constant dense<0xFF800000> : vector<8x16xf32>
    %245 = vector.multi_reduction <maximumf>, %240, %cst_191 [2] : vector<8x16x4xf32> to vector<8x16xf32>
    %246 = vector.shape_cast %245 : vector<8x16xf32> to vector<8x16x1xf32>
    %247 = vector.broadcast %246 : vector<8x16x1xf32> to vector<8x16x4xf32>
    %248 = arith.subf %240, %247 : vector<8x16x4xf32>
    %249 = math.exp %248 : vector<8x16x4xf32>
    %cst_192 = arith.constant dense<0.000000e+00> : vector<8x16xf32>
    %250 = vector.multi_reduction <add>, %249, %cst_192 [2] : vector<8x16x4xf32> to vector<8x16xf32>
    %251 = vector.shape_cast %250 : vector<8x16xf32> to vector<8x16x1xf32>
    %252 = math.log %251 : vector<8x16x1xf32>
    %cst_193 = arith.constant 0.000000e+00 : f32
    %253 = vector.broadcast %cst_193 : f32 to vector<8x16x4xf32>
    %254 = arith.select %244, %240, %253 : vector<8x16x4xi1>, vector<8x16x4xf32>
    %cst_194 = arith.constant dense<0.000000e+00> : vector<8x16xf32>
    %255 = vector.multi_reduction <add>, %254, %cst_194 [2] : vector<8x16x4xf32> to vector<8x16xf32>
    %256 = vector.shape_cast %255 : vector<8x16xf32> to vector<8x16x1xf32>
    %257 = arith.subf %256, %246 : vector<8x16x1xf32>
    %258 = arith.subf %257, %252 : vector<8x16x1xf32>
    %c0_195 = arith.constant 0 : index
    %c0_196 = arith.constant 0 : index
    %c0_197 = arith.constant 0 : index
    %259 = vector.load %arg14[%c0_195, %c0_196, %c0_197] : memref<8x16x1xf32, #tpu.memory_space<vmem>>, vector<8x16x1xf32>
    tpu.vector_store %arg14[%c0_195, %c0_196, %c0_197], %258 {strides = array<i32>} : memref<8x16x1xf32, #tpu.memory_space<vmem>>, vector<8x16x1xf32>,
    return
  }
  func.func @transform_0(%arg0: i32, %arg1: i32) -> (i32, i32) {
    %c0_i32 = arith.constant 0 : i32
    %c0_i32_0 = arith.constant 0 : i32
    return %arg0, %c0_i32 : i32, i32
  }
  func.func @transform_1(%arg0: i32, %arg1: i32) -> (i32, i32, i32) {
    %c0_i32 = arith.constant 0 : i32
    %c0_i32_0 = arith.constant 0 : i32
    return %arg1, %arg0, %c0_i32 : i32, i32, i32
  }
  func.func @transform_2(%arg0: i32, %arg1: i32) -> (i32, i32, i32) {
    %c0_i32 = arith.constant 0 : i32
    %c0_i32_0 = arith.constant 0 : i32
    %c0_i32_1 = arith.constant 0 : i32
    return %arg1, %c0_i32, %c0_i32_0 : i32, i32, i32
  }
  func.func @transform_3(%arg0: i32, %arg1: i32) -> (i32, i32, i32) {
    %c0_i32 = arith.constant 0 : i32
    %c0_i32_0 = arith.constant 0 : i32
    %c0_i32_1 = arith.constant 0 : i32
    return %arg1, %c0_i32, %c0_i32_0 : i32, i32, i32
  }
  func.func @transform_4(%arg0: i32, %arg1: i32) -> (i32, i32, i32) {
    %c0_i32 = arith.constant 0 : i32
    %c0_i32_0 = arith.constant 0 : i32
    %c0_i32_1 = arith.constant 0 : i32
    return %arg1, %c0_i32, %c0_i32_0 : i32, i32, i32
  }
  func.func @transform_5(%arg0: i32, %arg1: i32) -> (i32, i32, i32) {
    %c0_i32 = arith.constant 0 : i32
    %c0_i32_0 = arith.constant 0 : i32
    %c0_i32_1 = arith.constant 0 : i32
    return %arg1, %c0_i32, %c0_i32_0 : i32, i32, i32
  }
  func.func @transform_6(%arg0: i32, %arg1: i32) -> (i32, i32, i32) {
    %c0_i32 = arith.constant 0 : i32
    %c0_i32_0 = arith.constant 0 : i32
    %c0_i32_1 = arith.constant 0 : i32
    return %arg1, %c0_i32, %c0_i32_0 : i32, i32, i32
  }
  func.func @transform_7(%arg0: i32, %arg1: i32) -> (i32, i32, i32) {
    %c0_i32 = arith.constant 0 : i32
    %c0_i32_0 = arith.constant 0 : i32
    %c0_i32_1 = arith.constant 0 : i32
    return %arg1, %c0_i32, %c0_i32_0 : i32, i32, i32
  }
  func.func @transform_8(%arg0: i32, %arg1: i32) -> (i32, i32) {
    %c0_i32 = arith.constant 0 : i32
    %c0_i32_0 = arith.constant 0 : i32
    %c0_i32_1 = arith.constant 0 : i32
    return %c0_i32, %c0_i32_0 : i32, i32
  }
  func.func @transform_9(%arg0: i32, %arg1: i32) -> (i32, i32) {
    %c0_i32 = arith.constant 0 : i32
    %c0_i32_0 = arith.constant 0 : i32
    %c0_i32_1 = arith.constant 0 : i32
    return %c0_i32, %c0_i32_0 : i32, i32
  }
  func.func @transform_10(%arg0: i32, %arg1: i32) -> (i32, i32) {
    %c0_i32 = arith.constant 0 : i32
    %c0_i32_0 = arith.constant 0 : i32
    %c0_i32_1 = arith.constant 0 : i32
    return %c0_i32, %c0_i32_0 : i32, i32
  }
  func.func @transform_11(%arg0: i32, %arg1: i32) -> (i32, i32) {
    %c0_i32 = arith.constant 0 : i32
    %c0_i32_0 = arith.constant 0 : i32
    %c0_i32_1 = arith.constant 0 : i32
    return %c0_i32, %c0_i32_0 : i32, i32
  }
  func.func @transform_12(%arg0: i32, %arg1: i32) -> (i32, i32, i32) {
    %c0_i32 = arith.constant 0 : i32
    %c0_i32_0 = arith.constant 0 : i32
    return %arg1, %arg0, %c0_i32 : i32, i32, i32
  }
}

</mosaic_0001>

<llo_original>
// kernel: tpu_custom_call.1
$region0: #{tpu_custom_call.1}
  #allocation0 [shape = 'u32[]', space=smem, size = 0x4, offset = 0x4, fixed_abs, tag = 'smem constant byte address 0x4 - core index']
  #allocation1 [shape = 'u32[144,128]{1,0:T(1,128)}', space=vmem, size = 0x12000, scoped, tag = 'internal scratch']
  %s0 = inlined_call_operand.vmem [shape: s32[16,8], index: 0, kind: input, shape index: {}]
  %s1 = inlined_call_operand.vmem [shape: s32[8,16,1], index: 1, kind: input, shape index: {}]
  %s2 = inlined_call_operand.vmem [shape: bf16[8,8,128], index: 2, kind: input, shape index: {}]
  %s3 = inlined_call_operand.vmem [shape: f32[8,1,128], index: 3, kind: input, shape index: {}]
  %s4 = inlined_call_operand.vmem [shape: bf16[8,128,128], index: 4, kind: input, shape index: {}]
  %s5 = inlined_call_operand.vmem [shape: f32[8,1,128], index: 5, kind: input, shape index: {}]
  %s6 = inlined_call_operand.vmem [shape: bf16[8,128,64], index: 6, kind: input, shape index: {}]
  %s7 = inlined_call_operand.vmem [shape: f32[8,1,64], index: 7, kind: input, shape index: {}]
  %s8 = inlined_call_operand.vmem [shape: bf16[64,128], index: 8, kind: input, shape index: {}]
  %s9 = inlined_call_operand.vmem [shape: f32[1,128], index: 9, kind: input, shape index: {}]
  %s10 = inlined_call_operand.vmem [shape: bf16[128,4], index: 10, kind: input, shape index: {}]
  %s11 = inlined_call_operand.vmem [shape: f32[1,4], index: 11, kind: input, shape index: {}]
  %s12 = inlined_call_operand.vmem [shape: f32[8,16,1], index: 12, kind: output, shape index: {}]
  %s13 = sld [smem:[#allocation0]]
  $region58: #{tpu_custom_call.1} parent=0
    _
  %s15 = ssub.s32 1, %s13
  %s16 = scalar_select 0, %s15, %s13
  // Predicated region
  $region2: #{tpu_custom_call.1} parent=0 // pred_check
    _
  $region3: #{tpu_custom_call.1} parent=0 // pred_check_branch
    %18 = sbr.rel (0) target = $region5
  $region4: #{tpu_custom_call.1} parent=0 // pred_region
    _
  $region5: #{tpu_custom_call.1} parent=0 // pred_fallthru
    _
  // Predicated region
  $region6: #{tpu_custom_call.1} parent=0 // pred_check
    _
  $region7: #{tpu_custom_call.1} parent=0 // pred_check_branch
    %20 = sbr.rel (0) target = $region9
  $region8: #{tpu_custom_call.1} parent=0 // pred_region
    _
  $region9: #{tpu_custom_call.1} parent=0 // pred_fallthru
    _
  // Predicated region
  $region10: #{tpu_custom_call.1} parent=0 // pred_check
    _
  $region11: #{tpu_custom_call.1} parent=0 // pred_check_branch
    %22 = sbr.rel (0) target = $region13
  $region12: #{tpu_custom_call.1} parent=0 // pred_region
    _
  $region13: #{tpu_custom_call.1} parent=0 // pred_fallthru
    _
  // Predicated region
  $region14: #{tpu_custom_call.1} parent=0 // pred_check
    _
  $region15: #{tpu_custom_call.1} parent=0 // pred_check_branch
    %24 = sbr.rel (0) target = $region17
  $region16: #{tpu_custom_call.1} parent=0 // pred_region
    _
  $region17: #{tpu_custom_call.1} parent=0 // pred_fallthru
    _
  // Predicated region
  $region18: #{tpu_custom_call.1} parent=0 // pred_check
    _
  $region19: #{tpu_custom_call.1} parent=0 // pred_check_branch
    %26 = sbr.rel (0) target = $region21
  $region20: #{tpu_custom_call.1} parent=0 // pred_region
    _
  $region21: #{tpu_custom_call.1} parent=0 // pred_fallthru
    _
  // Predicated region
  $region22: #{tpu_custom_call.1} parent=0 // pred_check
    _
  $region23: #{tpu_custom_call.1} parent=0 // pred_check_branch
    %28 = sbr.rel (0) target = $region25
  $region24: #{tpu_custom_call.1} parent=0 // pred_region
    _
  $region25: #{tpu_custom_call.1} parent=0 // pred_fallthru
    _
  // Predicated region
  $region26: #{tpu_custom_call.1} parent=0 // pred_check
    _
  $region27: #{tpu_custom_call.1} parent=0 // pred_check_branch
    %30 = sbr.rel (0) target = $region29
  $region28: #{tpu_custom_call.1} parent=0 // pred_region
    _
  $region29: #{tpu_custom_call.1} parent=0 // pred_fallthru
    _
  // Predicated region
  $region30: #{tpu_custom_call.1} parent=0 // pred_check
    _
  $region31: #{tpu_custom_call.1} parent=0 // pred_check_branch
    %32 = sbr.rel (0) target = $region33
  $region32: #{tpu_custom_call.1} parent=0 // pred_region
    _
  $region33: #{tpu_custom_call.1} parent=0 // pred_fallthru
    _
  // Predicated region
  $region34: #{tpu_custom_call.1} parent=0 // pred_check
    _
  $region35: #{tpu_custom_call.1} parent=0 // pred_check_branch
    %34 = sbr.rel (0) target = $region37
  $region36: #{tpu_custom_call.1} parent=0 // pred_region
    _
  $region37: #{tpu_custom_call.1} parent=0 // pred_fallthru
    _
  // Predicated region
  $region38: #{tpu_custom_call.1} parent=0 // pred_check
    _
  $region39: #{tpu_custom_call.1} parent=0 // pred_check_branch
    %36 = sbr.rel (0) target = $region41
  $region40: #{tpu_custom_call.1} parent=0 // pred_region
    _
  $region41: #{tpu_custom_call.1} parent=0 // pred_fallthru
    _
  // Predicated region
  $region42: #{tpu_custom_call.1} parent=0 // pred_check
    _
  $region43: #{tpu_custom_call.1} parent=0 // pred_check_branch
    %38 = sbr.rel (0) target = $region45
  $region44: #{tpu_custom_call.1} parent=0 // pred_region
    _
  $region45: #{tpu_custom_call.1} parent=0 // pred_fallthru
    _
  // Predicated region
  $region46: #{tpu_custom_call.1} parent=0 // pred_check
    _
  $region47: #{tpu_custom_call.1} parent=0 // pred_check_branch
    %40 = sbr.rel (0) target = $region49
  $region48: #{tpu_custom_call.1} parent=0 // pred_region
    _
  $region49: #{tpu_custom_call.1} parent=0 // pred_fallthru
    _
  %v42 = vld [vmem:[%s0] sm:$0xff]
  %v43 = vld [vmem:[%s0 + $0x8] sm:$0xff]
  %v44 = vcvt.s32.f32 %v42
  %v45 = vcvt.s32.f32 %v43
  %v46 = vpack.c.bf16 %v45, %v44
  %v47 = vld [vmem:[%s2] sm:$0xf]
  %v48 = vld [vmem:[%s3] sm:$0x1]
  %v50 = vlaneseq
  %v51 = vshrl.u32 %v50, 7
  %v52 = vsub.s32 0, %v51
  %v53 = vrot.slane %v48, %v52
  %vm55 = vcmask 64512
  %v57 = vsel %vm55, %v46, 0
  %vm59 = vcmask 1043456
  %v61 = vsel %vm59, %v47, 0
  %63 = vmatprep.subr.bf16.mxu0 0
  %64 = vmatpush1.bf16.msra.mxu0 0
  %65 = vmatprep.subr.bf16.mxu0 0
  %66 = vmatpush1.bf16.msra.mxu0 0
  %67 = vmatprep.subr.bf16.mxu0 0
  %68 = vmatpush1.bf16.msra.mxu0 0
  %69 = vmatprep.subr.bf16.mxu0 0
  %70 = vmatpush1.bf16.msra.mxu0 0
  %71 = vmatprep.subr.bf16.mxu0 0
  %72 = vmatpush1.bf16.msra.mxu0 0
  %73 = vmatprep.subr.bf16.mxu0 0
  %74 = vmatpush1.bf16.msra.mxu0 0
  %75 = vmatprep.subr.bf16.mxu0 0
  %76 = vmatpush1.bf16.msra.mxu0 0
  %77 = vmatprep.subr.bf16.mxu0 0
  %78 = vmatpush1.bf16.msra.mxu0 %v61
  %79 = vmatprep.subr.bf16.mxu0 0
  %80 = vmatpush2.bf16.msra.mxu0 0
  %81 = vmatprep.subr.bf16.mxu0 0
  %82 = vmatpush2.bf16.msra.mxu0 0
  %83 = vmatprep.subr.bf16.mxu0 0
  %84 = vmatpush2.bf16.msra.mxu0 0
  %85 = vmatprep.subr.bf16.mxu0 0
  %86 = vmatpush2.bf16.msra.mxu0 0
  %87 = vmatprep.subr.bf16.mxu0 0
  %88 = vmatpush2.bf16.msra.mxu0 0
  %89 = vmatprep.subr.bf16.mxu0 0
  %90 = vmatpush2.bf16.msra.mxu0 0
  %91 = vmatprep.subr.bf16.mxu0 0
  %92 = vmatpush2.bf16.msra.mxu0 0
  %93 = vmatprep.subr.bf16.mxu0 0
  %94 = vmatpush2.bf16.msra.mxu0 0
  %95 = vmatprep.mubr.bf16.mxu0 0
  %96 = vmatmul.mubr.bf16.gmra.mxu0 %v57
  %v97 = vpop.f32.mrf.mxu0
  %v98 = vadd.f32 %v53, %v97
  %v99 = vpop.f32.mrf.mxu0
  %v100 = vpop.f32.mrf.mxu0
  %v101 = vadd.f32 %v53, %v100
  %v102 = vpop.f32.mrf.mxu0
  %103 = vdwg.mxu0
  %v104 = vmax.f32 %v98, 0.0
  %v105 = vmax.f32 %v101, 0.0
  %v106 = vpack.c.bf16 %v105, %v104
  %v107 = vld [vmem:[%s4] sm:$0xf]
  %v108 = vld [vmem:[%s4 + $0x4] sm:$0xf]
  %v109 = vld [vmem:[%s4 + $0x8] sm:$0xf]
  %v110 = vld [vmem:[%s4 + $0xc] sm:$0xf]
  %v111 = vld [vmem:[%s4 + $0x10] sm:$0xf]
  %v112 = vld [vmem:[%s4 + $0x14] sm:$0xf]
  %v113 = vld [vmem:[%s4 + $0x18] sm:$0xf]
  %v114 = vld [vmem:[%s4 + $0x1c] sm:$0xf]
  %v115 = vld [vmem:[%s4 + $0x20] sm:$0xf]
  %v116 = vld [vmem:[%s4 + $0x24] sm:$0xf]
  %v117 = vld [vmem:[%s4 + $0x28] sm:$0xf]
  %v118 = vld [vmem:[%s4 + $0x2c] sm:$0xf]
  %v119 = vld [vmem:[%s4 + $0x30] sm:$0xf]
  %v120 = vld [vmem:[%s4 + $0x34] sm:$0xf]
  %v121 = vld [vmem:[%s4 + $0x38] sm:$0xf]
  %v122 = vld [vmem:[%s4 + $0x3c] sm:$0xf]
  %v123 = vld [vmem:[%s5] sm:$0x1]
  %v125 = vlaneseq
  %v126 = vshrl.u32 %v125, 7
  %v127 = vsub.s32 0, %v126
  %v128 = vrot.slane %v123, %v127
  %v146 = vunpack.c.l.b16 %v107
  %v147 = vunpack.c.l.b16 %v108
  %v148 = vunpack.c.l.b16 %v109
  %v149 = vunpack.c.l.b16 %v110
  %v150 = vunpack.c.l.b16 %v111
  %v151 = vunpack.c.l.b16 %v112
  %v152 = vunpack.c.l.b16 %v113
  %v153 = vunpack.c.l.b16 %v114
  %v154 = vunpack.c.l.b16 %v115
  %v155 = vunpack.c.l.b16 %v116
  %v156 = vunpack.c.l.b16 %v117
  %v157 = vunpack.c.l.b16 %v118
  %v158 = vunpack.c.l.b16 %v119
  %v159 = vunpack.c.l.b16 %v120
  %v160 = vunpack.c.l.b16 %v121
  %v161 = vunpack.c.l.b16 %v122
  %v162 = vpack.c.b16 %v147, %v146
  %v163 = vpack.c.b16 %v149, %v148
  %v164 = vpack.c.b16 %v151, %v150
  %v165 = vpack.c.b16 %v153, %v152
  %v166 = vpack.c.b16 %v155, %v154
  %v167 = vpack.c.b16 %v157, %v156
  %v168 = vpack.c.b16 %v159, %v158
  %v169 = vpack.c.b16 %v161, %v160
  %178 = vmatprep.subr.bf16.mxu0 0
  %179 = vmatpush1.bf16.msra.mxu0 %v169
  %180 = vmatprep.subr.bf16.mxu0 0
  %181 = vmatpush1.bf16.msra.mxu0 %v168
  %182 = vmatprep.subr.bf16.mxu0 0
  %183 = vmatpush1.bf16.msra.mxu0 %v167
  %184 = vmatprep.subr.bf16.mxu0 0
  %185 = vmatpush1.bf16.msra.mxu0 %v166
  %186 = vmatprep.subr.bf16.mxu0 0
  %187 = vmatpush1.bf16.msra.mxu0 %v165
  %188 = vmatprep.subr.bf16.mxu0 0
  %189 = vmatpush1.bf16.msra.mxu0 %v164
  %190 = vmatprep.subr.bf16.mxu0 0
  %191 = vmatpush1.bf16.msra.mxu0 %v163
  %192 = vmatprep.subr.bf16.mxu0 0
  %193 = vmatpush1.bf16.msra.mxu0 %v162
  %194 = vmatprep.subr.bf16.mxu0 0
  %195 = vmatpush2.bf16.msra.mxu0 0
  %196 = vmatprep.subr.bf16.mxu0 0
  %197 = vmatpush2.bf16.msra.mxu0 0
  %198 = vmatprep.subr.bf16.mxu0 0
  %199 = vmatpush2.bf16.msra.mxu0 0
  %200 = vmatprep.subr.bf16.mxu0 0
  %201 = vmatpush2.bf16.msra.mxu0 0
  %202 = vmatprep.subr.bf16.mxu0 0
  %203 = vmatpush2.bf16.msra.mxu0 0
  %204 = vmatprep.subr.bf16.mxu0 0
  %205 = vmatpush2.bf16.msra.mxu0 0
  %206 = vmatprep.subr.bf16.mxu0 0
  %207 = vmatpush2.bf16.msra.mxu0 0
  %208 = vmatprep.subr.bf16.mxu0 0
  %209 = vmatpush2.bf16.msra.mxu0 0
  %210 = vmatprep.mubr.bf16.mxu0 0
  %211 = vmatmul.mubr.bf16.gmra.mxu0 %v106
  %v212 = vpop.f32.mrf.mxu0
  %v213 = vadd.f32 %v128, %v212
  %v214 = vpop.f32.mrf.mxu0
  %v215 = vpop.f32.mrf.mxu0
  %v216 = vadd.f32 %v128, %v215
  %v217 = vpop.f32.mrf.mxu0
  %218 = vdwg.mxu0
  %v219 = vmax.f32 %v213, 0.0
  %v220 = vmax.f32 %v216, 0.0
  %v221 = vpack.c.bf16 %v220, %v219
  %v222 = vld [vmem:[%s6] sm:$0xf]
  %v223 = vld [vmem:[%s6 + $0x4] sm:$0xf]
  %v224 = vld [vmem:[%s6 + $0x8] sm:$0xf]
  %v225 = vld [vmem:[%s6 + $0xc] sm:$0xf]
  %v226 = vld [vmem:[%s6 + $0x10] sm:$0xf]
  %v227 = vld [vmem:[%s6 + $0x14] sm:$0xf]
  %v228 = vld [vmem:[%s6 + $0x18] sm:$0xf]
  %v229 = vld [vmem:[%s6 + $0x1c] sm:$0xf]
  %v230 = vld [vmem:[%s6 + $0x20] sm:$0xf]
  %v231 = vld [vmem:[%s6 + $0x24] sm:$0xf]
  %v232 = vld [vmem:[%s6 + $0x28] sm:$0xf]
  %v233 = vld [vmem:[%s6 + $0x2c] sm:$0xf]
  %v234 = vld [vmem:[%s6 + $0x30] sm:$0xf]
  %v235 = vld [vmem:[%s6 + $0x34] sm:$0xf]
  %v236 = vld [vmem:[%s6 + $0x38] sm:$0xf]
  %v237 = vld [vmem:[%s6 + $0x3c] sm:$0xf]
  %v238 = vld [vmem:[%s7] sm:$0x1]
  %v240 = vlaneseq
  %v241 = vshrl.u32 %v240, 7
  %v242 = vsub.s32 0, %v241
  %v243 = vrot.slane %v238, %v242
  %v261 = vunpack.c.l.b16 %v222
  %v262 = vunpack.c.l.b16 %v223
  %v263 = vunpack.c.l.b16 %v224
  %v264 = vunpack.c.l.b16 %v225
  %v265 = vunpack.c.l.b16 %v226
  %v266 = vunpack.c.l.b16 %v227
  %v267 = vunpack.c.l.b16 %v228
  %v268 = vunpack.c.l.b16 %v229
  %v269 = vunpack.c.l.b16 %v230
  %v270 = vunpack.c.l.b16 %v231
  %v271 = vunpack.c.l.b16 %v232
  %v272 = vunpack.c.l.b16 %v233
  %v273 = vunpack.c.l.b16 %v234
  %v274 = vunpack.c.l.b16 %v235
  %v275 = vunpack.c.l.b16 %v236
  %v276 = vunpack.c.l.b16 %v237
  %v277 = vpack.c.b16 %v262, %v261
  %v278 = vpack.c.b16 %v264, %v263
  %v279 = vpack.c.b16 %v266, %v265
  %v280 = vpack.c.b16 %v268, %v267
  %v281 = vpack.c.b16 %v270, %v269
  %v282 = vpack.c.b16 %v272, %v271
  %v283 = vpack.c.b16 %v274, %v273
  %v284 = vpack.c.b16 %v276, %v275
  %293 = vmatprep.subr.bf16.mxu0 0
  %294 = vmatpush1.bf16.msra.mxu0 %v284
  %295 = vmatprep.subr.bf16.mxu0 0
  %296 = vmatpush1.bf16.msra.mxu0 %v283
  %297 = vmatprep.subr.bf16.mxu0 0
  %298 = vmatpush1.bf16.msra.mxu0 %v282
  %299 = vmatprep.subr.bf16.mxu0 0
  %300 = vmatpush1.bf16.msra.mxu0 %v281
  %301 = vmatprep.subr.bf16.mxu0 0
  %302 = vmatpush1.bf16.msra.mxu0 %v280
  %303 = vmatprep.subr.bf16.mxu0 0
  %304 = vmatpush1.bf16.msra.mxu0 %v279
  %305 = vmatprep.subr.bf16.mxu0 0
  %306 = vmatpush1.bf16.msra.mxu0 %v278
  %307 = vmatprep.subr.bf16.mxu0 0
  %308 = vmatpush1.bf16.msra.mxu0 %v277
  %309 = vmatprep.subr.bf16.mxu0 0
  %310 = vmatpush2.bf16.msra.mxu0 0
  %311 = vmatprep.subr.bf16.mxu0 0
  %312 = vmatpush2.bf16.msra.mxu0 0
  %313 = vmatprep.subr.bf16.mxu0 0
  %314 = vmatpush2.bf16.msra.mxu0 0
  %315 = vmatprep.subr.bf16.mxu0 0
  %316 = vmatpush2.bf16.msra.mxu0 0
  %317 = vmatprep.subr.bf16.mxu0 0
  %318 = vmatpush2.bf16.msra.mxu0 0
  %319 = vmatprep.subr.bf16.mxu0 0
  %320 = vmatpush2.bf16.msra.mxu0 0
  %321 = vmatprep.subr.bf16.mxu0 0
  %322 = vmatpush2.bf16.msra.mxu0 0
  %323 = vmatprep.subr.bf16.mxu0 0
  %324 = vmatpush2.bf16.msra.mxu0 0
  %325 = vmatprep.mubr.bf16.mxu0 0
  %326 = vmatmul.mubr.bf16.gmra.mxu0 %v221
  %v327 = vpop.f32.mrf.mxu0
  %v328 = vadd.f32 %v243, %v327
  %v329 = vpop.f32.mrf.mxu0
  %v330 = vpop.f32.mrf.mxu0
  %v331 = vadd.f32 %v243, %v330
  %v332 = vpop.f32.mrf.mxu0
  %333 = vdwg.mxu0
  %v334 = vpack.c.bf16 %v331, %v328
  %s335 = scalar_lea.vmem %s2, 4
  %v336 = vld [vmem:[%s335] sm:$0xf]
  %s337 = scalar_lea.vmem %s3, 1
  %v338 = vld [vmem:[%s337] sm:$0x1]
  %v340 = vlaneseq
  %v341 = vshrl.u32 %v340, 7
  %v342 = vsub.s32 0, %v341
  %v343 = vrot.slane %v338, %v342
  %v346 = vsel %vm59, %v336, 0
  %348 = vmatprep.subr.bf16.mxu0 0
  %349 = vmatpush1.bf16.msra.mxu0 0
  %350 = vmatprep.subr.bf16.mxu0 0
  %351 = vmatpush1.bf16.msra.mxu0 0
  %352 = vmatprep.subr.bf16.mxu0 0
  %353 = vmatpush1.bf16.msra.mxu0 0
  %354 = vmatprep.subr.bf16.mxu0 0
  %355 = vmatpush1.bf16.msra.mxu0 0
  %356 = vmatprep.subr.bf16.mxu0 0
  %357 = vmatpush1.bf16.msra.mxu0 0
  %358 = vmatprep.subr.bf16.mxu0 0
  %359 = vmatpush1.bf16.msra.mxu0 0
  %360 = vmatprep.subr.bf16.mxu0 0
  %361 = vmatpush1.bf16.msra.mxu0 0
  %362 = vmatprep.subr.bf16.mxu0 0
  %363 = vmatpush1.bf16.msra.mxu0 %v346
  %364 = vmatprep.subr.bf16.mxu0 0
  %365 = vmatpush2.bf16.msra.mxu0 0
  %366 = vmatprep.subr.bf16.mxu0 0
  %367 = vmatpush2.bf16.msra.mxu0 0
  %368 = vmatprep.subr.bf16.mxu0 0
  %369 = vmatpush2.bf16.msra.mxu0 0
  %370 = vmatprep.subr.bf16.mxu0 0
  %371 = vmatpush2.bf16.msra.mxu0 0
  %372 = vmatprep.subr.bf16.mxu0 0
  %373 = vmatpush2.bf16.msra.mxu0 0
  %374 = vmatprep.subr.bf16.mxu0 0
  %375 = vmatpush2.bf16.msra.mxu0 0
  %376 = vmatprep.subr.bf16.mxu0 0
  %377 = vmatpush2.bf16.msra.mxu0 0
  %378 = vmatprep.subr.bf16.mxu0 0
  %379 = vmatpush2.bf16.msra.mxu0 0
  %380 = vmatprep.mubr.bf16.mxu0 0
  %381 = vmatmul.mubr.bf16.gmra.mxu0 %v57
  %v382 = vpop.f32.mrf.mxu0
  %v383 = vadd.f32 %v343, %v382
  %v384 = vpop.f32.mrf.mxu0
  %v385 = vpop.f32.mrf.mxu0
  %v386 = vadd.f32 %v343, %v385
  %v387 = vpop.f32.mrf.mxu0
  %388 = vdwg.mxu0
  %v389 = vmax.f32 %v383, 0.0
  %v390 = vmax.f32 %v386, 0.0
  %v391 = vpack.c.bf16 %v390, %v389
  %s392 = scalar_lea.vmem %s4, 64
  %v393 = vld [vmem:[%s392] sm:$0xf]
  %v394 = vld [vmem:[%s392 + $0x4] sm:$0xf]
  %v395 = vld [vmem:[%s392 + $0x8] sm:$0xf]
  %v396 = vld [vmem:[%s392 + $0xc] sm:$0xf]
  %v397 = vld [vmem:[%s392 + $0x10] sm:$0xf]
  %v398 = vld [vmem:[%s392 + $0x14] sm:$0xf]
  %v399 = vld [vmem:[%s392 + $0x18] sm:$0xf]
  %v400 = vld [vmem:[%s392 + $0x1c] sm:$0xf]
  %v401 = vld [vmem:[%s392 + $0x20] sm:$0xf]
  %v402 = vld [vmem:[%s392 + $0x24] sm:$0xf]
  %v403 = vld [vmem:[%s392 + $0x28] sm:$0xf]
  %v404 = vld [vmem:[%s392 + $0x2c] sm:$0xf]
  %v405 = vld [vmem:[%s392 + $0x30] sm:$0xf]
  %v406 = vld [vmem:[%s392 + $0x34] sm:$0xf]
  %v407 = vld [vmem:[%s392 + $0x38] sm:$0xf]
  %v408 = vld [vmem:[%s392 + $0x3c] sm:$0xf]
  %s409 = scalar_lea.vmem %s5, 1
  %v410 = vld [vmem:[%s409] sm:$0x1]
  %v412 = vlaneseq
  %v413 = vshrl.u32 %v412, 7
  %v414 = vsub.s32 0, %v413
  %v415 = vrot.slane %v410, %v414
  %v433 = vunpack.c.l.b16 %v393
  %v434 = vunpack.c.l.b16 %v394
  %v435 = vunpack.c.l.b16 %v395
  %v436 = vunpack.c.l.b16 %v396
  %v437 = vunpack.c.l.b16 %v397
  %v438 = vunpack.c.l.b16 %v398
  %v439 = vunpack.c.l.b16 %v399
  %v440 = vunpack.c.l.b16 %v400
  %v441 = vunpack.c.l.b16 %v401
  %v442 = vunpack.c.l.b16 %v402
  %v443 = vunpack.c.l.b16 %v403
  %v444 = vunpack.c.l.b16 %v404
  %v445 = vunpack.c.l.b16 %v405
  %v446 = vunpack.c.l.b16 %v406
  %v447 = vunpack.c.l.b16 %v407
  %v448 = vunpack.c.l.b16 %v408
  %v449 = vpack.c.b16 %v434, %v433
  %v450 = vpack.c.b16 %v436, %v435
  %v451 = vpack.c.b16 %v438, %v437
  %v452 = vpack.c.b16 %v440, %v439
  %v453 = vpack.c.b16 %v442, %v441
  %v454 = vpack.c.b16 %v444, %v443
  %v455 = vpack.c.b16 %v446, %v445
  %v456 = vpack.c.b16 %v448, %v447
  %465 = vmatprep.subr.bf16.mxu0 0
  %466 = vmatpush1.bf16.msra.mxu0 %v456
  %467 = vmatprep.subr.bf16.mxu0 0
  %468 = vmatpush1.bf16.msra.mxu0 %v455
  %469 = vmatprep.subr.bf16.mxu0 0
  %470 = vmatpush1.bf16.msra.mxu0 %v454
  %471 = vmatprep.subr.bf16.mxu0 0
  %472 = vmatpush1.bf16.msra.mxu0 %v453
  %473 = vmatprep.subr.bf16.mxu0 0
  %474 = vmatpush1.bf16.msra.mxu0 %v452
  %475 = vmatprep.subr.bf16.mxu0 0
  %476 = vmatpush1.bf16.msra.mxu0 %v451
  %477 = vmatprep.subr.bf16.mxu0 0
  %478 = vmatpush1.bf16.msra.mxu0 %v450
  %479 = vmatprep.subr.bf16.mxu0 0
  %480 = vmatpush1.bf16.msra.mxu0 %v449
  %481 = vmatprep.subr.bf16.mxu0 0
  %482 = vmatpush2.bf16.msra.mxu0 0
  %483 = vmatprep.subr.bf16.mxu0 0
  %484 = vmatpush2.bf16.msra.mxu0 0
  %485 = vmatprep.subr.bf16.mxu0 0
  %486 = vmatpush2.bf16.msra.mxu0 0
  %487 = vmatprep.subr.bf16.mxu0 0
  %488 = vmatpush2.bf16.msra.mxu0 0
  %489 = vmatprep.subr.bf16.mxu0 0
  %490 = vmatpush2.bf16.msra.mxu0 0
  %491 = vmatprep.subr.bf16.mxu0 0
  %492 = vmatpush2.bf16.msra.mxu0 0
  %493 = vmatprep.subr.bf16.mxu0 0
  %494 = vmatpush2.bf16.msra.mxu0 0
  %495 = vmatprep.subr.bf16.mxu0 0
  %496 = vmatpush2.bf16.msra.mxu0 0
  %497 = vmatprep.mubr.bf16.mxu0 0
  %498 = vmatmul.mubr.bf16.gmra.mxu0 %v391
  %v499 = vpop.f32.mrf.mxu0
  %v500 = vadd.f32 %v415, %v499
  %v501 = vpop.f32.mrf.mxu0
  %v502 = vpop.f32.mrf.mxu0
  %v503 = vadd.f32 %v415, %v502
  %v504 = vpop.f32.mrf.mxu0
  %505 = vdwg.mxu0
  %v506 = vmax.f32 %v500, 0.0
  %v507 = vmax.f32 %v503, 0.0
  %v508 = vpack.c.bf16 %v507, %v506
  %s509 = scalar_lea.vmem %s6, 64
  %v510 = vld [vmem:[%s509] sm:$0xf]
  %v511 = vld [vmem:[%s509 + $0x4] sm:$0xf]
  %v512 = vld [vmem:[%s509 + $0x8] sm:$0xf]
  %v513 = vld [vmem:[%s509 + $0xc] sm:$0xf]
  %v514 = vld [vmem:[%s509 + $0x10] sm:$0xf]
  %v515 = vld [vmem:[%s509 + $0x14] sm:$0xf]
  %v516 = vld [vmem:[%s509 + $0x18] sm:$0xf]
  %v517 = vld [vmem:[%s509 + $0x1c] sm:$0xf]
  %v518 = vld [vmem:[%s509 + $0x20] sm:$0xf]
  %v519 = vld [vmem:[%s509 + $0x24] sm:$0xf]
  %v520 = vld [vmem:[%s509 + $0x28] sm:$0xf]
  %v521 = vld [vmem:[%s509 + $0x2c] sm:$0xf]
  %v522 = vld [vmem:[%s509 + $0x30] sm:$0xf]
  %v523 = vld [vmem:[%s509 + $0x34] sm:$0xf]
  %v524 = vld [vmem:[%s509 + $0x38] sm:$0xf]
  %v525 = vld [vmem:[%s509 + $0x3c] sm:$0xf]
  %s526 = scalar_lea.vmem %s7, 1
  %v527 = vld [vmem:[%s526] sm:$0x1]
  %v529 = vlaneseq
  %v530 = vshrl.u32 %v529, 7
  %v531 = vsub.s32 0, %v530
  %v532 = vrot.slane %v527, %v531
  %v550 = vunpack.c.l.b16 %v510
  %v551 = vunpack.c.l.b16 %v511
  %v552 = vunpack.c.l.b16 %v512
  %v553 = vunpack.c.l.b16 %v513
  %v554 = vunpack.c.l.b16 %v514
  %v555 = vunpack.c.l.b16 %v515
  %v556 = vunpack.c.l.b16 %v516
  %v557 = vunpack.c.l.b16 %v517
  %v558 = vunpack.c.l.b16 %v518
  %v559 = vunpack.c.l.b16 %v519
  %v560 = vunpack.c.l.b16 %v520
  %v561 = vunpack.c.l.b16 %v521
  %v562 = vunpack.c.l.b16 %v522
  %v563 = vunpack.c.l.b16 %v523
  %v564 = vunpack.c.l.b16 %v524
  %v565 = vunpack.c.l.b16 %v525
  %v566 = vpack.c.b16 %v551, %v550
  %v567 = vpack.c.b16 %v553, %v552
  %v568 = vpack.c.b16 %v555, %v554
  %v569 = vpack.c.b16 %v557, %v556
  %v570 = vpack.c.b16 %v559, %v558
  %v571 = vpack.c.b16 %v561, %v560
  %v572 = vpack.c.b16 %v563, %v562
  %v573 = vpack.c.b16 %v565, %v564
  %582 = vmatprep.subr.bf16.mxu0 0
  %583 = vmatpush1.bf16.msra.mxu0 %v573
  %584 = vmatprep.subr.bf16.mxu0 0
  %585 = vmatpush1.bf16.msra.mxu0 %v572
  %586 = vmatprep.subr.bf16.mxu0 0
  %587 = vmatpush1.bf16.msra.mxu0 %v571
  %588 = vmatprep.subr.bf16.mxu0 0
  %589 = vmatpush1.bf16.msra.mxu0 %v570
  %590 = vmatprep.subr.bf16.mxu0 0
  %591 = vmatpush1.bf16.msra.mxu0 %v569
  %592 = vmatprep.subr.bf16.mxu0 0
  %593 = vmatpush1.bf16.msra.mxu0 %v568
  %594 = vmatprep.subr.bf16.mxu0 0
  %595 = vmatpush1.bf16.msra.mxu0 %v567
  %596 = vmatprep.subr.bf16.mxu0 0
  %597 = vmatpush1.bf16.msra.mxu0 %v566
  %598 = vmatprep.subr.bf16.mxu0 0
  %599 = vmatpush2.bf16.msra.mxu0 0
  %600 = vmatprep.subr.bf16.mxu0 0
  %601 = vmatpush2.bf16.msra.mxu0 0
  %602 = vmatprep.subr.bf16.mxu0 0
  %603 = vmatpush2.bf16.msra.mxu0 0
  %604 = vmatprep.subr.bf16.mxu0 0
  %605 = vmatpush2.bf16.msra.mxu0 0
  %606 = vmatprep.subr.bf16.mxu0 0
  %607 = vmatpush2.bf16.msra.mxu0 0
  %608 = vmatprep.subr.bf16.mxu0 0
  %609 = vmatpush2.bf16.msra.mxu0 0
  %610 = vmatprep.subr.bf16.mxu0 0
  %611 = vmatpush2.bf16.msra.mxu0 0
  %612 = vmatprep.subr.bf16.mxu0 0
  %613 = vmatpush2.bf16.msra.mxu0 0
  %614 = vmatprep.mubr.bf16.mxu0 0
  %615 = vmatmul.mubr.bf16.gmra.mxu0 %v508
  %v616 = vpop.f32.mrf.mxu0
  %v617 = vadd.f32 %v532, %v616
  %v618 = vpop.f32.mrf.mxu0
  %v619 = vpop.f32.mrf.mxu0
  %v620 = vadd.f32 %v532, %v619
  %v621 = vpop.f32.mrf.mxu0
  %622 = vdwg.mxu0
  %v623 = vpack.c.bf16 %v620, %v617
  %s624 = scalar_lea.vmem %s2, 8
  %v625 = vld [vmem:[%s624] sm:$0xf]
  %s626 = scalar_lea.vmem %s3, 2
  %v627 = vld [vmem:[%s626] sm:$0x1]
  %v629 = vlaneseq
  %v630 = vshrl.u32 %v629, 7
  %v631 = vsub.s32 0, %v630
  %v632 = vrot.slane %v627, %v631
  %v635 = vsel %vm59, %v625, 0
  %637 = vmatprep.subr.bf16.mxu0 0
  %638 = vmatpush1.bf16.msra.mxu0 0
  %639 = vmatprep.subr.bf16.mxu0 0
  %640 = vmatpush1.bf16.msra.mxu0 0
  %641 = vmatprep.subr.bf16.mxu0 0
  %642 = vmatpush1.bf16.msra.mxu0 0
  %643 = vmatprep.subr.bf16.mxu0 0
  %644 = vmatpush1.bf16.msra.mxu0 0
  %645 = vmatprep.subr.bf16.mxu0 0
  %646 = vmatpush1.bf16.msra.mxu0 0
  %647 = vmatprep.subr.bf16.mxu0 0
  %648 = vmatpush1.bf16.msra.mxu0 0
  %649 = vmatprep.subr.bf16.mxu0 0
  %650 = vmatpush1.bf16.msra.mxu0 0
  %651 = vmatprep.subr.bf16.mxu0 0
  %652 = vmatpush1.bf16.msra.mxu0 %v635
  %653 = vmatprep.subr.bf16.mxu0 0
  %654 = vmatpush2.bf16.msra.mxu0 0
  %655 = vmatprep.subr.bf16.mxu0 0
  %656 = vmatpush2.bf16.msra.mxu0 0
  %657 = vmatprep.subr.bf16.mxu0 0
  %658 = vmatpush2.bf16.msra.mxu0 0
  %659 = vmatprep.subr.bf16.mxu0 0
  %660 = vmatpush2.bf16.msra.mxu0 0
  %661 = vmatprep.subr.bf16.mxu0 0
  %662 = vmatpush2.bf16.msra.mxu0 0
  %663 = vmatprep.subr.bf16.mxu0 0
  %664 = vmatpush2.bf16.msra.mxu0 0
  %665 = vmatprep.subr.bf16.mxu0 0
  %666 = vmatpush2.bf16.msra.mxu0 0
  %667 = vmatprep.subr.bf16.mxu0 0
  %668 = vmatpush2.bf16.msra.mxu0 0
  %669 = vmatprep.mubr.bf16.mxu0 0
  %670 = vmatmul.mubr.bf16.gmra.mxu0 %v57
  %v671 = vpop.f32.mrf.mxu0
  %v672 = vadd.f32 %v632, %v671
  %v673 = vpop.f32.mrf.mxu0
  %v674 = vpop.f32.mrf.mxu0
  %v675 = vadd.f32 %v632, %v674
  %v676 = vpop.f32.mrf.mxu0
  %677 = vdwg.mxu0
  %v678 = vmax.f32 %v672, 0.0
  %v679 = vmax.f32 %v675, 0.0
  %v680 = vpack.c.bf16 %v679, %v678
  %s681 = scalar_lea.vmem %s4, 128
  %v682 = vld [vmem:[%s681] sm:$0xf]
  %v683 = vld [vmem:[%s681 + $0x4] sm:$0xf]
  %v684 = vld [vmem:[%s681 + $0x8] sm:$0xf]
  %v685 = vld [vmem:[%s681 + $0xc] sm:$0xf]
  %v686 = vld [vmem:[%s681 + $0x10] sm:$0xf]
  %v687 = vld [vmem:[%s681 + $0x14] sm:$0xf]
  %v688 = vld [vmem:[%s681 + $0x18] sm:$0xf]
  %v689 = vld [vmem:[%s681 + $0x1c] sm:$0xf]
  %v690 = vld [vmem:[%s681 + $0x20] sm:$0xf]
  %v691 = vld [vmem:[%s681 + $0x24] sm:$0xf]
  %v692 = vld [vmem:[%s681 + $0x28] sm:$0xf]
  %v693 = vld [vmem:[%s681 + $0x2c] sm:$0xf]
  %v694 = vld [vmem:[%s681 + $0x30] sm:$0xf]
  %v695 = vld [vmem:[%s681 + $0x34] sm:$0xf]
  %v696 = vld [vmem:[%s681 + $0x38] sm:$0xf]
  %v697 = vld [vmem:[%s681 + $0x3c] sm:$0xf]
  %s698 = scalar_lea.vmem %s5, 2
  %v699 = vld [vmem:[%s698] sm:$0x1]
  %v701 = vlaneseq
  %v702 = vshrl.u32 %v701, 7
  %v703 = vsub.s32 0, %v702
  %v704 = vrot.slane %v699, %v703
  %v722 = vunpack.c.l.b16 %v682
  %v723 = vunpack.c.l.b16 %v683
  %v724 = vunpack.c.l.b16 %v684
  %v725 = vunpack.c.l.b16 %v685
  %v726 = vunpack.c.l.b16 %v686
  %v727 = vunpack.c.l.b16 %v687
  %v728 = vunpack.c.l.b16 %v688
  %v729 = vunpack.c.l.b16 %v689
  %v730 = vunpack.c.l.b16 %v690
  %v731 = vunpack.c.l.b16 %v691
  %v732 = vunpack.c.l.b16 %v692
  %v733 = vunpack.c.l.b16 %v693
  %v734 = vunpack.c.l.b16 %v694
  %v735 = vunpack.c.l.b16 %v695
  %v736 = vunpack.c.l.b16 %v696
  %v737 = vunpack.c.l.b16 %v697
  %v738 = vpack.c.b16 %v723, %v722
  %v739 = vpack.c.b16 %v725, %v724
  %v740 = vpack.c.b16 %v727, %v726
  %v741 = vpack.c.b16 %v729, %v728
  %v742 = vpack.c.b16 %v731, %v730
  %v743 = vpack.c.b16 %v733, %v732
  %v744 = vpack.c.b16 %v735, %v734
  %v745 = vpack.c.b16 %v737, %v736
  %754 = vmatprep.subr.bf16.mxu0 0
  %755 = vmatpush1.bf16.msra.mxu0 %v745
  %756 = vmatprep.subr.bf16.mxu0 0
  %757 = vmatpush1.bf16.msra.mxu0 %v744
  %758 = vmatprep.subr.bf16.mxu0 0
  %759 = vmatpush1.bf16.msra.mxu0 %v743
  %760 = vmatprep.subr.bf16.mxu0 0
  %761 = vmatpush1.bf16.msra.mxu0 %v742
  %762 = vmatprep.subr.bf16.mxu0 0
  %763 = vmatpush1.bf16.msra.mxu0 %v741
  %764 = vmatprep.subr.bf16.mxu0 0
  %765 = vmatpush1.bf16.msra.mxu0 %v740
  %766 = vmatprep.subr.bf16.mxu0 0
  %767 = vmatpush1.bf16.msra.mxu0 %v739
  %768 = vmatprep.subr.bf16.mxu0 0
  %769 = vmatpush1.bf16.msra.mxu0 %v738
  %770 = vmatprep.subr.bf16.mxu0 0
  %771 = vmatpush2.bf16.msra.mxu0 0
  %772 = vmatprep.subr.bf16.mxu0 0
  %773 = vmatpush2.bf16.msra.mxu0 0
  %774 = vmatprep.subr.bf16.mxu0 0
  %775 = vmatpush2.bf16.msra.mxu0 0
  %776 = vmatprep.subr.bf16.mxu0 0
  %777 = vmatpush2.bf16.msra.mxu0 0
  %778 = vmatprep.subr.bf16.mxu0 0
  %779 = vmatpush2.bf16.msra.mxu0 0
  %780 = vmatprep.subr.bf16.mxu0 0
  %781 = vmatpush2.bf16.msra.mxu0 0
  %782 = vmatprep.subr.bf16.mxu0 0
  %783 = vmatpush2.bf16.msra.mxu0 0
  %784 = vmatprep.subr.bf16.mxu0 0
  %785 = vmatpush2.bf16.msra.mxu0 0
  %786 = vmatprep.mubr.bf16.mxu0 0
  %787 = vmatmul.mubr.bf16.gmra.mxu0 %v680
  %v788 = vpop.f32.mrf.mxu0
  %v789 = vadd.f32 %v704, %v788
  %v790 = vpop.f32.mrf.mxu0
  %v791 = vpop.f32.mrf.mxu0
  %v792 = vadd.f32 %v704, %v791
  %v793 = vpop.f32.mrf.mxu0
  %794 = vdwg.mxu0
  %v795 = vmax.f32 %v789, 0.0
  %v796 = vmax.f32 %v792, 0.0
  %v797 = vpack.c.bf16 %v796, %v795
  %s798 = scalar_lea.vmem %s6, 128
  %v799 = vld [vmem:[%s798] sm:$0xf]
  %v800 = vld [vmem:[%s798 + $0x4] sm:$0xf]
  %v801 = vld [vmem:[%s798 + $0x8] sm:$0xf]
  %v802 = vld [vmem:[%s798 + $0xc] sm:$0xf]
  %v803 = vld [vmem:[%s798 + $0x10] sm:$0xf]
  %v804 = vld [vmem:[%s798 + $0x14] sm:$0xf]
  %v805 = vld [vmem:[%s798 + $0x18] sm:$0xf]
  %v806 = vld [vmem:[%s798 + $0x1c] sm:$0xf]
  %v807 = vld [vmem:[%s798 + $0x20] sm:$0xf]
  %v808 = vld [vmem:[%s798 + $0x24] sm:$0xf]
  %v809 = vld [vmem:[%s798 + $0x28] sm:$0xf]
  %v810 = vld [vmem:[%s798 + $0x2c] sm:$0xf]
  %v811 = vld [vmem:[%s798 + $0x30] sm:$0xf]
  %v812 = vld [vmem:[%s798 + $0x34] sm:$0xf]
  %v813 = vld [vmem:[%s798 + $0x38] sm:$0xf]
  %v814 = vld [vmem:[%s798 + $0x3c] sm:$0xf]
  %s815 = scalar_lea.vmem %s7, 2
  %v816 = vld [vmem:[%s815] sm:$0x1]
  %v818 = vlaneseq
  %v819 = vshrl.u32 %v818, 7
  %v820 = vsub.s32 0, %v819
  %v821 = vrot.slane %v816, %v820
  %v839 = vunpack.c.l.b16 %v799
  %v840 = vunpack.c.l.b16 %v800
  %v841 = vunpack.c.l.b16 %v801
  %v842 = vunpack.c.l.b16 %v802
  %v843 = vunpack.c.l.b16 %v803
  %v844 = vunpack.c.l.b16 %v804
  %v845 = vunpack.c.l.b16 %v805
  %v846 = vunpack.c.l.b16 %v806
  %v847 = vunpack.c.l.b16 %v807
  %v848 = vunpack.c.l.b16 %v808
  %v849 = vunpack.c.l.b16 %v809
  %v850 = vunpack.c.l.b16 %v810
  %v851 = vunpack.c.l.b16 %v811
  %v852 = vunpack.c.l.b16 %v812
  %v853 = vunpack.c.l.b16 %v813
  %v854 = vunpack.c.l.b16 %v814
  %v855 = vpack.c.b16 %v840, %v839
  %v856 = vpack.c.b16 %v842, %v841
  %v857 = vpack.c.b16 %v844, %v843
  %v858 = vpack.c.b16 %v846, %v845
  %v859 = vpack.c.b16 %v848, %v847
  %v860 = vpack.c.b16 %v850, %v849
  %v861 = vpack.c.b16 %v852, %v851
  %v862 = vpack.c.b16 %v854, %v853
  %871 = vmatprep.subr.bf16.mxu0 0
  %872 = vmatpush1.bf16.msra.mxu0 %v862
  %873 = vmatprep.subr.bf16.mxu0 0
  %874 = vmatpush1.bf16.msra.mxu0 %v861
  %875 = vmatprep.subr.bf16.mxu0 0
  %876 = vmatpush1.bf16.msra.mxu0 %v860
  %877 = vmatprep.subr.bf16.mxu0 0
  %878 = vmatpush1.bf16.msra.mxu0 %v859
  %879 = vmatprep.subr.bf16.mxu0 0
  %880 = vmatpush1.bf16.msra.mxu0 %v858
  %881 = vmatprep.subr.bf16.mxu0 0
  %882 = vmatpush1.bf16.msra.mxu0 %v857
  %883 = vmatprep.subr.bf16.mxu0 0
  %884 = vmatpush1.bf16.msra.mxu0 %v856
  %885 = vmatprep.subr.bf16.mxu0 0
  %886 = vmatpush1.bf16.msra.mxu0 %v855
  %887 = vmatprep.subr.bf16.mxu0 0
  %888 = vmatpush2.bf16.msra.mxu0 0
  %889 = vmatprep.subr.bf16.mxu0 0
  %890 = vmatpush2.bf16.msra.mxu0 0
  %891 = vmatprep.subr.bf16.mxu0 0
  %892 = vmatpush2.bf16.msra.mxu0 0
  %893 = vmatprep.subr.bf16.mxu0 0
  %894 = vmatpush2.bf16.msra.mxu0 0
  %895 = vmatprep.subr.bf16.mxu0 0
  %896 = vmatpush2.bf16.msra.mxu0 0
  %897 = vmatprep.subr.bf16.mxu0 0
  %898 = vmatpush2.bf16.msra.mxu0 0
  %899 = vmatprep.subr.bf16.mxu0 0
  %900 = vmatpush2.bf16.msra.mxu0 0
  %901 = vmatprep.subr.bf16.mxu0 0
  %902 = vmatpush2.bf16.msra.mxu0 0
  %903 = vmatprep.mubr.bf16.mxu0 0
  %904 = vmatmul.mubr.bf16.gmra.mxu0 %v797
  %v905 = vpop.f32.mrf.mxu0
  %v906 = vadd.f32 %v821, %v905
  %v907 = vpop.f32.mrf.mxu0
  %v908 = vpop.f32.mrf.mxu0
  %v909 = vadd.f32 %v821, %v908
  %v910 = vpop.f32.mrf.mxu0
  %911 = vdwg.mxu0
  %v912 = vpack.c.bf16 %v909, %v906
  %s913 = scalar_lea.vmem %s2, 12
  %v914 = vld [vmem:[%s913] sm:$0xf]
  %s915 = scalar_lea.vmem %s3, 3
  %v916 = vld [vmem:[%s915] sm:$0x1]
  %v918 = vlaneseq
  %v919 = vshrl.u32 %v918, 7
  %v920 = vsub.s32 0, %v919
  %v921 = vrot.slane %v916, %v920
  %v924 = vsel %vm59, %v914, 0
  %926 = vmatprep.subr.bf16.mxu0 0
  %927 = vmatpush1.bf16.msra.mxu0 0
  %928 = vmatprep.subr.bf16.mxu0 0
  %929 = vmatpush1.bf16.msra.mxu0 0
  %930 = vmatprep.subr.bf16.mxu0 0
  %931 = vmatpush1.bf16.msra.mxu0 0
  %932 = vmatprep.subr.bf16.mxu0 0
  %933 = vmatpush1.bf16.msra.mxu0 0
  %934 = vmatprep.subr.bf16.mxu0 0
  %935 = vmatpush1.bf16.msra.mxu0 0
  %936 = vmatprep.subr.bf16.mxu0 0
  %937 = vmatpush1.bf16.msra.mxu0 0
  %938 = vmatprep.subr.bf16.mxu0 0
  %939 = vmatpush1.bf16.msra.mxu0 0
  %940 = vmatprep.subr.bf16.mxu0 0
  %941 = vmatpush1.bf16.msra.mxu0 %v924
  %942 = vmatprep.subr.bf16.mxu0 0
  %943 = vmatpush2.bf16.msra.mxu0 0
  %944 = vmatprep.subr.bf16.mxu0 0
  %945 = vmatpush2.bf16.msra.mxu0 0
  %946 = vmatprep.subr.bf16.mxu0 0
  %947 = vmatpush2.bf16.msra.mxu0 0
  %948 = vmatprep.subr.bf16.mxu0 0
  %949 = vmatpush2.bf16.msra.mxu0 0
  %950 = vmatprep.subr.bf16.mxu0 0
  %951 = vmatpush2.bf16.msra.mxu0 0
  %952 = vmatprep.subr.bf16.mxu0 0
  %953 = vmatpush2.bf16.msra.mxu0 0
  %954 = vmatprep.subr.bf16.mxu0 0
  %955 = vmatpush2.bf16.msra.mxu0 0
  %956 = vmatprep.subr.bf16.mxu0 0
  %957 = vmatpush2.bf16.msra.mxu0 0
  %958 = vmatprep.mubr.bf16.mxu0 0
  %959 = vmatmul.mubr.bf16.gmra.mxu0 %v57
  %v960 = vpop.f32.mrf.mxu0
  %v961 = vadd.f32 %v921, %v960
  %v962 = vpop.f32.mrf.mxu0
  %v963 = vpop.f32.mrf.mxu0
  %v964 = vadd.f32 %v921, %v963
  %v965 = vpop.f32.mrf.mxu0
  %966 = vdwg.mxu0
  %v967 = vmax.f32 %v961, 0.0
  %v968 = vmax.f32 %v964, 0.0
  %v969 = vpack.c.bf16 %v968, %v967
  %s970 = scalar_lea.vmem %s4, 192
  %v971 = vld [vmem:[%s970] sm:$0xf]
  %v972 = vld [vmem:[%s970 + $0x4] sm:$0xf]
  %v973 = vld [vmem:[%s970 + $0x8] sm:$0xf]
  %v974 = vld [vmem:[%s970 + $0xc] sm:$0xf]
  %v975 = vld [vmem:[%s970 + $0x10] sm:$0xf]
  %v976 = vld [vmem:[%s970 + $0x14] sm:$0xf]
  %v977 = vld [vmem:[%s970 + $0x18] sm:$0xf]
  %v978 = vld [vmem:[%s970 + $0x1c] sm:$0xf]
  %v979 = vld [vmem:[%s970 + $0x20] sm:$0xf]
  %v980 = vld [vmem:[%s970 + $0x24] sm:$0xf]
  %v981 = vld [vmem:[%s970 + $0x28] sm:$0xf]
  %v982 = vld [vmem:[%s970 + $0x2c] sm:$0xf]
  %v983 = vld [vmem:[%s970 + $0x30] sm:$0xf]
  %v984 = vld [vmem:[%s970 + $0x34] sm:$0xf]
  %v985 = vld [vmem:[%s970 + $0x38] sm:$0xf]
  %v986 = vld [vmem:[%s970 + $0x3c] sm:$0xf]
  %s987 = scalar_lea.vmem %s5, 3
  %v988 = vld [vmem:[%s987] sm:$0x1]
  %v990 = vlaneseq
  %v991 = vshrl.u32 %v990, 7
  %v992 = vsub.s32 0, %v991
  %v993 = vrot.slane %v988, %v992
  %v1011 = vunpack.c.l.b16 %v971
  %v1012 = vunpack.c.l.b16 %v972
  %v1013 = vunpack.c.l.b16 %v973
  %v1014 = vunpack.c.l.b16 %v974
  %v1015 = vunpack.c.l.b16 %v975
  %v1016 = vunpack.c.l.b16 %v976
  %v1017 = vunpack.c.l.b16 %v977
  %v1018 = vunpack.c.l.b16 %v978
  %v1019 = vunpack.c.l.b16 %v979
  %v1020 = vunpack.c.l.b16 %v980
  %v1021 = vunpack.c.l.b16 %v981
  %v1022 = vunpack.c.l.b16 %v982
  %v1023 = vunpack.c.l.b16 %v983
  %v1024 = vunpack.c.l.b16 %v984
  %v1025 = vunpack.c.l.b16 %v985
  %v1026 = vunpack.c.l.b16 %v986
  %v1027 = vpack.c.b16 %v1012, %v1011
  %v1028 = vpack.c.b16 %v1014, %v1013
  %v1029 = vpack.c.b16 %v1016, %v1015
  %v1030 = vpack.c.b16 %v1018, %v1017
  %v1031 = vpack.c.b16 %v1020, %v1019
  %v1032 = vpack.c.b16 %v1022, %v1021
  %v1033 = vpack.c.b16 %v1024, %v1023
  %v1034 = vpack.c.b16 %v1026, %v1025
  %1043 = vmatprep.subr.bf16.mxu0 0
  %1044 = vmatpush1.bf16.msra.mxu0 %v1034
  %1045 = vmatprep.subr.bf16.mxu0 0
  %1046 = vmatpush1.bf16.msra.mxu0 %v1033
  %1047 = vmatprep.subr.bf16.mxu0 0
  %1048 = vmatpush1.bf16.msra.mxu0 %v1032
  %1049 = vmatprep.subr.bf16.mxu0 0
  %1050 = vmatpush1.bf16.msra.mxu0 %v1031
  %1051 = vmatprep.subr.bf16.mxu0 0
  %1052 = vmatpush1.bf16.msra.mxu0 %v1030
  %1053 = vmatprep.subr.bf16.mxu0 0
  %1054 = vmatpush1.bf16.msra.mxu0 %v1029
  %1055 = vmatprep.subr.bf16.mxu0 0
  %1056 = vmatpush1.bf16.msra.mxu0 %v1028
  %1057 = vmatprep.subr.bf16.mxu0 0
  %1058 = vmatpush1.bf16.msra.mxu0 %v1027
  %1059 = vmatprep.subr.bf16.mxu0 0
  %1060 = vmatpush2.bf16.msra.mxu0 0
  %1061 = vmatprep.subr.bf16.mxu0 0
  %1062 = vmatpush2.bf16.msra.mxu0 0
  %1063 = vmatprep.subr.bf16.mxu0 0
  %1064 = vmatpush2.bf16.msra.mxu0 0
  %1065 = vmatprep.subr.bf16.mxu0 0
  %1066 = vmatpush2.bf16.msra.mxu0 0
  %1067 = vmatprep.subr.bf16.mxu0 0
  %1068 = vmatpush2.bf16.msra.mxu0 0
  %1069 = vmatprep.subr.bf16.mxu0 0
  %1070 = vmatpush2.bf16.msra.mxu0 0
  %1071 = vmatprep.subr.bf16.mxu0 0
  %1072 = vmatpush2.bf16.msra.mxu0 0
  %1073 = vmatprep.subr.bf16.mxu0 0
  %1074 = vmatpush2.bf16.msra.mxu0 0
  %1075 = vmatprep.mubr.bf16.mxu0 0
  %1076 = vmatmul.mubr.bf16.gmra.mxu0 %v969
  %v1077 = vpop.f32.mrf.mxu0
  %v1078 = vadd.f32 %v993, %v1077
  %v1079 = vpop.f32.mrf.mxu0
  %v1080 = vpop.f32.mrf.mxu0
  %v1081 = vadd.f32 %v993, %v1080
  %v1082 = vpop.f32.mrf.mxu0
  %1083 = vdwg.mxu0
  %v1084 = vmax.f32 %v1078, 0.0
  %v1085 = vmax.f32 %v1081, 0.0
  %v1086 = vpack.c.bf16 %v1085, %v1084
  %s1087 = scalar_lea.vmem %s6, 192
  %v1088 = vld [vmem:[%s1087] sm:$0xf]
  %v1089 = vld [vmem:[%s1087 + $0x4] sm:$0xf]
  %v1090 = vld [vmem:[%s1087 + $0x8] sm:$0xf]
  %v1091 = vld [vmem:[%s1087 + $0xc] sm:$0xf]
  %v1092 = vld [vmem:[%s1087 + $0x10] sm:$0xf]
  %v1093 = vld [vmem:[%s1087 + $0x14] sm:$0xf]
  %v1094 = vld [vmem:[%s1087 + $0x18] sm:$0xf]
  %v1095 = vld [vmem:[%s1087 + $0x1c] sm:$0xf]
  %v1096 = vld [vmem:[%s1087 + $0x20] sm:$0xf]
  %v1097 = vld [vmem:[%s1087 + $0x24] sm:$0xf]
  %v1098 = vld [vmem:[%s1087 + $0x28] sm:$0xf]
  %v1099 = vld [vmem:[%s1087 + $0x2c] sm:$0xf]
  %v1100 = vld [vmem:[%s1087 + $0x30] sm:$0xf]
  %v1101 = vld [vmem:[%s1087 + $0x34] sm:$0xf]
  %v1102 = vld [vmem:[%s1087 + $0x38] sm:$0xf]
  %v1103 = vld [vmem:[%s1087 + $0x3c] sm:$0xf]
  %s1104 = scalar_lea.vmem %s7, 3
  %v1105 = vld [vmem:[%s1104] sm:$0x1]
  %v1107 = vlaneseq
  %v1108 = vshrl.u32 %v1107, 7
  %v1109 = vsub.s32 0, %v1108
  %v1110 = vrot.slane %v1105, %v1109
  %v1128 = vunpack.c.l.b16 %v1088
  %v1129 = vunpack.c.l.b16 %v1089
  %v1130 = vunpack.c.l.b16 %v1090
  %v1131 = vunpack.c.l.b16 %v1091
  %v1132 = vunpack.c.l.b16 %v1092
  %v1133 = vunpack.c.l.b16 %v1093
  %v1134 = vunpack.c.l.b16 %v1094
  %v1135 = vunpack.c.l.b16 %v1095
  %v1136 = vunpack.c.l.b16 %v1096
  %v1137 = vunpack.c.l.b16 %v1097
  %v1138 = vunpack.c.l.b16 %v1098
  %v1139 = vunpack.c.l.b16 %v1099
  %v1140 = vunpack.c.l.b16 %v1100
  %v1141 = vunpack.c.l.b16 %v1101
  %v1142 = vunpack.c.l.b16 %v1102
  %v1143 = vunpack.c.l.b16 %v1103
  %v1144 = vpack.c.b16 %v1129, %v1128
  %v1145 = vpack.c.b16 %v1131, %v1130
  %v1146 = vpack.c.b16 %v1133, %v1132
  %v1147 = vpack.c.b16 %v1135, %v1134
  %v1148 = vpack.c.b16 %v1137, %v1136
  %v1149 = vpack.c.b16 %v1139, %v1138
  %v1150 = vpack.c.b16 %v1141, %v1140
  %v1151 = vpack.c.b16 %v1143, %v1142
  %1160 = vmatprep.subr.bf16.mxu0 0
  %1161 = vmatpush1.bf16.msra.mxu0 %v1151
  %1162 = vmatprep.subr.bf16.mxu0 0
  %1163 = vmatpush1.bf16.msra.mxu0 %v1150
  %1164 = vmatprep.subr.bf16.mxu0 0
  %1165 = vmatpush1.bf16.msra.mxu0 %v1149
  %1166 = vmatprep.subr.bf16.mxu0 0
  %1167 = vmatpush1.bf16.msra.mxu0 %v1148
  %1168 = vmatprep.subr.bf16.mxu0 0
  %1169 = vmatpush1.bf16.msra.mxu0 %v1147
  %1170 = vmatprep.subr.bf16.mxu0 0
  %1171 = vmatpush1.bf16.msra.mxu0 %v1146
  %1172 = vmatprep.subr.bf16.mxu0 0
  %1173 = vmatpush1.bf16.msra.mxu0 %v1145
  %1174 = vmatprep.subr.bf16.mxu0 0
  %1175 = vmatpush1.bf16.msra.mxu0 %v1144
  %1176 = vmatprep.subr.bf16.mxu0 0
  %1177 = vmatpush2.bf16.msra.mxu0 0
  %1178 = vmatprep.subr.bf16.mxu0 0
  %1179 = vmatpush2.bf16.msra.mxu0 0
  %1180 = vmatprep.subr.bf16.mxu0 0
  %1181 = vmatpush2.bf16.msra.mxu0 0
  %1182 = vmatprep.subr.bf16.mxu0 0
  %1183 = vmatpush2.bf16.msra.mxu0 0
  %1184 = vmatprep.subr.bf16.mxu0 0
  %1185 = vmatpush2.bf16.msra.mxu0 0
  %1186 = vmatprep.subr.bf16.mxu0 0
  %1187 = vmatpush2.bf16.msra.mxu0 0
  %1188 = vmatprep.subr.bf16.mxu0 0
  %1189 = vmatpush2.bf16.msra.mxu0 0
  %1190 = vmatprep.subr.bf16.mxu0 0
  %1191 = vmatpush2.bf16.msra.mxu0 0
  %1192 = vmatprep.mubr.bf16.mxu0 0
  %1193 = vmatmul.mubr.bf16.gmra.mxu0 %v1086
  %v1194 = vpop.f32.mrf.mxu0
  %v1195 = vadd.f32 %v1110, %v1194
  %v1196 = vpop.f32.mrf.mxu0
  %v1197 = vpop.f32.mrf.mxu0
  %v1198 = vadd.f32 %v1110, %v1197
  %v1199 = vpop.f32.mrf.mxu0
  %1200 = vdwg.mxu0
  %v1201 = vpack.c.bf16 %v1198, %v1195
  %s1202 = scalar_lea.vmem %s2, 16
  %v1203 = vld [vmem:[%s1202] sm:$0xf]
  %s1204 = scalar_lea.vmem %s3, 4
  %v1205 = vld [vmem:[%s1204] sm:$0x1]
  %v1207 = vlaneseq
  %v1208 = vshrl.u32 %v1207, 7
  %v1209 = vsub.s32 0, %v1208
  %v1210 = vrot.slane %v1205, %v1209
  %v1213 = vsel %vm59, %v1203, 0
  %1215 = vmatprep.subr.bf16.mxu0 0
  %1216 = vmatpush1.bf16.msra.mxu0 0
  %1217 = vmatprep.subr.bf16.mxu0 0
  %1218 = vmatpush1.bf16.msra.mxu0 0
  %1219 = vmatprep.subr.bf16.mxu0 0
  %1220 = vmatpush1.bf16.msra.mxu0 0
  %1221 = vmatprep.subr.bf16.mxu0 0
  %1222 = vmatpush1.bf16.msra.mxu0 0
  %1223 = vmatprep.subr.bf16.mxu0 0
  %1224 = vmatpush1.bf16.msra.mxu0 0
  %1225 = vmatprep.subr.bf16.mxu0 0
  %1226 = vmatpush1.bf16.msra.mxu0 0
  %1227 = vmatprep.subr.bf16.mxu0 0
  %1228 = vmatpush1.bf16.msra.mxu0 0
  %1229 = vmatprep.subr.bf16.mxu0 0
  %1230 = vmatpush1.bf16.msra.mxu0 %v1213
  %1231 = vmatprep.subr.bf16.mxu0 0
  %1232 = vmatpush2.bf16.msra.mxu0 0
  %1233 = vmatprep.subr.bf16.mxu0 0
  %1234 = vmatpush2.bf16.msra.mxu0 0
  %1235 = vmatprep.subr.bf16.mxu0 0
  %1236 = vmatpush2.bf16.msra.mxu0 0
  %1237 = vmatprep.subr.bf16.mxu0 0
  %1238 = vmatpush2.bf16.msra.mxu0 0
  %1239 = vmatprep.subr.bf16.mxu0 0
  %1240 = vmatpush2.bf16.msra.mxu0 0
  %1241 = vmatprep.subr.bf16.mxu0 0
  %1242 = vmatpush2.bf16.msra.mxu0 0
  %1243 = vmatprep.subr.bf16.mxu0 0
  %1244 = vmatpush2.bf16.msra.mxu0 0
  %1245 = vmatprep.subr.bf16.mxu0 0
  %1246 = vmatpush2.bf16.msra.mxu0 0
  %1247 = vmatprep.mubr.bf16.mxu0 0
  %1248 = vmatmul.mubr.bf16.gmra.mxu0 %v57
  %v1249 = vpop.f32.mrf.mxu0
  %v1250 = vadd.f32 %v1210, %v1249
  %v1251 = vpop.f32.mrf.mxu0
  %v1252 = vpop.f32.mrf.mxu0
  %v1253 = vadd.f32 %v1210, %v1252
  %v1254 = vpop.f32.mrf.mxu0
  %1255 = vdwg.mxu0
  %v1256 = vmax.f32 %v1250, 0.0
  %v1257 = vmax.f32 %v1253, 0.0
  %v1258 = vpack.c.bf16 %v1257, %v1256
  %s1259 = scalar_lea.vmem %s4, 256
  %v1260 = vld [vmem:[%s1259] sm:$0xf]
  %v1261 = vld [vmem:[%s1259 + $0x4] sm:$0xf]
  %v1262 = vld [vmem:[%s1259 + $0x8] sm:$0xf]
  %v1263 = vld [vmem:[%s1259 + $0xc] sm:$0xf]
  %v1264 = vld [vmem:[%s1259 + $0x10] sm:$0xf]
  %v1265 = vld [vmem:[%s1259 + $0x14] sm:$0xf]
  %v1266 = vld [vmem:[%s1259 + $0x18] sm:$0xf]
  %v1267 = vld [vmem:[%s1259 + $0x1c] sm:$0xf]
  %v1268 = vld [vmem:[%s1259 + $0x20] sm:$0xf]
  %v1269 = vld [vmem:[%s1259 + $0x24] sm:$0xf]
  %v1270 = vld [vmem:[%s1259 + $0x28] sm:$0xf]
  %v1271 = vld [vmem:[%s1259 + $0x2c] sm:$0xf]
  %v1272 = vld [vmem:[%s1259 + $0x30] sm:$0xf]
  %v1273 = vld [vmem:[%s1259 + $0x34] sm:$0xf]
  %v1274 = vld [vmem:[%s1259 + $0x38] sm:$0xf]
  %v1275 = vld [vmem:[%s1259 + $0x3c] sm:$0xf]
  %s1276 = scalar_lea.vmem %s5, 4
  %v1277 = vld [vmem:[%s1276] sm:$0x1]
  %v1279 = vlaneseq
  %v1280 = vshrl.u32 %v1279, 7
  %v1281 = vsub.s32 0, %v1280
  %v1282 = vrot.slane %v1277, %v1281
  %v1300 = vunpack.c.l.b16 %v1260
  %v1301 = vunpack.c.l.b16 %v1261
  %v1302 = vunpack.c.l.b16 %v1262
  %v1303 = vunpack.c.l.b16 %v1263
  %v1304 = vunpack.c.l.b16 %v1264
  %v1305 = vunpack.c.l.b16 %v1265
  %v1306 = vunpack.c.l.b16 %v1266
  %v1307 = vunpack.c.l.b16 %v1267
  %v1308 = vunpack.c.l.b16 %v1268
  %v1309 = vunpack.c.l.b16 %v1269
  %v1310 = vunpack.c.l.b16 %v1270
  %v1311 = vunpack.c.l.b16 %v1271
  %v1312 = vunpack.c.l.b16 %v1272
  %v1313 = vunpack.c.l.b16 %v1273
  %v1314 = vunpack.c.l.b16 %v1274
  %v1315 = vunpack.c.l.b16 %v1275
  %v1316 = vpack.c.b16 %v1301, %v1300
  %v1317 = vpack.c.b16 %v1303, %v1302
  %v1318 = vpack.c.b16 %v1305, %v1304
  %v1319 = vpack.c.b16 %v1307, %v1306
  %v1320 = vpack.c.b16 %v1309, %v1308
  %v1321 = vpack.c.b16 %v1311, %v1310
  %v1322 = vpack.c.b16 %v1313, %v1312
  %v1323 = vpack.c.b16 %v1315, %v1314
  %1332 = vmatprep.subr.bf16.mxu0 0
  %1333 = vmatpush1.bf16.msra.mxu0 %v1323
  %1334 = vmatprep.subr.bf16.mxu0 0
  %1335 = vmatpush1.bf16.msra.mxu0 %v1322
  %1336 = vmatprep.subr.bf16.mxu0 0
  %1337 = vmatpush1.bf16.msra.mxu0 %v1321
  %1338 = vmatprep.subr.bf16.mxu0 0
  %1339 = vmatpush1.bf16.msra.mxu0 %v1320
  %1340 = vmatprep.subr.bf16.mxu0 0
  %1341 = vmatpush1.bf16.msra.mxu0 %v1319
  %1342 = vmatprep.subr.bf16.mxu0 0
  %1343 = vmatpush1.bf16.msra.mxu0 %v1318
  %1344 = vmatprep.subr.bf16.mxu0 0
  %1345 = vmatpush1.bf16.msra.mxu0 %v1317
  %1346 = vmatprep.subr.bf16.mxu0 0
  %1347 = vmatpush1.bf16.msra.mxu0 %v1316
  %1348 = vmatprep.subr.bf16.mxu0 0
  %1349 = vmatpush2.bf16.msra.mxu0 0
  %1350 = vmatprep.subr.bf16.mxu0 0
  %1351 = vmatpush2.bf16.msra.mxu0 0
  %1352 = vmatprep.subr.bf16.mxu0 0
  %1353 = vmatpush2.bf16.msra.mxu0 0
  %1354 = vmatprep.subr.bf16.mxu0 0
  %1355 = vmatpush2.bf16.msra.mxu0 0
  %1356 = vmatprep.subr.bf16.mxu0 0
  %1357 = vmatpush2.bf16.msra.mxu0 0
  %1358 = vmatprep.subr.bf16.mxu0 0
  %1359 = vmatpush2.bf16.msra.mxu0 0
  %1360 = vmatprep.subr.bf16.mxu0 0
  %1361 = vmatpush2.bf16.msra.mxu0 0
  %1362 = vmatprep.subr.bf16.mxu0 0
  %1363 = vmatpush2.bf16.msra.mxu0 0
  %1364 = vmatprep.mubr.bf16.mxu0 0
  %1365 = vmatmul.mubr.bf16.gmra.mxu0 %v1258
  %v1366 = vpop.f32.mrf.mxu0
  %v1367 = vadd.f32 %v1282, %v1366
  %v1368 = vpop.f32.mrf.mxu0
  %v1369 = vpop.f32.mrf.mxu0
  %v1370 = vadd.f32 %v1282, %v1369
  %v1371 = vpop.f32.mrf.mxu0
  %1372 = vdwg.mxu0
  %v1373 = vmax.f32 %v1367, 0.0
  %v1374 = vmax.f32 %v1370, 0.0
  %v1375 = vpack.c.bf16 %v1374, %v1373
  %s1376 = scalar_lea.vmem %s6, 256
  %v1377 = vld [vmem:[%s1376] sm:$0xf]
  %v1378 = vld [vmem:[%s1376 + $0x4] sm:$0xf]
  %v1379 = vld [vmem:[%s1376 + $0x8] sm:$0xf]
  %v1380 = vld [vmem:[%s1376 + $0xc] sm:$0xf]
  %v1381 = vld [vmem:[%s1376 + $0x10] sm:$0xf]
  %v1382 = vld [vmem:[%s1376 + $0x14] sm:$0xf]
  %v1383 = vld [vmem:[%s1376 + $0x18] sm:$0xf]
  %v1384 = vld [vmem:[%s1376 + $0x1c] sm:$0xf]
  %v1385 = vld [vmem:[%s1376 + $0x20] sm:$0xf]
  %v1386 = vld [vmem:[%s1376 + $0x24] sm:$0xf]
  %v1387 = vld [vmem:[%s1376 + $0x28] sm:$0xf]
  %v1388 = vld [vmem:[%s1376 + $0x2c] sm:$0xf]
  %v1389 = vld [vmem:[%s1376 + $0x30] sm:$0xf]
  %v1390 = vld [vmem:[%s1376 + $0x34] sm:$0xf]
  %v1391 = vld [vmem:[%s1376 + $0x38] sm:$0xf]
  %v1392 = vld [vmem:[%s1376 + $0x3c] sm:$0xf]
  %s1393 = scalar_lea.vmem %s7, 4
  %v1394 = vld [vmem:[%s1393] sm:$0x1]
  %v1396 = vlaneseq
  %v1397 = vshrl.u32 %v1396, 7
  %v1398 = vsub.s32 0, %v1397
  %v1399 = vrot.slane %v1394, %v1398
  %v1417 = vunpack.c.l.b16 %v1377
  %v1418 = vunpack.c.l.b16 %v1378
  %v1419 = vunpack.c.l.b16 %v1379
  %v1420 = vunpack.c.l.b16 %v1380
  %v1421 = vunpack.c.l.b16 %v1381
  %v1422 = vunpack.c.l.b16 %v1382
  %v1423 = vunpack.c.l.b16 %v1383
  %v1424 = vunpack.c.l.b16 %v1384
  %v1425 = vunpack.c.l.b16 %v1385
  %v1426 = vunpack.c.l.b16 %v1386
  %v1427 = vunpack.c.l.b16 %v1387
  %v1428 = vunpack.c.l.b16 %v1388
  %v1429 = vunpack.c.l.b16 %v1389
  %v1430 = vunpack.c.l.b16 %v1390
  %v1431 = vunpack.c.l.b16 %v1391
  %v1432 = vunpack.c.l.b16 %v1392
  %v1433 = vpack.c.b16 %v1418, %v1417
  %v1434 = vpack.c.b16 %v1420, %v1419
  %v1435 = vpack.c.b16 %v1422, %v1421
  %v1436 = vpack.c.b16 %v1424, %v1423
  %v1437 = vpack.c.b16 %v1426, %v1425
  %v1438 = vpack.c.b16 %v1428, %v1427
  %v1439 = vpack.c.b16 %v1430, %v1429
  %v1440 = vpack.c.b16 %v1432, %v1431
  %1449 = vmatprep.subr.bf16.mxu0 0
  %1450 = vmatpush1.bf16.msra.mxu0 %v1440
  %1451 = vmatprep.subr.bf16.mxu0 0
  %1452 = vmatpush1.bf16.msra.mxu0 %v1439
  %1453 = vmatprep.subr.bf16.mxu0 0
  %1454 = vmatpush1.bf16.msra.mxu0 %v1438
  %1455 = vmatprep.subr.bf16.mxu0 0
  %1456 = vmatpush1.bf16.msra.mxu0 %v1437
  %1457 = vmatprep.subr.bf16.mxu0 0
  %1458 = vmatpush1.bf16.msra.mxu0 %v1436
  %1459 = vmatprep.subr.bf16.mxu0 0
  %1460 = vmatpush1.bf16.msra.mxu0 %v1435
  %1461 = vmatprep.subr.bf16.mxu0 0
  %1462 = vmatpush1.bf16.msra.mxu0 %v1434
  %1463 = vmatprep.subr.bf16.mxu0 0
  %1464 = vmatpush1.bf16.msra.mxu0 %v1433
  %1465 = vmatprep.subr.bf16.mxu0 0
  %1466 = vmatpush2.bf16.msra.mxu0 0
  %1467 = vmatprep.subr.bf16.mxu0 0
  %1468 = vmatpush2.bf16.msra.mxu0 0
  %1469 = vmatprep.subr.bf16.mxu0 0
  %1470 = vmatpush2.bf16.msra.mxu0 0
  %1471 = vmatprep.subr.bf16.mxu0 0
  %1472 = vmatpush2.bf16.msra.mxu0 0
  %1473 = vmatprep.subr.bf16.mxu0 0
  %1474 = vmatpush2.bf16.msra.mxu0 0
  %1475 = vmatprep.subr.bf16.mxu0 0
  %1476 = vmatpush2.bf16.msra.mxu0 0
  %1477 = vmatprep.subr.bf16.mxu0 0
  %1478 = vmatpush2.bf16.msra.mxu0 0
  %1479 = vmatprep.subr.bf16.mxu0 0
  %1480 = vmatpush2.bf16.msra.mxu0 0
  %1481 = vmatprep.mubr.bf16.mxu0 0
  %1482 = vmatmul.mubr.bf16.gmra.mxu0 %v1375
  %v1483 = vpop.f32.mrf.mxu0
  %v1484 = vadd.f32 %v1399, %v1483
  %v1485 = vpop.f32.mrf.mxu0
  %v1486 = vpop.f32.mrf.mxu0
  %v1487 = vadd.f32 %v1399, %v1486
  %v1488 = vpop.f32.mrf.mxu0
  %1489 = vdwg.mxu0
  %v1490 = vpack.c.bf16 %v1487, %v1484
  %s1491 = scalar_lea.vmem %s2, 20
  %v1492 = vld [vmem:[%s1491] sm:$0xf]
  %s1493 = scalar_lea.vmem %s3, 5
  %v1494 = vld [vmem:[%s1493] sm:$0x1]
  %v1496 = vlaneseq
  %v1497 = vshrl.u32 %v1496, 7
  %v1498 = vsub.s32 0, %v1497
  %v1499 = vrot.slane %v1494, %v1498
  %v1502 = vsel %vm59, %v1492, 0
  %1504 = vmatprep.subr.bf16.mxu0 0
  %1505 = vmatpush1.bf16.msra.mxu0 0
  %1506 = vmatprep.subr.bf16.mxu0 0
  %1507 = vmatpush1.bf16.msra.mxu0 0
  %1508 = vmatprep.subr.bf16.mxu0 0
  %1509 = vmatpush1.bf16.msra.mxu0 0
  %1510 = vmatprep.subr.bf16.mxu0 0
  %1511 = vmatpush1.bf16.msra.mxu0 0
  %1512 = vmatprep.subr.bf16.mxu0 0
  %1513 = vmatpush1.bf16.msra.mxu0 0
  %1514 = vmatprep.subr.bf16.mxu0 0
  %1515 = vmatpush1.bf16.msra.mxu0 0
  %1516 = vmatprep.subr.bf16.mxu0 0
  %1517 = vmatpush1.bf16.msra.mxu0 0
  %1518 = vmatprep.subr.bf16.mxu0 0
  %1519 = vmatpush1.bf16.msra.mxu0 %v1502
  %1520 = vmatprep.subr.bf16.mxu0 0
  %1521 = vmatpush2.bf16.msra.mxu0 0
  %1522 = vmatprep.subr.bf16.mxu0 0
  %1523 = vmatpush2.bf16.msra.mxu0 0
  %1524 = vmatprep.subr.bf16.mxu0 0
  %1525 = vmatpush2.bf16.msra.mxu0 0
  %1526 = vmatprep.subr.bf16.mxu0 0
  %1527 = vmatpush2.bf16.msra.mxu0 0
  %1528 = vmatprep.subr.bf16.mxu0 0
  %1529 = vmatpush2.bf16.msra.mxu0 0
  %1530 = vmatprep.subr.bf16.mxu0 0
  %1531 = vmatpush2.bf16.msra.mxu0 0
  %1532 = vmatprep.subr.bf16.mxu0 0
  %1533 = vmatpush2.bf16.msra.mxu0 0
  %1534 = vmatprep.subr.bf16.mxu0 0
  %1535 = vmatpush2.bf16.msra.mxu0 0
  %1536 = vmatprep.mubr.bf16.mxu0 0
  %1537 = vmatmul.mubr.bf16.gmra.mxu0 %v57
  %v1538 = vpop.f32.mrf.mxu0
  %v1539 = vadd.f32 %v1499, %v1538
  %v1540 = vpop.f32.mrf.mxu0
  %v1541 = vpop.f32.mrf.mxu0
  %v1542 = vadd.f32 %v1499, %v1541
  %v1543 = vpop.f32.mrf.mxu0
  %1544 = vdwg.mxu0
  %v1545 = vmax.f32 %v1539, 0.0
  %v1546 = vmax.f32 %v1542, 0.0
  %v1547 = vpack.c.bf16 %v1546, %v1545
  %s1548 = scalar_lea.vmem %s4, 320
  %v1549 = vld [vmem:[%s1548] sm:$0xf]
  %v1550 = vld [vmem:[%s1548 + $0x4] sm:$0xf]
  %v1551 = vld [vmem:[%s1548 + $0x8] sm:$0xf]
  %v1552 = vld [vmem:[%s1548 + $0xc] sm:$0xf]
  %v1553 = vld [vmem:[%s1548 + $0x10] sm:$0xf]
  %v1554 = vld [vmem:[%s1548 + $0x14] sm:$0xf]
  %v1555 = vld [vmem:[%s1548 + $0x18] sm:$0xf]
  %v1556 = vld [vmem:[%s1548 + $0x1c] sm:$0xf]
  %v1557 = vld [vmem:[%s1548 + $0x20] sm:$0xf]
  %v1558 = vld [vmem:[%s1548 + $0x24] sm:$0xf]
  %v1559 = vld [vmem:[%s1548 + $0x28] sm:$0xf]
  %v1560 = vld [vmem:[%s1548 + $0x2c] sm:$0xf]
  %v1561 = vld [vmem:[%s1548 + $0x30] sm:$0xf]
  %v1562 = vld [vmem:[%s1548 + $0x34] sm:$0xf]
  %v1563 = vld [vmem:[%s1548 + $0x38] sm:$0xf]
  %v1564 = vld [vmem:[%s1548 + $0x3c] sm:$0xf]
  %s1565 = scalar_lea.vmem %s5, 5
  %v1566 = vld [vmem:[%s1565] sm:$0x1]
  %v1568 = vlaneseq
  %v1569 = vshrl.u32 %v1568, 7
  %v1570 = vsub.s32 0, %v1569
  %v1571 = vrot.slane %v1566, %v1570
  %v1589 = vunpack.c.l.b16 %v1549
  %v1590 = vunpack.c.l.b16 %v1550
  %v1591 = vunpack.c.l.b16 %v1551
  %v1592 = vunpack.c.l.b16 %v1552
  %v1593 = vunpack.c.l.b16 %v1553
  %v1594 = vunpack.c.l.b16 %v1554
  %v1595 = vunpack.c.l.b16 %v1555
  %v1596 = vunpack.c.l.b16 %v1556
  %v1597 = vunpack.c.l.b16 %v1557
  %v1598 = vunpack.c.l.b16 %v1558
  %v1599 = vunpack.c.l.b16 %v1559
  %v1600 = vunpack.c.l.b16 %v1560
  %v1601 = vunpack.c.l.b16 %v1561
  %v1602 = vunpack.c.l.b16 %v1562
  %v1603 = vunpack.c.l.b16 %v1563
  %v1604 = vunpack.c.l.b16 %v1564
  %v1605 = vpack.c.b16 %v1590, %v1589
  %v1606 = vpack.c.b16 %v1592, %v1591
  %v1607 = vpack.c.b16 %v1594, %v1593
  %v1608 = vpack.c.b16 %v1596, %v1595
  %v1609 = vpack.c.b16 %v1598, %v1597
  %v1610 = vpack.c.b16 %v1600, %v1599
  %v1611 = vpack.c.b16 %v1602, %v1601
  %v1612 = vpack.c.b16 %v1604, %v1603
  %1621 = vmatprep.subr.bf16.mxu0 0
  %1622 = vmatpush1.bf16.msra.mxu0 %v1612
  %1623 = vmatprep.subr.bf16.mxu0 0
  %1624 = vmatpush1.bf16.msra.mxu0 %v1611
  %1625 = vmatprep.subr.bf16.mxu0 0
  %1626 = vmatpush1.bf16.msra.mxu0 %v1610
  %1627 = vmatprep.subr.bf16.mxu0 0
  %1628 = vmatpush1.bf16.msra.mxu0 %v1609
  %1629 = vmatprep.subr.bf16.mxu0 0
  %1630 = vmatpush1.bf16.msra.mxu0 %v1608
  %1631 = vmatprep.subr.bf16.mxu0 0
  %1632 = vmatpush1.bf16.msra.mxu0 %v1607
  %1633 = vmatprep.subr.bf16.mxu0 0
  %1634 = vmatpush1.bf16.msra.mxu0 %v1606
  %1635 = vmatprep.subr.bf16.mxu0 0
  %1636 = vmatpush1.bf16.msra.mxu0 %v1605
  %1637 = vmatprep.subr.bf16.mxu0 0
  %1638 = vmatpush2.bf16.msra.mxu0 0
  %1639 = vmatprep.subr.bf16.mxu0 0
  %1640 = vmatpush2.bf16.msra.mxu0 0
  %1641 = vmatprep.subr.bf16.mxu0 0
  %1642 = vmatpush2.bf16.msra.mxu0 0
  %1643 = vmatprep.subr.bf16.mxu0 0
  %1644 = vmatpush2.bf16.msra.mxu0 0
  %1645 = vmatprep.subr.bf16.mxu0 0
  %1646 = vmatpush2.bf16.msra.mxu0 0
  %1647 = vmatprep.subr.bf16.mxu0 0
  %1648 = vmatpush2.bf16.msra.mxu0 0
  %1649 = vmatprep.subr.bf16.mxu0 0
  %1650 = vmatpush2.bf16.msra.mxu0 0
  %1651 = vmatprep.subr.bf16.mxu0 0
  %1652 = vmatpush2.bf16.msra.mxu0 0
  %1653 = vmatprep.mubr.bf16.mxu0 0
  %1654 = vmatmul.mubr.bf16.gmra.mxu0 %v1547
  %v1655 = vpop.f32.mrf.mxu0
  %v1656 = vadd.f32 %v1571, %v1655
  %v1657 = vpop.f32.mrf.mxu0
  %v1658 = vpop.f32.mrf.mxu0
  %v1659 = vadd.f32 %v1571, %v1658
  %v1660 = vpop.f32.mrf.mxu0
  %1661 = vdwg.mxu0
  %v1662 = vmax.f32 %v1656, 0.0
  %v1663 = vmax.f32 %v1659, 0.0
  %v1664 = vpack.c.bf16 %v1663, %v1662
  %s1665 = scalar_lea.vmem %s6, 320
  %v1666 = vld [vmem:[%s1665] sm:$0xf]
  %v1667 = vld [vmem:[%s1665 + $0x4] sm:$0xf]
  %v1668 = vld [vmem:[%s1665 + $0x8] sm:$0xf]
  %v1669 = vld [vmem:[%s1665 + $0xc] sm:$0xf]
  %v1670 = vld [vmem:[%s1665 + $0x10] sm:$0xf]
  %v1671 = vld [vmem:[%s1665 + $0x14] sm:$0xf]
  %v1672 = vld [vmem:[%s1665 + $0x18] sm:$0xf]
  %v1673 = vld [vmem:[%s1665 + $0x1c] sm:$0xf]
  %v1674 = vld [vmem:[%s1665 + $0x20] sm:$0xf]
  %v1675 = vld [vmem:[%s1665 + $0x24] sm:$0xf]
  %v1676 = vld [vmem:[%s1665 + $0x28] sm:$0xf]
  %v1677 = vld [vmem:[%s1665 + $0x2c] sm:$0xf]
  %v1678 = vld [vmem:[%s1665 + $0x30] sm:$0xf]
  %v1679 = vld [vmem:[%s1665 + $0x34] sm:$0xf]
  %v1680 = vld [vmem:[%s1665 + $0x38] sm:$0xf]
  %v1681 = vld [vmem:[%s1665 + $0x3c] sm:$0xf]
  %s1682 = scalar_lea.vmem %s7, 5
  %v1683 = vld [vmem:[%s1682] sm:$0x1]
  %v1685 = vlaneseq
  %v1686 = vshrl.u32 %v1685, 7
  %v1687 = vsub.s32 0, %v1686
  %v1688 = vrot.slane %v1683, %v1687
  %v1706 = vunpack.c.l.b16 %v1666
  %v1707 = vunpack.c.l.b16 %v1667
  %v1708 = vunpack.c.l.b16 %v1668
  %v1709 = vunpack.c.l.b16 %v1669
  %v1710 = vunpack.c.l.b16 %v1670
  %v1711 = vunpack.c.l.b16 %v1671
  %v1712 = vunpack.c.l.b16 %v1672
  %v1713 = vunpack.c.l.b16 %v1673
  %v1714 = vunpack.c.l.b16 %v1674
  %v1715 = vunpack.c.l.b16 %v1675
  %v1716 = vunpack.c.l.b16 %v1676
  %v1717 = vunpack.c.l.b16 %v1677
  %v1718 = vunpack.c.l.b16 %v1678
  %v1719 = vunpack.c.l.b16 %v1679
  %v1720 = vunpack.c.l.b16 %v1680
  %v1721 = vunpack.c.l.b16 %v1681
  %v1722 = vpack.c.b16 %v1707, %v1706
  %v1723 = vpack.c.b16 %v1709, %v1708
  %v1724 = vpack.c.b16 %v1711, %v1710
  %v1725 = vpack.c.b16 %v1713, %v1712
  %v1726 = vpack.c.b16 %v1715, %v1714
  %v1727 = vpack.c.b16 %v1717, %v1716
  %v1728 = vpack.c.b16 %v1719, %v1718
  %v1729 = vpack.c.b16 %v1721, %v1720
  %1738 = vmatprep.subr.bf16.mxu0 0
  %1739 = vmatpush1.bf16.msra.mxu0 %v1729
  %1740 = vmatprep.subr.bf16.mxu0 0
  %1741 = vmatpush1.bf16.msra.mxu0 %v1728
  %1742 = vmatprep.subr.bf16.mxu0 0
  %1743 = vmatpush1.bf16.msra.mxu0 %v1727
  %1744 = vmatprep.subr.bf16.mxu0 0
  %1745 = vmatpush1.bf16.msra.mxu0 %v1726
  %1746 = vmatprep.subr.bf16.mxu0 0
  %1747 = vmatpush1.bf16.msra.mxu0 %v1725
  %1748 = vmatprep.subr.bf16.mxu0 0
  %1749 = vmatpush1.bf16.msra.mxu0 %v1724
  %1750 = vmatprep.subr.bf16.mxu0 0
  %1751 = vmatpush1.bf16.msra.mxu0 %v1723
  %1752 = vmatprep.subr.bf16.mxu0 0
  %1753 = vmatpush1.bf16.msra.mxu0 %v1722
  %1754 = vmatprep.subr.bf16.mxu0 0
  %1755 = vmatpush2.bf16.msra.mxu0 0
  %1756 = vmatprep.subr.bf16.mxu0 0
  %1757 = vmatpush2.bf16.msra.mxu0 0
  %1758 = vmatprep.subr.bf16.mxu0 0
  %1759 = vmatpush2.bf16.msra.mxu0 0
  %1760 = vmatprep.subr.bf16.mxu0 0
  %1761 = vmatpush2.bf16.msra.mxu0 0
  %1762 = vmatprep.subr.bf16.mxu0 0
  %1763 = vmatpush2.bf16.msra.mxu0 0
  %1764 = vmatprep.subr.bf16.mxu0 0
  %1765 = vmatpush2.bf16.msra.mxu0 0
  %1766 = vmatprep.subr.bf16.mxu0 0
  %1767 = vmatpush2.bf16.msra.mxu0 0
  %1768 = vmatprep.subr.bf16.mxu0 0
  %1769 = vmatpush2.bf16.msra.mxu0 0
  %1770 = vmatprep.mubr.bf16.mxu0 0
  %1771 = vmatmul.mubr.bf16.gmra.mxu0 %v1664
  %v1772 = vpop.f32.mrf.mxu0
  %v1773 = vadd.f32 %v1688, %v1772
  %v1774 = vpop.f32.mrf.mxu0
  %v1775 = vpop.f32.mrf.mxu0
  %v1776 = vadd.f32 %v1688, %v1775
  %v1777 = vpop.f32.mrf.mxu0
  %1778 = vdwg.mxu0
  %v1779 = vpack.c.bf16 %v1776, %v1773
  %s1780 = scalar_lea.vmem %s2, 24
  %v1781 = vld [vmem:[%s1780] sm:$0xf]
  %s1782 = scalar_lea.vmem %s3, 6
  %v1783 = vld [vmem:[%s1782] sm:$0x1]
  %v1785 = vlaneseq
  %v1786 = vshrl.u32 %v1785, 7
  %v1787 = vsub.s32 0, %v1786
  %v1788 = vrot.slane %v1783, %v1787
  %v1791 = vsel %vm59, %v1781, 0
  %1793 = vmatprep.subr.bf16.mxu0 0
  %1794 = vmatpush1.bf16.msra.mxu0 0
  %1795 = vmatprep.subr.bf16.mxu0 0
  %1796 = vmatpush1.bf16.msra.mxu0 0
  %1797 = vmatprep.subr.bf16.mxu0 0
  %1798 = vmatpush1.bf16.msra.mxu0 0
  %1799 = vmatprep.subr.bf16.mxu0 0
  %1800 = vmatpush1.bf16.msra.mxu0 0
  %1801 = vmatprep.subr.bf16.mxu0 0
  %1802 = vmatpush1.bf16.msra.mxu0 0
  %1803 = vmatprep.subr.bf16.mxu0 0
  %1804 = vmatpush1.bf16.msra.mxu0 0
  %1805 = vmatprep.subr.bf16.mxu0 0
  %1806 = vmatpush1.bf16.msra.mxu0 0
  %1807 = vmatprep.subr.bf16.mxu0 0
  %1808 = vmatpush1.bf16.msra.mxu0 %v1791
  %1809 = vmatprep.subr.bf16.mxu0 0
  %1810 = vmatpush2.bf16.msra.mxu0 0
  %1811 = vmatprep.subr.bf16.mxu0 0
  %1812 = vmatpush2.bf16.msra.mxu0 0
  %1813 = vmatprep.subr.bf16.mxu0 0
  %1814 = vmatpush2.bf16.msra.mxu0 0
  %1815 = vmatprep.subr.bf16.mxu0 0
  %1816 = vmatpush2.bf16.msra.mxu0 0
  %1817 = vmatprep.subr.bf16.mxu0 0
  %1818 = vmatpush2.bf16.msra.mxu0 0
  %1819 = vmatprep.subr.bf16.mxu0 0
  %1820 = vmatpush2.bf16.msra.mxu0 0
  %1821 = vmatprep.subr.bf16.mxu0 0
  %1822 = vmatpush2.bf16.msra.mxu0 0
  %1823 = vmatprep.subr.bf16.mxu0 0
  %1824 = vmatpush2.bf16.msra.mxu0 0
  %1825 = vmatprep.mubr.bf16.mxu0 0
  %1826 = vmatmul.mubr.bf16.gmra.mxu0 %v57
  %v1827 = vpop.f32.mrf.mxu0
  %v1828 = vadd.f32 %v1788, %v1827
  %v1829 = vpop.f32.mrf.mxu0
  %v1830 = vpop.f32.mrf.mxu0
  %v1831 = vadd.f32 %v1788, %v1830
  %v1832 = vpop.f32.mrf.mxu0
  %1833 = vdwg.mxu0
  %v1834 = vmax.f32 %v1828, 0.0
  %v1835 = vmax.f32 %v1831, 0.0
  %v1836 = vpack.c.bf16 %v1835, %v1834
  %s1837 = scalar_lea.vmem %s4, 384
  %v1838 = vld [vmem:[%s1837] sm:$0xf]
  %v1839 = vld [vmem:[%s1837 + $0x4] sm:$0xf]
  %v1840 = vld [vmem:[%s1837 + $0x8] sm:$0xf]
  %v1841 = vld [vmem:[%s1837 + $0xc] sm:$0xf]
  %v1842 = vld [vmem:[%s1837 + $0x10] sm:$0xf]
  %v1843 = vld [vmem:[%s1837 + $0x14] sm:$0xf]
  %v1844 = vld [vmem:[%s1837 + $0x18] sm:$0xf]
  %v1845 = vld [vmem:[%s1837 + $0x1c] sm:$0xf]
  %v1846 = vld [vmem:[%s1837 + $0x20] sm:$0xf]
  %v1847 = vld [vmem:[%s1837 + $0x24] sm:$0xf]
  %v1848 = vld [vmem:[%s1837 + $0x28] sm:$0xf]
  %v1849 = vld [vmem:[%s1837 + $0x2c] sm:$0xf]
  %v1850 = vld [vmem:[%s1837 + $0x30] sm:$0xf]
  %v1851 = vld [vmem:[%s1837 + $0x34] sm:$0xf]
  %v1852 = vld [vmem:[%s1837 + $0x38] sm:$0xf]
  %v1853 = vld [vmem:[%s1837 + $0x3c] sm:$0xf]
  %s1854 = scalar_lea.vmem %s5, 6
  %v1855 = vld [vmem:[%s1854] sm:$0x1]
  %v1857 = vlaneseq
  %v1858 = vshrl.u32 %v1857, 7
  %v1859 = vsub.s32 0, %v1858
  %v1860 = vrot.slane %v1855, %v1859
  %v1878 = vunpack.c.l.b16 %v1838
  %v1879 = vunpack.c.l.b16 %v1839
  %v1880 = vunpack.c.l.b16 %v1840
  %v1881 = vunpack.c.l.b16 %v1841
  %v1882 = vunpack.c.l.b16 %v1842
  %v1883 = vunpack.c.l.b16 %v1843
  %v1884 = vunpack.c.l.b16 %v1844
  %v1885 = vunpack.c.l.b16 %v1845
  %v1886 = vunpack.c.l.b16 %v1846
  %v1887 = vunpack.c.l.b16 %v1847
  %v1888 = vunpack.c.l.b16 %v1848
  %v1889 = vunpack.c.l.b16 %v1849
  %v1890 = vunpack.c.l.b16 %v1850
  %v1891 = vunpack.c.l.b16 %v1851
  %v1892 = vunpack.c.l.b16 %v1852
  %v1893 = vunpack.c.l.b16 %v1853
  %v1894 = vpack.c.b16 %v1879, %v1878
  %v1895 = vpack.c.b16 %v1881, %v1880
  %v1896 = vpack.c.b16 %v1883, %v1882
  %v1897 = vpack.c.b16 %v1885, %v1884
  %v1898 = vpack.c.b16 %v1887, %v1886
  %v1899 = vpack.c.b16 %v1889, %v1888
  %v1900 = vpack.c.b16 %v1891, %v1890
  %v1901 = vpack.c.b16 %v1893, %v1892
  %1910 = vmatprep.subr.bf16.mxu0 0
  %1911 = vmatpush1.bf16.msra.mxu0 %v1901
  %1912 = vmatprep.subr.bf16.mxu0 0
  %1913 = vmatpush1.bf16.msra.mxu0 %v1900
  %1914 = vmatprep.subr.bf16.mxu0 0
  %1915 = vmatpush1.bf16.msra.mxu0 %v1899
  %1916 = vmatprep.subr.bf16.mxu0 0
  %1917 = vmatpush1.bf16.msra.mxu0 %v1898
  %1918 = vmatprep.subr.bf16.mxu0 0
  %1919 = vmatpush1.bf16.msra.mxu0 %v1897
  %1920 = vmatprep.subr.bf16.mxu0 0
  %1921 = vmatpush1.bf16.msra.mxu0 %v1896
  %1922 = vmatprep.subr.bf16.mxu0 0
  %1923 = vmatpush1.bf16.msra.mxu0 %v1895
  %1924 = vmatprep.subr.bf16.mxu0 0
  %1925 = vmatpush1.bf16.msra.mxu0 %v1894
  %1926 = vmatprep.subr.bf16.mxu0 0
  %1927 = vmatpush2.bf16.msra.mxu0 0
  %1928 = vmatprep.subr.bf16.mxu0 0
  %1929 = vmatpush2.bf16.msra.mxu0 0
  %1930 = vmatprep.subr.bf16.mxu0 0
  %1931 = vmatpush2.bf16.msra.mxu0 0
  %1932 = vmatprep.subr.bf16.mxu0 0
  %1933 = vmatpush2.bf16.msra.mxu0 0
  %1934 = vmatprep.subr.bf16.mxu0 0
  %1935 = vmatpush2.bf16.msra.mxu0 0
  %1936 = vmatprep.subr.bf16.mxu0 0
  %1937 = vmatpush2.bf16.msra.mxu0 0
  %1938 = vmatprep.subr.bf16.mxu0 0
  %1939 = vmatpush2.bf16.msra.mxu0 0
  %1940 = vmatprep.subr.bf16.mxu0 0
  %1941 = vmatpush2.bf16.msra.mxu0 0
  %1942 = vmatprep.mubr.bf16.mxu0 0
  %1943 = vmatmul.mubr.bf16.gmra.mxu0 %v1836
  %v1944 = vpop.f32.mrf.mxu0
  %v1945 = vadd.f32 %v1860, %v1944
  %v1946 = vpop.f32.mrf.mxu0
  %v1947 = vpop.f32.mrf.mxu0
  %v1948 = vadd.f32 %v1860, %v1947
  %v1949 = vpop.f32.mrf.mxu0
  %1950 = vdwg.mxu0
  %v1951 = vmax.f32 %v1945, 0.0
  %v1952 = vmax.f32 %v1948, 0.0
  %v1953 = vpack.c.bf16 %v1952, %v1951
  %s1954 = scalar_lea.vmem %s6, 384
  %v1955 = vld [vmem:[%s1954] sm:$0xf]
  %v1956 = vld [vmem:[%s1954 + $0x4] sm:$0xf]
  %v1957 = vld [vmem:[%s1954 + $0x8] sm:$0xf]
  %v1958 = vld [vmem:[%s1954 + $0xc] sm:$0xf]
  %v1959 = vld [vmem:[%s1954 + $0x10] sm:$0xf]
  %v1960 = vld [vmem:[%s1954 + $0x14] sm:$0xf]
  %v1961 = vld [vmem:[%s1954 + $0x18] sm:$0xf]
  %v1962 = vld [vmem:[%s1954 + $0x1c] sm:$0xf]
  %v1963 = vld [vmem:[%s1954 + $0x20] sm:$0xf]
  %v1964 = vld [vmem:[%s1954 + $0x24] sm:$0xf]
  %v1965 = vld [vmem:[%s1954 + $0x28] sm:$0xf]
  %v1966 = vld [vmem:[%s1954 + $0x2c] sm:$0xf]
  %v1967 = vld [vmem:[%s1954 + $0x30] sm:$0xf]
  %v1968 = vld [vmem:[%s1954 + $0x34] sm:$0xf]
  %v1969 = vld [vmem:[%s1954 + $0x38] sm:$0xf]
  %v1970 = vld [vmem:[%s1954 + $0x3c] sm:$0xf]
  %s1971 = scalar_lea.vmem %s7, 6
  %v1972 = vld [vmem:[%s1971] sm:$0x1]
  %v1974 = vlaneseq
  %v1975 = vshrl.u32 %v1974, 7
  %v1976 = vsub.s32 0, %v1975
  %v1977 = vrot.slane %v1972, %v1976
  %v1995 = vunpack.c.l.b16 %v1955
  %v1996 = vunpack.c.l.b16 %v1956
  %v1997 = vunpack.c.l.b16 %v1957
  %v1998 = vunpack.c.l.b16 %v1958
  %v1999 = vunpack.c.l.b16 %v1959
  %v2000 = vunpack.c.l.b16 %v1960
  %v2001 = vunpack.c.l.b16 %v1961
  %v2002 = vunpack.c.l.b16 %v1962
  %v2003 = vunpack.c.l.b16 %v1963
  %v2004 = vunpack.c.l.b16 %v1964
  %v2005 = vunpack.c.l.b16 %v1965
  %v2006 = vunpack.c.l.b16 %v1966
  %v2007 = vunpack.c.l.b16 %v1967
  %v2008 = vunpack.c.l.b16 %v1968
  %v2009 = vunpack.c.l.b16 %v1969
  %v2010 = vunpack.c.l.b16 %v1970
  %v2011 = vpack.c.b16 %v1996, %v1995
  %v2012 = vpack.c.b16 %v1998, %v1997
  %v2013 = vpack.c.b16 %v2000, %v1999
  %v2014 = vpack.c.b16 %v2002, %v2001
  %v2015 = vpack.c.b16 %v2004, %v2003
  %v2016 = vpack.c.b16 %v2006, %v2005
  %v2017 = vpack.c.b16 %v2008, %v2007
  %v2018 = vpack.c.b16 %v2010, %v2009
  %2027 = vmatprep.subr.bf16.mxu0 0
  %2028 = vmatpush1.bf16.msra.mxu0 %v2018
  %2029 = vmatprep.subr.bf16.mxu0 0
  %2030 = vmatpush1.bf16.msra.mxu0 %v2017
  %2031 = vmatprep.subr.bf16.mxu0 0
  %2032 = vmatpush1.bf16.msra.mxu0 %v2016
  %2033 = vmatprep.subr.bf16.mxu0 0
  %2034 = vmatpush1.bf16.msra.mxu0 %v2015
  %2035 = vmatprep.subr.bf16.mxu0 0
  %2036 = vmatpush1.bf16.msra.mxu0 %v2014
  %2037 = vmatprep.subr.bf16.mxu0 0
  %2038 = vmatpush1.bf16.msra.mxu0 %v2013
  %2039 = vmatprep.subr.bf16.mxu0 0
  %2040 = vmatpush1.bf16.msra.mxu0 %v2012
  %2041 = vmatprep.subr.bf16.mxu0 0
  %2042 = vmatpush1.bf16.msra.mxu0 %v2011
  %2043 = vmatprep.subr.bf16.mxu0 0
  %2044 = vmatpush2.bf16.msra.mxu0 0
  %2045 = vmatprep.subr.bf16.mxu0 0
  %2046 = vmatpush2.bf16.msra.mxu0 0
  %2047 = vmatprep.subr.bf16.mxu0 0
  %2048 = vmatpush2.bf16.msra.mxu0 0
  %2049 = vmatprep.subr.bf16.mxu0 0
  %2050 = vmatpush2.bf16.msra.mxu0 0
  %2051 = vmatprep.subr.bf16.mxu0 0
  %2052 = vmatpush2.bf16.msra.mxu0 0
  %2053 = vmatprep.subr.bf16.mxu0 0
  %2054 = vmatpush2.bf16.msra.mxu0 0
  %2055 = vmatprep.subr.bf16.mxu0 0
  %2056 = vmatpush2.bf16.msra.mxu0 0
  %2057 = vmatprep.subr.bf16.mxu0 0
  %2058 = vmatpush2.bf16.msra.mxu0 0
  %2059 = vmatprep.mubr.bf16.mxu0 0
  %2060 = vmatmul.mubr.bf16.gmra.mxu0 %v1953
  %v2061 = vpop.f32.mrf.mxu0
  %v2062 = vadd.f32 %v1977, %v2061
  %v2063 = vpop.f32.mrf.mxu0
  %v2064 = vpop.f32.mrf.mxu0
  %v2065 = vadd.f32 %v1977, %v2064
  %v2066 = vpop.f32.mrf.mxu0
  %2067 = vdwg.mxu0
  %v2068 = vpack.c.bf16 %v2065, %v2062
  %s2069 = scalar_lea.vmem %s2, 28
  %v2070 = vld [vmem:[%s2069] sm:$0xf]
  %s2071 = scalar_lea.vmem %s3, 7
  %v2072 = vld [vmem:[%s2071] sm:$0x1]
  %v2074 = vlaneseq
  %v2075 = vshrl.u32 %v2074, 7
  %v2076 = vsub.s32 0, %v2075
  %v2077 = vrot.slane %v2072, %v2076
  %v2080 = vsel %vm59, %v2070, 0
  %2082 = vmatprep.subr.bf16.mxu0 0
  %2083 = vmatpush1.bf16.msra.mxu0 0
  %2084 = vmatprep.subr.bf16.mxu0 0
  %2085 = vmatpush1.bf16.msra.mxu0 0
  %2086 = vmatprep.subr.bf16.mxu0 0
  %2087 = vmatpush1.bf16.msra.mxu0 0
  %2088 = vmatprep.subr.bf16.mxu0 0
  %2089 = vmatpush1.bf16.msra.mxu0 0
  %2090 = vmatprep.subr.bf16.mxu0 0
  %2091 = vmatpush1.bf16.msra.mxu0 0
  %2092 = vmatprep.subr.bf16.mxu0 0
  %2093 = vmatpush1.bf16.msra.mxu0 0
  %2094 = vmatprep.subr.bf16.mxu0 0
  %2095 = vmatpush1.bf16.msra.mxu0 0
  %2096 = vmatprep.subr.bf16.mxu0 0
  %2097 = vmatpush1.bf16.msra.mxu0 %v2080
  %2098 = vmatprep.subr.bf16.mxu0 0
  %2099 = vmatpush2.bf16.msra.mxu0 0
  %2100 = vmatprep.subr.bf16.mxu0 0
  %2101 = vmatpush2.bf16.msra.mxu0 0
  %2102 = vmatprep.subr.bf16.mxu0 0
  %2103 = vmatpush2.bf16.msra.mxu0 0
  %2104 = vmatprep.subr.bf16.mxu0 0
  %2105 = vmatpush2.bf16.msra.mxu0 0
  %2106 = vmatprep.subr.bf16.mxu0 0
  %2107 = vmatpush2.bf16.msra.mxu0 0
  %2108 = vmatprep.subr.bf16.mxu0 0
  %2109 = vmatpush2.bf16.msra.mxu0 0
  %2110 = vmatprep.subr.bf16.mxu0 0
  %2111 = vmatpush2.bf16.msra.mxu0 0
  %2112 = vmatprep.subr.bf16.mxu0 0
  %2113 = vmatpush2.bf16.msra.mxu0 0
  %2114 = vmatprep.mubr.bf16.mxu0 0
  %2115 = vmatmul.mubr.bf16.gmra.mxu0 %v57
  %v2116 = vpop.f32.mrf.mxu0
  %v2117 = vadd.f32 %v2077, %v2116
  %v2118 = vpop.f32.mrf.mxu0
  %v2119 = vpop.f32.mrf.mxu0
  %v2120 = vadd.f32 %v2077, %v2119
  %v2121 = vpop.f32.mrf.mxu0
  %2122 = vdwg.mxu0
  %v2123 = vmax.f32 %v2117, 0.0
  %v2124 = vmax.f32 %v2120, 0.0
  %v2125 = vpack.c.bf16 %v2124, %v2123
  %s2126 = scalar_lea.vmem %s4, 448
  %v2127 = vld [vmem:[%s2126] sm:$0xf]
  %v2128 = vld [vmem:[%s2126 + $0x4] sm:$0xf]
  %v2129 = vld [vmem:[%s2126 + $0x8] sm:$0xf]
  %v2130 = vld [vmem:[%s2126 + $0xc] sm:$0xf]
  %v2131 = vld [vmem:[%s2126 + $0x10] sm:$0xf]
  %v2132 = vld [vmem:[%s2126 + $0x14] sm:$0xf]
  %v2133 = vld [vmem:[%s2126 + $0x18] sm:$0xf]
  %v2134 = vld [vmem:[%s2126 + $0x1c] sm:$0xf]
  %v2135 = vld [vmem:[%s2126 + $0x20] sm:$0xf]
  %v2136 = vld [vmem:[%s2126 + $0x24] sm:$0xf]
  %v2137 = vld [vmem:[%s2126 + $0x28] sm:$0xf]
  %v2138 = vld [vmem:[%s2126 + $0x2c] sm:$0xf]
  %v2139 = vld [vmem:[%s2126 + $0x30] sm:$0xf]
  %v2140 = vld [vmem:[%s2126 + $0x34] sm:$0xf]
  %v2141 = vld [vmem:[%s2126 + $0x38] sm:$0xf]
  %v2142 = vld [vmem:[%s2126 + $0x3c] sm:$0xf]
  %s2143 = scalar_lea.vmem %s5, 7
  %v2144 = vld [vmem:[%s2143] sm:$0x1]
  %v2146 = vlaneseq
  %v2147 = vshrl.u32 %v2146, 7
  %v2148 = vsub.s32 0, %v2147
  %v2149 = vrot.slane %v2144, %v2148
  %v2167 = vunpack.c.l.b16 %v2127
  %v2168 = vunpack.c.l.b16 %v2128
  %v2169 = vunpack.c.l.b16 %v2129
  %v2170 = vunpack.c.l.b16 %v2130
  %v2171 = vunpack.c.l.b16 %v2131
  %v2172 = vunpack.c.l.b16 %v2132
  %v2173 = vunpack.c.l.b16 %v2133
  %v2174 = vunpack.c.l.b16 %v2134
  %v2175 = vunpack.c.l.b16 %v2135
  %v2176 = vunpack.c.l.b16 %v2136
  %v2177 = vunpack.c.l.b16 %v2137
  %v2178 = vunpack.c.l.b16 %v2138
  %v2179 = vunpack.c.l.b16 %v2139
  %v2180 = vunpack.c.l.b16 %v2140
  %v2181 = vunpack.c.l.b16 %v2141
  %v2182 = vunpack.c.l.b16 %v2142
  %v2183 = vpack.c.b16 %v2168, %v2167
  %v2184 = vpack.c.b16 %v2170, %v2169
  %v2185 = vpack.c.b16 %v2172, %v2171
  %v2186 = vpack.c.b16 %v2174, %v2173
  %v2187 = vpack.c.b16 %v2176, %v2175
  %v2188 = vpack.c.b16 %v2178, %v2177
  %v2189 = vpack.c.b16 %v2180, %v2179
  %v2190 = vpack.c.b16 %v2182, %v2181
  %2199 = vmatprep.subr.bf16.mxu0 0
  %2200 = vmatpush1.bf16.msra.mxu0 %v2190
  %2201 = vmatprep.subr.bf16.mxu0 0
  %2202 = vmatpush1.bf16.msra.mxu0 %v2189
  %2203 = vmatprep.subr.bf16.mxu0 0
  %2204 = vmatpush1.bf16.msra.mxu0 %v2188
  %2205 = vmatprep.subr.bf16.mxu0 0
  %2206 = vmatpush1.bf16.msra.mxu0 %v2187
  %2207 = vmatprep.subr.bf16.mxu0 0
  %2208 = vmatpush1.bf16.msra.mxu0 %v2186
  %2209 = vmatprep.subr.bf16.mxu0 0
  %2210 = vmatpush1.bf16.msra.mxu0 %v2185
  %2211 = vmatprep.subr.bf16.mxu0 0
  %2212 = vmatpush1.bf16.msra.mxu0 %v2184
  %2213 = vmatprep.subr.bf16.mxu0 0
  %2214 = vmatpush1.bf16.msra.mxu0 %v2183
  %2215 = vmatprep.subr.bf16.mxu0 0
  %2216 = vmatpush2.bf16.msra.mxu0 0
  %2217 = vmatprep.subr.bf16.mxu0 0
  %2218 = vmatpush2.bf16.msra.mxu0 0
  %2219 = vmatprep.subr.bf16.mxu0 0
  %2220 = vmatpush2.bf16.msra.mxu0 0
  %2221 = vmatprep.subr.bf16.mxu0 0
  %2222 = vmatpush2.bf16.msra.mxu0 0
  %2223 = vmatprep.subr.bf16.mxu0 0
  %2224 = vmatpush2.bf16.msra.mxu0 0
  %2225 = vmatprep.subr.bf16.mxu0 0
  %2226 = vmatpush2.bf16.msra.mxu0 0
  %2227 = vmatprep.subr.bf16.mxu0 0
  %2228 = vmatpush2.bf16.msra.mxu0 0
  %2229 = vmatprep.subr.bf16.mxu0 0
  %2230 = vmatpush2.bf16.msra.mxu0 0
  %2231 = vmatprep.mubr.bf16.mxu0 0
  %2232 = vmatmul.mubr.bf16.gmra.mxu0 %v2125
  %v2233 = vpop.f32.mrf.mxu0
  %v2234 = vadd.f32 %v2149, %v2233
  %v2235 = vpop.f32.mrf.mxu0
  %v2236 = vpop.f32.mrf.mxu0
  %v2237 = vadd.f32 %v2149, %v2236
  %v2238 = vpop.f32.mrf.mxu0
  %2239 = vdwg.mxu0
  %v2240 = vmax.f32 %v2234, 0.0
  %v2241 = vmax.f32 %v2237, 0.0
  %v2242 = vpack.c.bf16 %v2241, %v2240
  %s2243 = scalar_lea.vmem %s6, 448
  %v2244 = vld [vmem:[%s2243] sm:$0xf]
  %v2245 = vld [vmem:[%s2243 + $0x4] sm:$0xf]
  %v2246 = vld [vmem:[%s2243 + $0x8] sm:$0xf]
  %v2247 = vld [vmem:[%s2243 + $0xc] sm:$0xf]
  %v2248 = vld [vmem:[%s2243 + $0x10] sm:$0xf]
  %v2249 = vld [vmem:[%s2243 + $0x14] sm:$0xf]
  %v2250 = vld [vmem:[%s2243 + $0x18] sm:$0xf]
  %v2251 = vld [vmem:[%s2243 + $0x1c] sm:$0xf]
  %v2252 = vld [vmem:[%s2243 + $0x20] sm:$0xf]
  %v2253 = vld [vmem:[%s2243 + $0x24] sm:$0xf]
  %v2254 = vld [vmem:[%s2243 + $0x28] sm:$0xf]
  %v2255 = vld [vmem:[%s2243 + $0x2c] sm:$0xf]
  %v2256 = vld [vmem:[%s2243 + $0x30] sm:$0xf]
  %v2257 = vld [vmem:[%s2243 + $0x34] sm:$0xf]
  %v2258 = vld [vmem:[%s2243 + $0x38] sm:$0xf]
  %v2259 = vld [vmem:[%s2243 + $0x3c] sm:$0xf]
  %s2260 = scalar_lea.vmem %s7, 7
  %v2261 = vld [vmem:[%s2260] sm:$0x1]
  %v2263 = vlaneseq
  %v2264 = vshrl.u32 %v2263, 7
  %v2265 = vsub.s32 0, %v2264
  %v2266 = vrot.slane %v2261, %v2265
  %v2284 = vunpack.c.l.b16 %v2244
  %v2285 = vunpack.c.l.b16 %v2245
  %v2286 = vunpack.c.l.b16 %v2246
  %v2287 = vunpack.c.l.b16 %v2247
  %v2288 = vunpack.c.l.b16 %v2248
  %v2289 = vunpack.c.l.b16 %v2249
  %v2290 = vunpack.c.l.b16 %v2250
  %v2291 = vunpack.c.l.b16 %v2251
  %v2292 = vunpack.c.l.b16 %v2252
  %v2293 = vunpack.c.l.b16 %v2253
  %v2294 = vunpack.c.l.b16 %v2254
  %v2295 = vunpack.c.l.b16 %v2255
  %v2296 = vunpack.c.l.b16 %v2256
  %v2297 = vunpack.c.l.b16 %v2257
  %v2298 = vunpack.c.l.b16 %v2258
  %v2299 = vunpack.c.l.b16 %v2259
  %v2300 = vpack.c.b16 %v2285, %v2284
  %v2301 = vpack.c.b16 %v2287, %v2286
  %v2302 = vpack.c.b16 %v2289, %v2288
  %v2303 = vpack.c.b16 %v2291, %v2290
  %v2304 = vpack.c.b16 %v2293, %v2292
  %v2305 = vpack.c.b16 %v2295, %v2294
  %v2306 = vpack.c.b16 %v2297, %v2296
  %v2307 = vpack.c.b16 %v2299, %v2298
  %2316 = vmatprep.subr.bf16.mxu0 0
  %2317 = vmatpush1.bf16.msra.mxu0 %v2307
  %2318 = vmatprep.subr.bf16.mxu0 0
  %2319 = vmatpush1.bf16.msra.mxu0 %v2306
  %2320 = vmatprep.subr.bf16.mxu0 0
  %2321 = vmatpush1.bf16.msra.mxu0 %v2305
  %2322 = vmatprep.subr.bf16.mxu0 0
  %2323 = vmatpush1.bf16.msra.mxu0 %v2304
  %2324 = vmatprep.subr.bf16.mxu0 0
  %2325 = vmatpush1.bf16.msra.mxu0 %v2303
  %2326 = vmatprep.subr.bf16.mxu0 0
  %2327 = vmatpush1.bf16.msra.mxu0 %v2302
  %2328 = vmatprep.subr.bf16.mxu0 0
  %2329 = vmatpush1.bf16.msra.mxu0 %v2301
  %2330 = vmatprep.subr.bf16.mxu0 0
  %2331 = vmatpush1.bf16.msra.mxu0 %v2300
  %2332 = vmatprep.subr.bf16.mxu0 0
  %2333 = vmatpush2.bf16.msra.mxu0 0
  %2334 = vmatprep.subr.bf16.mxu0 0
  %2335 = vmatpush2.bf16.msra.mxu0 0
  %2336 = vmatprep.subr.bf16.mxu0 0
  %2337 = vmatpush2.bf16.msra.mxu0 0
  %2338 = vmatprep.subr.bf16.mxu0 0
  %2339 = vmatpush2.bf16.msra.mxu0 0
  %2340 = vmatprep.subr.bf16.mxu0 0
  %2341 = vmatpush2.bf16.msra.mxu0 0
  %2342 = vmatprep.subr.bf16.mxu0 0
  %2343 = vmatpush2.bf16.msra.mxu0 0
  %2344 = vmatprep.subr.bf16.mxu0 0
  %2345 = vmatpush2.bf16.msra.mxu0 0
  %2346 = vmatprep.subr.bf16.mxu0 0
  %2347 = vmatpush2.bf16.msra.mxu0 0
  %2348 = vmatprep.mubr.bf16.mxu0 0
  %2349 = vmatmul.mubr.bf16.gmra.mxu0 %v2242
  %v2350 = vpop.f32.mrf.mxu0
  %v2351 = vadd.f32 %v2266, %v2350
  %v2352 = vpop.f32.mrf.mxu0
  %v2353 = vpop.f32.mrf.mxu0
  %v2354 = vadd.f32 %v2266, %v2353
  %v2355 = vpop.f32.mrf.mxu0
  %2356 = vdwg.mxu0
  %v2357 = vpack.c.bf16 %v2354, %v2351
  %v2358 = vld [vmem:[%s8] sm:$0xf]
  %v2359 = vld [vmem:[%s8 + $0x4] sm:$0xf]
  %v2360 = vld [vmem:[%s8 + $0x8] sm:$0xf]
  %v2361 = vld [vmem:[%s8 + $0xc] sm:$0xf]
  %v2362 = vld [vmem:[%s8 + $0x10] sm:$0xf]
  %v2363 = vld [vmem:[%s8 + $0x14] sm:$0xf]
  %v2364 = vld [vmem:[%s8 + $0x18] sm:$0xf]
  %v2365 = vld [vmem:[%s8 + $0x1c] sm:$0xf]
  %v2366 = vld [vmem:[%s9] sm:$0x1]
  %v2368 = vlaneseq
  %v2369 = vshrl.u32 %v2368, 7
  %v2370 = vsub.s32 0, %v2369
  %v2371 = vrot.slane %v2366, %v2370
  %v2381 = vunpack.c.l.b16 %v2358
  %v2382 = vunpack.c.l.b16 %v2359
  %v2383 = vunpack.c.l.b16 %v2360
  %v2384 = vunpack.c.l.b16 %v2361
  %v2385 = vunpack.c.l.b16 %v2362
  %v2386 = vunpack.c.l.b16 %v2363
  %v2387 = vunpack.c.l.b16 %v2364
  %v2388 = vunpack.c.l.b16 %v2365
  %v2389 = vpack.c.b16 %v2382, %v2381
  %v2390 = vpack.c.b16 %v2384, %v2383
  %v2391 = vpack.c.b16 %v2386, %v2385
  %v2392 = vpack.c.b16 %v2388, %v2387
  %vm2397 = vcmask 523264
  %v2399 = vsel %vm2397, %v334, 0
  %v2402 = vsel %vm2397, %v623, 0
  %v2405 = vsel %vm2397, %v912, 0
  %v2408 = vsel %vm2397, %v1201, 0
  %v2411 = vsel %vm2397, %v1490, 0
  %v2414 = vsel %vm2397, %v1779, 0
  %v2417 = vsel %vm2397, %v2068, 0
  %v2420 = vsel %vm2397, %v2357, 0
  %2422 = vmatprep.subr.bf16.mxu0 0
  %2423 = vmatpush1.bf16.msra.mxu0 0
  %2424 = vmatprep.subr.bf16.mxu0 0
  %2425 = vmatpush1.bf16.msra.mxu0 0
  %2426 = vmatprep.subr.bf16.mxu0 0
  %2427 = vmatpush1.bf16.msra.mxu0 0
  %2428 = vmatprep.subr.bf16.mxu0 0
  %2429 = vmatpush1.bf16.msra.mxu0 0
  %2430 = vmatprep.subr.bf16.mxu0 0
  %2431 = vmatpush1.bf16.msra.mxu0 %v2392
  %2432 = vmatprep.subr.bf16.mxu0 0
  %2433 = vmatpush1.bf16.msra.mxu0 %v2391
  %2434 = vmatprep.subr.bf16.mxu0 0
  %2435 = vmatpush1.bf16.msra.mxu0 %v2390
  %2436 = vmatprep.subr.bf16.mxu0 0
  %2437 = vmatpush1.bf16.msra.mxu0 %v2389
  %2438 = vmatprep.subr.bf16.mxu0 0
  %2439 = vmatpush2.bf16.msra.mxu0 0
  %2440 = vmatprep.subr.bf16.mxu0 0
  %2441 = vmatpush2.bf16.msra.mxu0 0
  %2442 = vmatprep.subr.bf16.mxu0 0
  %2443 = vmatpush2.bf16.msra.mxu0 0
  %2444 = vmatprep.subr.bf16.mxu0 0
  %2445 = vmatpush2.bf16.msra.mxu0 0
  %2446 = vmatprep.subr.bf16.mxu0 0
  %2447 = vmatpush2.bf16.msra.mxu0 0
  %2448 = vmatprep.subr.bf16.mxu0 0
  %2449 = vmatpush2.bf16.msra.mxu0 0
  %2450 = vmatprep.subr.bf16.mxu0 0
  %2451 = vmatpush2.bf16.msra.mxu0 0
  %2452 = vmatprep.subr.bf16.mxu0 0
  %2453 = vmatpush2.bf16.msra.mxu0 0
  %2454 = vmatprep.mubr.bf16.mxu0 0
  %2455 = vmatmul.mubr.bf16.gmra.mxu0 %v2399
  %v2456 = vpop.f32.mrf.mxu0
  %v2457 = vadd.f32 %v2371, %v2456
  %v2458 = vpop.f32.mrf.mxu0
  %v2459 = vpop.f32.mrf.mxu0
  %v2460 = vadd.f32 %v2371, %v2459
  %v2461 = vpop.f32.mrf.mxu0
  %2462 = vmatprep.mubr.bf16.mxu0 0
  %2463 = vmatmul.mubr.bf16.gmra.mxu0 %v2402
  %v2464 = vpop.f32.mrf.mxu0
  %v2465 = vadd.f32 %v2371, %v2464
  %v2466 = vpop.f32.mrf.mxu0
  %v2467 = vpop.f32.mrf.mxu0
  %v2468 = vadd.f32 %v2371, %v2467
  %v2469 = vpop.f32.mrf.mxu0
  %2470 = vmatprep.mubr.bf16.mxu0 0
  %2471 = vmatmul.mubr.bf16.gmra.mxu0 %v2405
  %v2472 = vpop.f32.mrf.mxu0
  %v2473 = vadd.f32 %v2371, %v2472
  %v2474 = vpop.f32.mrf.mxu0
  %v2475 = vpop.f32.mrf.mxu0
  %v2476 = vadd.f32 %v2371, %v2475
  %v2477 = vpop.f32.mrf.mxu0
  %2478 = vmatprep.mubr.bf16.mxu0 0
  %2479 = vmatmul.mubr.bf16.gmra.mxu0 %v2408
  %v2480 = vpop.f32.mrf.mxu0
  %v2481 = vadd.f32 %v2371, %v2480
  %v2482 = vpop.f32.mrf.mxu0
  %v2483 = vpop.f32.mrf.mxu0
  %v2484 = vadd.f32 %v2371, %v2483
  %v2485 = vpop.f32.mrf.mxu0
  %2486 = vmatprep.mubr.bf16.mxu0 0
  %2487 = vmatmul.mubr.bf16.gmra.mxu0 %v2411
  %v2488 = vpop.f32.mrf.mxu0
  %v2489 = vadd.f32 %v2371, %v2488
  %v2490 = vpop.f32.mrf.mxu0
  %v2491 = vpop.f32.mrf.mxu0
  %v2492 = vadd.f32 %v2371, %v2491
  %v2493 = vpop.f32.mrf.mxu0
  %2494 = vmatprep.mubr.bf16.mxu0 0
  %2495 = vmatmul.mubr.bf16.gmra.mxu0 %v2414
  %v2496 = vpop.f32.mrf.mxu0
  %v2497 = vadd.f32 %v2371, %v2496
  %v2498 = vpop.f32.mrf.mxu0
  %v2499 = vpop.f32.mrf.mxu0
  %v2500 = vadd.f32 %v2371, %v2499
  %v2501 = vpop.f32.mrf.mxu0
  %2502 = vmatprep.mubr.bf16.mxu0 0
  %2503 = vmatmul.mubr.bf16.gmra.mxu0 %v2417
  %v2504 = vpop.f32.mrf.mxu0
  %v2505 = vadd.f32 %v2371, %v2504
  %v2506 = vpop.f32.mrf.mxu0
  %v2507 = vpop.f32.mrf.mxu0
  %v2508 = vadd.f32 %v2371, %v2507
  %v2509 = vpop.f32.mrf.mxu0
  %2510 = vmatprep.mubr.bf16.mxu0 0
  %2511 = vmatmul.mubr.bf16.gmra.mxu0 %v2420
  %v2512 = vpop.f32.mrf.mxu0
  %v2513 = vadd.f32 %v2371, %v2512
  %v2514 = vpop.f32.mrf.mxu0
  %v2515 = vpop.f32.mrf.mxu0
  %v2516 = vadd.f32 %v2371, %v2515
  %v2517 = vpop.f32.mrf.mxu0
  %2518 = vdwg.mxu0
  %v2519 = vmax.f32 %v2457, 0.0
  %v2520 = vmax.f32 %v2460, 0.0
  %v2521 = vmax.f32 %v2465, 0.0
  %v2522 = vmax.f32 %v2468, 0.0
  %v2523 = vmax.f32 %v2473, 0.0
  %v2524 = vmax.f32 %v2476, 0.0
  %v2525 = vmax.f32 %v2481, 0.0
  %v2526 = vmax.f32 %v2484, 0.0
  %v2527 = vmax.f32 %v2489, 0.0
  %v2528 = vmax.f32 %v2492, 0.0
  %v2529 = vmax.f32 %v2497, 0.0
  %v2530 = vmax.f32 %v2500, 0.0
  %v2531 = vmax.f32 %v2505, 0.0
  %v2532 = vmax.f32 %v2508, 0.0
  %v2533 = vmax.f32 %v2513, 0.0
  %v2534 = vmax.f32 %v2516, 0.0
  %v2535 = vpack.c.bf16 %v2520, %v2519
  %v2536 = vpack.c.bf16 %v2522, %v2521
  %v2537 = vpack.c.bf16 %v2524, %v2523
  %v2538 = vpack.c.bf16 %v2526, %v2525
  %v2539 = vpack.c.bf16 %v2528, %v2527
  %v2540 = vpack.c.bf16 %v2530, %v2529
  %v2541 = vpack.c.bf16 %v2532, %v2531
  %v2542 = vpack.c.bf16 %v2534, %v2533
  %v2543 = vld [vmem:[%s10] sm:$0xf]
  %v2544 = vld [vmem:[%s10 + $0x4] sm:$0xf]
  %v2545 = vld [vmem:[%s10 + $0x8] sm:$0xf]
  %v2546 = vld [vmem:[%s10 + $0xc] sm:$0xf]
  %v2547 = vld [vmem:[%s10 + $0x10] sm:$0xf]
  %v2548 = vld [vmem:[%s10 + $0x14] sm:$0xf]
  %v2549 = vld [vmem:[%s10 + $0x18] sm:$0xf]
  %v2550 = vld [vmem:[%s10 + $0x1c] sm:$0xf]
  %v2551 = vld [vmem:[%s10 + $0x20] sm:$0xf]
  %v2552 = vld [vmem:[%s10 + $0x24] sm:$0xf]
  %v2553 = vld [vmem:[%s10 + $0x28] sm:$0xf]
  %v2554 = vld [vmem:[%s10 + $0x2c] sm:$0xf]
  %v2555 = vld [vmem:[%s10 + $0x30] sm:$0xf]
  %v2556 = vld [vmem:[%s10 + $0x34] sm:$0xf]
  %v2557 = vld [vmem:[%s10 + $0x38] sm:$0xf]
  %v2558 = vld [vmem:[%s10 + $0x3c] sm:$0xf]
  %v2559 = vld [vmem:[%s11] sm:$0x1]
  %v2561 = vlaneseq
  %v2562 = vshrl.u32 %v2561, 7
  %v2563 = vsub.s32 0, %v2562
  %v2564 = vrot.slane %v2559, %v2563
  %v2582 = vunpack.c.l.b16 %v2543
  %v2583 = vunpack.c.l.b16 %v2544
  %v2584 = vunpack.c.l.b16 %v2545
  %v2585 = vunpack.c.l.b16 %v2546
  %v2586 = vunpack.c.l.b16 %v2547
  %v2587 = vunpack.c.l.b16 %v2548
  %v2588 = vunpack.c.l.b16 %v2549
  %v2589 = vunpack.c.l.b16 %v2550
  %v2590 = vunpack.c.l.b16 %v2551
  %v2591 = vunpack.c.l.b16 %v2552
  %v2592 = vunpack.c.l.b16 %v2553
  %v2593 = vunpack.c.l.b16 %v2554
  %v2594 = vunpack.c.l.b16 %v2555
  %v2595 = vunpack.c.l.b16 %v2556
  %v2596 = vunpack.c.l.b16 %v2557
  %v2597 = vunpack.c.l.b16 %v2558
  %v2598 = vpack.c.b16 %v2583, %v2582
  %v2599 = vpack.c.b16 %v2585, %v2584
  %v2600 = vpack.c.b16 %v2587, %v2586
  %v2601 = vpack.c.b16 %v2589, %v2588
  %v2602 = vpack.c.b16 %v2591, %v2590
  %v2603 = vpack.c.b16 %v2593, %v2592
  %v2604 = vpack.c.b16 %v2595, %v2594
  %v2605 = vpack.c.b16 %v2597, %v2596
  %2614 = vmatprep.subr.bf16.mxu0 0
  %2615 = vmatpush1.bf16.msra.mxu0 %v2605
  %2616 = vmatprep.subr.bf16.mxu0 0
  %2617 = vmatpush1.bf16.msra.mxu0 %v2604
  %2618 = vmatprep.subr.bf16.mxu0 0
  %2619 = vmatpush1.bf16.msra.mxu0 %v2603
  %2620 = vmatprep.subr.bf16.mxu0 0
  %2621 = vmatpush1.bf16.msra.mxu0 %v2602
  %2622 = vmatprep.subr.bf16.mxu0 0
  %2623 = vmatpush1.bf16.msra.mxu0 %v2601
  %2624 = vmatprep.subr.bf16.mxu0 0
  %2625 = vmatpush1.bf16.msra.mxu0 %v2600
  %2626 = vmatprep.subr.bf16.mxu0 0
  %2627 = vmatpush1.bf16.msra.mxu0 %v2599
  %2628 = vmatprep.subr.bf16.mxu0 0
  %2629 = vmatpush1.bf16.msra.mxu0 %v2598
  %2630 = vmatprep.subr.bf16.mxu0 0
  %2631 = vmatpush2.bf16.msra.mxu0 0
  %2632 = vmatprep.subr.bf16.mxu0 0
  %2633 = vmatpush2.bf16.msra.mxu0 0
  %2634 = vmatprep.subr.bf16.mxu0 0
  %2635 = vmatpush2.bf16.msra.mxu0 0
  %2636 = vmatprep.subr.bf16.mxu0 0
  %2637 = vmatpush2.bf16.msra.mxu0 0
  %2638 = vmatprep.subr.bf16.mxu0 0
  %2639 = vmatpush2.bf16.msra.mxu0 0
  %2640 = vmatprep.subr.bf16.mxu0 0
  %2641 = vmatpush2.bf16.msra.mxu0 0
  %2642 = vmatprep.subr.bf16.mxu0 0
  %2643 = vmatpush2.bf16.msra.mxu0 0
  %2644 = vmatprep.subr.bf16.mxu0 0
  %2645 = vmatpush2.bf16.msra.mxu0 0
  %2646 = vmatprep.mubr.bf16.mxu0 0
  %2647 = vmatmul.mubr.bf16.gmra.mxu0 %v2535
  %v2648 = vpop.f32.mrf.mxu0
  %v2649 = vadd.f32 %v2564, %v2648
  %v2650 = vpop.f32.mrf.mxu0
  %v2651 = vpop.f32.mrf.mxu0
  %v2652 = vadd.f32 %v2564, %v2651
  %v2653 = vpop.f32.mrf.mxu0
  %2654 = vmatprep.mubr.bf16.mxu0 0
  %2655 = vmatmul.mubr.bf16.gmra.mxu0 %v2536
  %v2656 = vpop.f32.mrf.mxu0
  %v2657 = vadd.f32 %v2564, %v2656
  %v2658 = vpop.f32.mrf.mxu0
  %v2659 = vpop.f32.mrf.mxu0
  %v2660 = vadd.f32 %v2564, %v2659
  %v2661 = vpop.f32.mrf.mxu0
  %2662 = vmatprep.mubr.bf16.mxu0 0
  %2663 = vmatmul.mubr.bf16.gmra.mxu0 %v2537
  %v2664 = vpop.f32.mrf.mxu0
  %v2665 = vadd.f32 %v2564, %v2664
  %v2666 = vpop.f32.mrf.mxu0
  %v2667 = vpop.f32.mrf.mxu0
  %v2668 = vadd.f32 %v2564, %v2667
  %v2669 = vpop.f32.mrf.mxu0
  %2670 = vmatprep.mubr.bf16.mxu0 0
  %2671 = vmatmul.mubr.bf16.gmra.mxu0 %v2538
  %v2672 = vpop.f32.mrf.mxu0
  %v2673 = vadd.f32 %v2564, %v2672
  %v2674 = vpop.f32.mrf.mxu0
  %v2675 = vpop.f32.mrf.mxu0
  %v2676 = vadd.f32 %v2564, %v2675
  %v2677 = vpop.f32.mrf.mxu0
  %2678 = vmatprep.mubr.bf16.mxu0 0
  %2679 = vmatmul.mubr.bf16.gmra.mxu0 %v2539
  %v2680 = vpop.f32.mrf.mxu0
  %v2681 = vadd.f32 %v2564, %v2680
  %v2682 = vpop.f32.mrf.mxu0
  %v2683 = vpop.f32.mrf.mxu0
  %v2684 = vadd.f32 %v2564, %v2683
  %v2685 = vpop.f32.mrf.mxu0
  %2686 = vmatprep.mubr.bf16.mxu0 0
  %2687 = vmatmul.mubr.bf16.gmra.mxu0 %v2540
  %v2688 = vpop.f32.mrf.mxu0
  %v2689 = vadd.f32 %v2564, %v2688
  %v2690 = vpop.f32.mrf.mxu0
  %v2691 = vpop.f32.mrf.mxu0
  %v2692 = vadd.f32 %v2564, %v2691
  %v2693 = vpop.f32.mrf.mxu0
  %2694 = vmatprep.mubr.bf16.mxu0 0
  %2695 = vmatmul.mubr.bf16.gmra.mxu0 %v2541
  %v2696 = vpop.f32.mrf.mxu0
  %v2697 = vadd.f32 %v2564, %v2696
  %v2698 = vpop.f32.mrf.mxu0
  %v2699 = vpop.f32.mrf.mxu0
  %v2700 = vadd.f32 %v2564, %v2699
  %v2701 = vpop.f32.mrf.mxu0
  %2702 = vmatprep.mubr.bf16.mxu0 0
  %2703 = vmatmul.mubr.bf16.gmra.mxu0 %v2542
  %v2704 = vpop.f32.mrf.mxu0
  %v2705 = vadd.f32 %v2564, %v2704
  %v2706 = vpop.f32.mrf.mxu0
  %v2707 = vpop.f32.mrf.mxu0
  %v2708 = vadd.f32 %v2564, %v2707
  %v2709 = vpop.f32.mrf.mxu0
  %2710 = vdwg.mxu0
  %v2711 = vld [vmem:[%s1] sm:$0xff]
  %v2712 = vld [vmem:[%s1 + $0x8] sm:$0xff]
  %v2713 = vld [vmem:[%s1 + $0x10] sm:$0xff]
  %v2714 = vld [vmem:[%s1 + $0x18] sm:$0xff]
  %v2715 = vld [vmem:[%s1 + $0x20] sm:$0xff]
  %v2716 = vld [vmem:[%s1 + $0x28] sm:$0xff]
  %v2717 = vld [vmem:[%s1 + $0x30] sm:$0xff]
  %v2718 = vld [vmem:[%s1 + $0x38] sm:$0xff]
  %v2719 = vld [vmem:[%s1 + $0x40] sm:$0xff]
  %v2720 = vld [vmem:[%s1 + $0x48] sm:$0xff]
  %v2721 = vld [vmem:[%s1 + $0x50] sm:$0xff]
  %v2722 = vld [vmem:[%s1 + $0x58] sm:$0xff]
  %v2723 = vld [vmem:[%s1 + $0x60] sm:$0xff]
  %v2724 = vld [vmem:[%s1 + $0x68] sm:$0xff]
  %v2725 = vld [vmem:[%s1 + $0x70] sm:$0xff]
  %v2726 = vld [vmem:[%s1 + $0x78] sm:$0xff]
  %v2727 = vlaneseq
  %v2728 = vand.u32 %v2727, 127
  %2729 = vset.pattern.permute.xlu0 0
  %2730 = vperm.xlu0 %2729, %v2711
  %v2731 = vpop.permute.xlu0 %2730
  %2732 = vset.pattern.permute.xlu0 0
  %2733 = vperm.xlu0 %2732, %v2712
  %v2734 = vpop.permute.xlu0 %2733
  %2735 = vset.pattern.permute.xlu0 0
  %2736 = vperm.xlu0 %2735, %v2713
  %v2737 = vpop.permute.xlu0 %2736
  %2738 = vset.pattern.permute.xlu0 0
  %2739 = vperm.xlu0 %2738, %v2714
  %v2740 = vpop.permute.xlu0 %2739
  %2741 = vset.pattern.permute.xlu0 0
  %2742 = vperm.xlu0 %2741, %v2715
  %v2743 = vpop.permute.xlu0 %2742
  %2744 = vset.pattern.permute.xlu0 0
  %2745 = vperm.xlu0 %2744, %v2716
  %v2746 = vpop.permute.xlu0 %2745
  %2747 = vset.pattern.permute.xlu0 0
  %2748 = vperm.xlu0 %2747, %v2717
  %v2749 = vpop.permute.xlu0 %2748
  %2750 = vset.pattern.permute.xlu0 0
  %2751 = vperm.xlu0 %2750, %v2718
  %v2752 = vpop.permute.xlu0 %2751
  %2753 = vset.pattern.permute.xlu0 0
  %2754 = vperm.xlu0 %2753, %v2719
  %v2755 = vpop.permute.xlu0 %2754
  %2756 = vset.pattern.permute.xlu0 0
  %2757 = vperm.xlu0 %2756, %v2720
  %v2758 = vpop.permute.xlu0 %2757
  %2759 = vset.pattern.permute.xlu0 0
  %2760 = vperm.xlu0 %2759, %v2721
  %v2761 = vpop.permute.xlu0 %2760
  %2762 = vset.pattern.permute.xlu0 0
  %2763 = vperm.xlu0 %2762, %v2722
  %v2764 = vpop.permute.xlu0 %2763
  %2765 = vset.pattern.permute.xlu0 0
  %2766 = vperm.xlu0 %2765, %v2723
  %v2767 = vpop.permute.xlu0 %2766
  %2768 = vset.pattern.permute.xlu0 0
  %2769 = vperm.xlu0 %2768, %v2724
  %v2770 = vpop.permute.xlu0 %2769
  %2771 = vset.pattern.permute.xlu0 0
  %2772 = vperm.xlu0 %2771, %v2725
  %v2773 = vpop.permute.xlu0 %2772
  %2774 = vset.pattern.permute.xlu0 0
  %2775 = vperm.xlu0 %2774, %v2726
  %v2776 = vpop.permute.xlu0 %2775
  %vm2777 = vcmp.eq.s32.totalorder %v2728, %v2731
  %vm2778 = vcmp.eq.s32.totalorder %v2728, %v2734
  %vm2779 = vcmp.eq.s32.totalorder %v2728, %v2737
  %vm2780 = vcmp.eq.s32.totalorder %v2728, %v2740
  %vm2781 = vcmp.eq.s32.totalorder %v2728, %v2743
  %vm2782 = vcmp.eq.s32.totalorder %v2728, %v2746
  %vm2783 = vcmp.eq.s32.totalorder %v2728, %v2749
  %vm2784 = vcmp.eq.s32.totalorder %v2728, %v2752
  %vm2785 = vcmp.eq.s32.totalorder %v2728, %v2755
  %vm2786 = vcmp.eq.s32.totalorder %v2728, %v2758
  %vm2787 = vcmp.eq.s32.totalorder %v2728, %v2761
  %vm2788 = vcmp.eq.s32.totalorder %v2728, %v2764
  %vm2789 = vcmp.eq.s32.totalorder %v2728, %v2767
  %vm2790 = vcmp.eq.s32.totalorder %v2728, %v2770
  %vm2791 = vcmp.eq.s32.totalorder %v2728, %v2773
  %vm2792 = vcmp.eq.s32.totalorder %v2728, %v2776
  %vm2793 = vcmask 31744
  %v2794 = vsel %vm2793, %v2649, -inf
  %2795 = vmax.xlane.f32.xlu0 %v2794
  %v2796 = vpop.xlane.xlu0 %2795
  %v2797 = vsel %vm2793, %v2652, -inf
  %2798 = vmax.xlane.f32.xlu0 %v2797
  %v2799 = vpop.xlane.xlu0 %2798
  %v2800 = vsel %vm2793, %v2657, -inf
  %2801 = vmax.xlane.f32.xlu0 %v2800
  %v2802 = vpop.xlane.xlu0 %2801
  %v2803 = vsel %vm2793, %v2660, -inf
  %2804 = vmax.xlane.f32.xlu0 %v2803
  %v2805 = vpop.xlane.xlu0 %2804
  %v2806 = vsel %vm2793, %v2665, -inf
  %2807 = vmax.xlane.f32.xlu0 %v2806
  %v2808 = vpop.xlane.xlu0 %2807
  %v2809 = vsel %vm2793, %v2668, -inf
  %2810 = vmax.xlane.f32.xlu0 %v2809
  %v2811 = vpop.xlane.xlu0 %2810
  %v2812 = vsel %vm2793, %v2673, -inf
  %2813 = vmax.xlane.f32.xlu0 %v2812
  %v2814 = vpop.xlane.xlu0 %2813
  %v2815 = vsel %vm2793, %v2676, -inf
  %2816 = vmax.xlane.f32.xlu0 %v2815
  %v2817 = vpop.xlane.xlu0 %2816
  %v2818 = vsel %vm2793, %v2681, -inf
  %2819 = vmax.xlane.f32.xlu0 %v2818
  %v2820 = vpop.xlane.xlu0 %2819
  %v2821 = vsel %vm2793, %v2684, -inf
  %2822 = vmax.xlane.f32.xlu0 %v2821
  %v2823 = vpop.xlane.xlu0 %2822
  %v2824 = vsel %vm2793, %v2689, -inf
  %2825 = vmax.xlane.f32.xlu0 %v2824
  %v2826 = vpop.xlane.xlu0 %2825
  %v2827 = vsel %vm2793, %v2692, -inf
  %2828 = vmax.xlane.f32.xlu0 %v2827
  %v2829 = vpop.xlane.xlu0 %2828
  %v2830 = vsel %vm2793, %v2697, -inf
  %2831 = vmax.xlane.f32.xlu0 %v2830
  %v2832 = vpop.xlane.xlu0 %2831
  %v2833 = vsel %vm2793, %v2700, -inf
  %2834 = vmax.xlane.f32.xlu0 %v2833
  %v2835 = vpop.xlane.xlu0 %2834
  %v2836 = vsel %vm2793, %v2705, -inf
  %2837 = vmax.xlane.f32.xlu0 %v2836
  %v2838 = vpop.xlane.xlu0 %2837
  %v2839 = vsel %vm2793, %v2708, -inf
  %2840 = vmax.xlane.f32.xlu0 %v2839
  %v2841 = vpop.xlane.xlu0 %2840
  %v2842 = vsub.f32 %v2649, %v2796
  %v2843 = vsub.f32 %v2652, %v2799
  %v2844 = vsub.f32 %v2657, %v2802
  %v2845 = vsub.f32 %v2660, %v2805
  %v2846 = vsub.f32 %v2665, %v2808
  %v2847 = vsub.f32 %v2668, %v2811
  %v2848 = vsub.f32 %v2673, %v2814
  %v2849 = vsub.f32 %v2676, %v2817
  %v2850 = vsub.f32 %v2681, %v2820
  %v2851 = vsub.f32 %v2684, %v2823
  %v2852 = vsub.f32 %v2689, %v2826
  %v2853 = vsub.f32 %v2692, %v2829
  %v2854 = vsub.f32 %v2697, %v2832
  %v2855 = vsub.f32 %v2700, %v2835
  %v2856 = vsub.f32 %v2705, %v2838
  %v2857 = vsub.f32 %v2708, %v2841
  %v2858 = vmul.f32 %v2842, 1.442695
  %v2859 = vpow.pop %v2858
  %v2860 = vmul.f32 %v2843, 1.442695
  %v2861 = vpow.pop %v2860
  %v2862 = vmul.f32 %v2844, 1.442695
  %v2863 = vpow.pop %v2862
  %v2864 = vmul.f32 %v2845, 1.442695
  %v2865 = vpow.pop %v2864
  %v2866 = vmul.f32 %v2846, 1.442695
  %v2867 = vpow.pop %v2866
  %v2868 = vmul.f32 %v2847, 1.442695
  %v2869 = vpow.pop %v2868
  %v2870 = vmul.f32 %v2848, 1.442695
  %v2871 = vpow.pop %v2870
  %v2872 = vmul.f32 %v2849, 1.442695
  %v2873 = vpow.pop %v2872
  %v2874 = vmul.f32 %v2850, 1.442695
  %v2875 = vpow.pop %v2874
  %v2876 = vmul.f32 %v2851, 1.442695
  %v2877 = vpow.pop %v2876
  %v2878 = vmul.f32 %v2852, 1.442695
  %v2879 = vpow.pop %v2878
  %v2880 = vmul.f32 %v2853, 1.442695
  %v2881 = vpow.pop %v2880
  %v2882 = vmul.f32 %v2854, 1.442695
  %v2883 = vpow.pop %v2882
  %v2884 = vmul.f32 %v2855, 1.442695
  %v2885 = vpow.pop %v2884
  %v2886 = vmul.f32 %v2856, 1.442695
  %v2887 = vpow.pop %v2886
  %v2888 = vmul.f32 %v2857, 1.442695
  %v2889 = vpow.pop %v2888
  %v2890 = vsel %vm2793, %v2859, 0.0
  %2891 = vadd.xlane.f32.xlu0 %v2890
  %v2892 = vpop.xlane.xlu0 %2891
  %v2893 = vsel %vm2793, %v2861, 0.0
  %2894 = vadd.xlane.f32.xlu0 %v2893
  %v2895 = vpop.xlane.xlu0 %2894
  %v2896 = vsel %vm2793, %v2863, 0.0
  %2897 = vadd.xlane.f32.xlu0 %v2896
  %v2898 = vpop.xlane.xlu0 %2897
  %v2899 = vsel %vm2793, %v2865, 0.0
  %2900 = vadd.xlane.f32.xlu0 %v2899
  %v2901 = vpop.xlane.xlu0 %2900
  %v2902 = vsel %vm2793, %v2867, 0.0
  %2903 = vadd.xlane.f32.xlu0 %v2902
  %v2904 = vpop.xlane.xlu0 %2903
  %v2905 = vsel %vm2793, %v2869, 0.0
  %2906 = vadd.xlane.f32.xlu0 %v2905
  %v2907 = vpop.xlane.xlu0 %2906
  %v2908 = vsel %vm2793, %v2871, 0.0
  %2909 = vadd.xlane.f32.xlu0 %v2908
  %v2910 = vpop.xlane.xlu0 %2909
  %v2911 = vsel %vm2793, %v2873, 0.0
  %2912 = vadd.xlane.f32.xlu0 %v2911
  %v2913 = vpop.xlane.xlu0 %2912
  %v2914 = vsel %vm2793, %v2875, 0.0
  %2915 = vadd.xlane.f32.xlu0 %v2914
  %v2916 = vpop.xlane.xlu0 %2915
  %v2917 = vsel %vm2793, %v2877, 0.0
  %2918 = vadd.xlane.f32.xlu0 %v2917
  %v2919 = vpop.xlane.xlu0 %2918
  %v2920 = vsel %vm2793, %v2879, 0.0
  %2921 = vadd.xlane.f32.xlu0 %v2920
  %v2922 = vpop.xlane.xlu0 %2921
  %v2923 = vsel %vm2793, %v2881, 0.0
  %2924 = vadd.xlane.f32.xlu0 %v2923
  %v2925 = vpop.xlane.xlu0 %2924
  %v2926 = vsel %vm2793, %v2883, 0.0
  %2927 = vadd.xlane.f32.xlu0 %v2926
  %v2928 = vpop.xlane.xlu0 %2927
  %v2929 = vsel %vm2793, %v2885, 0.0
  %2930 = vadd.xlane.f32.xlu0 %v2929
  %v2931 = vpop.xlane.xlu0 %2930
  %v2932 = vsel %vm2793, %v2887, 0.0
  %2933 = vadd.xlane.f32.xlu0 %v2932
  %v2934 = vpop.xlane.xlu0 %2933
  %v2935 = vsel %vm2793, %v2889, 0.0
  %2936 = vadd.xlane.f32.xlu0 %v2935
  %v2937 = vpop.xlane.xlu0 %2936
  %v2938 = vlog2.pop %v2892
  %v2939 = vmul.f32 %v2938, 0.6931472
  %v2940 = vlog2.pop %v2895
  %v2941 = vmul.f32 %v2940, 0.6931472
  %v2942 = vlog2.pop %v2898
  %v2943 = vmul.f32 %v2942, 0.6931472
  %v2944 = vlog2.pop %v2901
  %v2945 = vmul.f32 %v2944, 0.6931472
  %v2946 = vlog2.pop %v2904
  %v2947 = vmul.f32 %v2946, 0.6931472
  %v2948 = vlog2.pop %v2907
  %v2949 = vmul.f32 %v2948, 0.6931472
  %v2950 = vlog2.pop %v2910
  %v2951 = vmul.f32 %v2950, 0.6931472
  %v2952 = vlog2.pop %v2913
  %v2953 = vmul.f32 %v2952, 0.6931472
  %v2954 = vlog2.pop %v2916
  %v2955 = vmul.f32 %v2954, 0.6931472
  %v2956 = vlog2.pop %v2919
  %v2957 = vmul.f32 %v2956, 0.6931472
  %v2958 = vlog2.pop %v2922
  %v2959 = vmul.f32 %v2958, 0.6931472
  %v2960 = vlog2.pop %v2925
  %v2961 = vmul.f32 %v2960, 0.6931472
  %v2962 = vlog2.pop %v2928
  %v2963 = vmul.f32 %v2962, 0.6931472
  %v2964 = vlog2.pop %v2931
  %v2965 = vmul.f32 %v2964, 0.6931472
  %v2966 = vlog2.pop %v2934
  %v2967 = vmul.f32 %v2966, 0.6931472
  %v2968 = vlog2.pop %v2937
  %v2969 = vmul.f32 %v2968, 0.6931472
  %v2970 = vsel %vm2777, %v2649, 0.0
  %v2971 = vsel %vm2778, %v2652, 0.0
  %v2972 = vsel %vm2779, %v2657, 0.0
  %v2973 = vsel %vm2780, %v2660, 0.0
  %v2974 = vsel %vm2781, %v2665, 0.0
  %v2975 = vsel %vm2782, %v2668, 0.0
  %v2976 = vsel %vm2783, %v2673, 0.0
  %v2977 = vsel %vm2784, %v2676, 0.0
  %v2978 = vsel %vm2785, %v2681, 0.0
  %v2979 = vsel %vm2786, %v2684, 0.0
  %v2980 = vsel %vm2787, %v2689, 0.0
  %v2981 = vsel %vm2788, %v2692, 0.0
  %v2982 = vsel %vm2789, %v2697, 0.0
  %v2983 = vsel %vm2790, %v2700, 0.0
  %v2984 = vsel %vm2791, %v2705, 0.0
  %v2985 = vsel %vm2792, %v2708, 0.0
  %v2986 = vsel %vm2793, %v2970, 0.0
  %2987 = vadd.xlane.f32.xlu0 %v2986
  %v2988 = vpop.xlane.xlu0 %2987
  %v2989 = vsel %vm2793, %v2971, 0.0
  %2990 = vadd.xlane.f32.xlu0 %v2989
  %v2991 = vpop.xlane.xlu0 %2990
  %v2992 = vsel %vm2793, %v2972, 0.0
  %2993 = vadd.xlane.f32.xlu0 %v2992
  %v2994 = vpop.xlane.xlu0 %2993
  %v2995 = vsel %vm2793, %v2973, 0.0
  %2996 = vadd.xlane.f32.xlu0 %v2995
  %v2997 = vpop.xlane.xlu0 %2996
  %v2998 = vsel %vm2793, %v2974, 0.0
  %2999 = vadd.xlane.f32.xlu0 %v2998
  %v3000 = vpop.xlane.xlu0 %2999
  %v3001 = vsel %vm2793, %v2975, 0.0
  %3002 = vadd.xlane.f32.xlu0 %v3001
  %v3003 = vpop.xlane.xlu0 %3002
  %v3004 = vsel %vm2793, %v2976, 0.0
  %3005 = vadd.xlane.f32.xlu0 %v3004
  %v3006 = vpop.xlane.xlu0 %3005
  %v3007 = vsel %vm2793, %v2977, 0.0
  %3008 = vadd.xlane.f32.xlu0 %v3007
  %v3009 = vpop.xlane.xlu0 %3008
  %v3010 = vsel %vm2793, %v2978, 0.0
  %3011 = vadd.xlane.f32.xlu0 %v3010
  %v3012 = vpop.xlane.xlu0 %3011
  %v3013 = vsel %vm2793, %v2979, 0.0
  %3014 = vadd.xlane.f32.xlu0 %v3013
  %v3015 = vpop.xlane.xlu0 %3014
  %v3016 = vsel %vm2793, %v2980, 0.0
  %3017 = vadd.xlane.f32.xlu0 %v3016
  %v3018 = vpop.xlane.xlu0 %3017
  %v3019 = vsel %vm2793, %v2981, 0.0
  %3020 = vadd.xlane.f32.xlu0 %v3019
  %v3021 = vpop.xlane.xlu0 %3020
  %v3022 = vsel %vm2793, %v2982, 0.0
  %3023 = vadd.xlane.f32.xlu0 %v3022
  %v3024 = vpop.xlane.xlu0 %3023
  %v3025 = vsel %vm2793, %v2983, 0.0
  %3026 = vadd.xlane.f32.xlu0 %v3025
  %v3027 = vpop.xlane.xlu0 %3026
  %v3028 = vsel %vm2793, %v2984, 0.0
  %3029 = vadd.xlane.f32.xlu0 %v3028
  %v3030 = vpop.xlane.xlu0 %3029
  %v3031 = vsel %vm2793, %v2985, 0.0
  %3032 = vadd.xlane.f32.xlu0 %v3031
  %v3033 = vpop.xlane.xlu0 %3032
  %v3034 = vsub.f32 %v2988, %v2796
  %v3035 = vsub.f32 %v2991, %v2799
  %v3036 = vsub.f32 %v2994, %v2802
  %v3037 = vsub.f32 %v2997, %v2805
  %v3038 = vsub.f32 %v3000, %v2808
  %v3039 = vsub.f32 %v3003, %v2811
  %v3040 = vsub.f32 %v3006, %v2814
  %v3041 = vsub.f32 %v3009, %v2817
  %v3042 = vsub.f32 %v3012, %v2820
  %v3043 = vsub.f32 %v3015, %v2823
  %v3044 = vsub.f32 %v3018, %v2826
  %v3045 = vsub.f32 %v3021, %v2829
  %v3046 = vsub.f32 %v3024, %v2832
  %v3047 = vsub.f32 %v3027, %v2835
  %v3048 = vsub.f32 %v3030, %v2838
  %v3049 = vsub.f32 %v3033, %v2841
  %v3050 = vsub.f32 %v3034, %v2939
  %v3051 = vsub.f32 %v3035, %v2941
  %v3052 = vsub.f32 %v3036, %v2943
  %v3053 = vsub.f32 %v3037, %v2945
  %v3054 = vsub.f32 %v3038, %v2947
  %v3055 = vsub.f32 %v3039, %v2949
  %v3056 = vsub.f32 %v3040, %v2951
  %v3057 = vsub.f32 %v3041, %v2953
  %v3058 = vsub.f32 %v3042, %v2955
  %v3059 = vsub.f32 %v3043, %v2957
  %v3060 = vsub.f32 %v3044, %v2959
  %v3061 = vsub.f32 %v3045, %v2961
  %v3062 = vsub.f32 %v3046, %v2963
  %v3063 = vsub.f32 %v3047, %v2965
  %v3064 = vsub.f32 %v3048, %v2967
  %v3065 = vsub.f32 %v3049, %v2969
  %vm3066 = vcmask 7168
  %3067 = vst.msk [vmem:[%s12] sm:$0xff] %vm3066, %v3050
  %3068 = vst.msk [vmem:[%s12 + $0x8] sm:$0xff] %vm3066, %v3051
  %3069 = vst.msk [vmem:[%s12 + $0x10] sm:$0xff] %vm3066, %v3052
  %3070 = vst.msk [vmem:[%s12 + $0x18] sm:$0xff] %vm3066, %v3053
  %3071 = vst.msk [vmem:[%s12 + $0x20] sm:$0xff] %vm3066, %v3054
  %3072 = vst.msk [vmem:[%s12 + $0x28] sm:$0xff] %vm3066, %v3055
  %3073 = vst.msk [vmem:[%s12 + $0x30] sm:$0xff] %vm3066, %v3056
  %3074 = vst.msk [vmem:[%s12 + $0x38] sm:$0xff] %vm3066, %v3057
  %3075 = vst.msk [vmem:[%s12 + $0x40] sm:$0xff] %vm3066, %v3058
  %3076 = vst.msk [vmem:[%s12 + $0x48] sm:$0xff] %vm3066, %v3059
  %3077 = vst.msk [vmem:[%s12 + $0x50] sm:$0xff] %vm3066, %v3060
  %3078 = vst.msk [vmem:[%s12 + $0x58] sm:$0xff] %vm3066, %v3061
  %3079 = vst.msk [vmem:[%s12 + $0x60] sm:$0xff] %vm3066, %v3062
  %3080 = vst.msk [vmem:[%s12 + $0x68] sm:$0xff] %vm3066, %v3063
  %3081 = vst.msk [vmem:[%s12 + $0x70] sm:$0xff] %vm3066, %v3064
  %3082 = vst.msk [vmem:[%s12 + $0x78] sm:$0xff] %vm3066, %v3065
  // Predicated region
  $region50: #{tpu_custom_call.1} parent=0 // pred_check
    _
  $region51: #{tpu_custom_call.1} parent=0 // pred_check_branch
    %3084 = sbr.rel (0) target = $region53
  $region52: #{tpu_custom_call.1} parent=0 // pred_region
    _
  $region53: #{tpu_custom_call.1} parent=0 // pred_fallthru
    _
  // Predicated region
  $region54: #{tpu_custom_call.1} parent=0 // pred_check
    _
  $region55: #{tpu_custom_call.1} parent=0 // pred_check_branch
    %3086 = sbr.rel (0) target = $region57
  $region56: #{tpu_custom_call.1} parent=0 // pred_region
    _
  $region57: #{tpu_custom_call.1} parent=0 // pred_fallthru
    _

</llo_original>
